<compile_context>
chip_gen: v5e
topology: v5e:2x2
jax: 0.10.0
libtpu: 0.0.40
codegen_flags: <defaults>
</compile_context>

<pallas_src>
import functools

import jax
import jax.numpy as jnp
from jax.experimental import pallas as pl
from jax.experimental.pallas import tpu as pltpu


# ----------------------------- config -----------------------------

class ViTConfig:
    img_size = 16
    patch_size = 4
    in_chans = 3
    num_classes = 10
    embed_dim = 32
    depth = 2
    num_heads = 4
    mlp_ratio = 4.0
    pool = "cls"

    @property
    def dim_head(self):
        return self.embed_dim // self.num_heads

    @property
    def inner_dim(self):
        return self.dim_head * self.num_heads

    @property
    def mlp_dim(self):
        return int(self.embed_dim * self.mlp_ratio)

    @property
    def num_patches(self):
        return (self.img_size // self.patch_size) ** 2

    @property
    def patch_dim(self):
        return self.in_chans * self.patch_size * self.patch_size

    @property
    def seq_len(self):
        return self.num_patches + 1          # cls + patches (real tokens)

    @property
    def seq_pad(self):
        return ((self.seq_len + 7) // 8) * 8  # pad to sublane multiple (8)


# ----------------------------- in-kernel helpers -----------------------------

def _layernorm(x, g, b, eps=1e-5):
    x = x.astype(jnp.float32)
    mean = jnp.mean(x, axis=-1, keepdims=True)
    var = jnp.mean((x - mean) ** 2, axis=-1, keepdims=True)
    return (x - mean) * jax.lax.rsqrt(var + eps) * g + b


def _erf(x):
    # Abramowitz & Stegun 7.1.26 polynomial approximation, |err| <= 1.5e-7.
    # Built only from exp / mul / add / where so it always lowers in Mosaic.
    a1, a2, a3, a4, a5 = (0.254829592, -0.284496736, 1.421413741,
                          -1.453152027, 1.061405429)
    p = 0.3275911
    ax = jnp.abs(x)
    t = 1.0 / (1.0 + p * ax)
    poly = ((((a5 * t + a4) * t + a3) * t + a2) * t + a1) * t
    e = 1.0 - poly * jnp.exp(-ax * ax)
    return jnp.where(x >= 0.0, e, -e)


def _gelu(x):
    # exact / erf form, matching nn.GELU() default
    return 0.5 * x * (1.0 + _erf(x * 0.7071067811865476))


# ----------------------------- fused ViT kernel -----------------------------

def _vit_kernel(
    # inputs
    patches_ref, pw_ref, pb_ref, cls_ref, pos_ref,
    ln1g_ref, ln1b_ref, qkvw_ref, outw_ref, outb_ref,
    ln2g_ref, ln2b_ref, f1w_ref, f1b_ref, f2w_ref, f2b_ref,
    hlng_ref, hlnb_ref, hw_ref, hb_ref,
    # outputs
    o_ref,
    # scratch
    tok_ref, attn_ref,
    *, batch, n_real, n_pad, num_patches, heads, dim_head, depth, scale):
    inner = heads * dim_head

    # ---- patch embedding: (B*num_patches, patch_dim) @ (patch_dim, dim) + b ----
    y = jnp.dot(patches_ref[...], pw_ref[...],
                preferred_element_type=jnp.float32) + pb_ref[...]

    cls = cls_ref[...]                       # (1, dim)
    pos = pos_ref[...]                       # (n_pad, dim); rows >= n_real are 0

    # ---- assemble token slab [batch*n_pad, dim] in VMEM scratch ----
    for b in range(batch):
        base = b * n_pad
        tok_ref[base:base + 1, :] = cls + pos[0:1, :]
        tok_ref[base + 1:base + 1 + num_patches, :] = (
            y[b * num_patches:(b + 1) * num_patches, :]
            + pos[1:1 + num_patches, :])
        # padded token rows (pos padding rows are zero)
        tok_ref[base + 1 + num_patches:base + n_pad, :] = (
            pos[1 + num_patches:n_pad, :])

    x = tok_ref[...]                         # (batch*n_pad, dim), f32

    # additive key-padding mask (columns >= n_real are invalid keys)
    col = jax.lax.broadcasted_iota(jnp.int32, (n_pad, n_pad), 1)
    mask_add = jnp.where(col < n_real, 0.0, -1e30).astype(jnp.float32)

    # ---- transformer layers (statically unrolled) ----
    for l in range(depth):
        # PreNorm + Attention (qkv bias=False)
        yln = _layernorm(x, ln1g_ref[l], ln1b_ref[l])
        qkv = jnp.dot(yln, qkvw_ref[l],
                      preferred_element_type=jnp.float32)   # (B*n_pad, 3*inner)
        for b in range(batch):
            base = b * n_pad
            for h in range(heads):
                lo = h * dim_head
                q = qkv[base:base + n_pad, lo:lo + dim_head]
                k = qkv[base:base + n_pad, inner + lo:inner + lo + dim_head]
                v = qkv[base:base + n_pad, 2 * inner + lo:2 * inner + lo + dim_head]
                s = jnp.dot(q, k.T, preferred_element_type=jnp.float32) * scale
                s = s + mask_add
                s = s - jnp.max(s, axis=-1, keepdims=True)
                p = jnp.exp(s)
                p = p * pl.reciprocal(jnp.sum(p, axis=-1, keepdims=True),
                                      approx=True)
                oh = jnp.dot(p, v, preferred_element_type=jnp.float32)
                attn_ref[base:base + n_pad, lo:lo + dim_head] = oh
        attn = attn_ref[...]                                  # (B*n_pad, inner)
        attn = jnp.dot(attn, outw_ref[l],
                       preferred_element_type=jnp.float32) + outb_ref[l]
        x = x + attn                                          # residual

        # PreNorm + FeedForward
        yln = _layernorm(x, ln2g_ref[l], ln2b_ref[l])
        h1 = jnp.dot(yln, f1w_ref[l],
                     preferred_element_type=jnp.float32) + f1b_ref[l]
        h1 = _gelu(h1)
        h2 = jnp.dot(h1, f2w_ref[l],
                     preferred_element_type=jnp.float32) + f2b_ref[l]
        x = x + h2                                            # residual

    # ---- cls pooling + head LayerNorm + classifier ----
    for b in range(batch):
        base = b * n_pad
        pooled = _layernorm(x[base:base + 1, :], hlng_ref[...], hlnb_ref[...])
        logits = jnp.dot(pooled, hw_ref[...],
                         preferred_element_type=jnp.float32) + hb_ref[...]
        o_ref[b:b + 1, :] = logits.astype(o_ref.dtype)


# ----------------------------- params / wrapper -----------------------------

def _trunc_normal(key, shape, std=0.02):
    return std * jax.random.truncated_normal(key, -2.0, 2.0, shape, jnp.float32)


def init_params(key, cfg: ViTConfig):
    ks = jax.random.split(key, 8)
    dim, mlp, inner, depth = cfg.embed_dim, cfg.mlp_dim, cfg.inner_dim, cfg.depth
    # nn.Linear weights stored as (in, out): y = x @ w_in_out + b  (== x @ W^T + b)
    return {
        "patch_w": _trunc_normal(ks[0], (cfg.patch_dim, dim)),
        "patch_b": jnp.zeros((1, dim), jnp.float32),
        "pos_embedding": jax.random.normal(ks[1], (cfg.seq_len, dim), jnp.float32),
        "cls_token": _trunc_normal(ks[2], (1, dim)),
        "ln1_g": jnp.ones((depth, 1, dim), jnp.float32),
        "ln1_b": jnp.zeros((depth, 1, dim), jnp.float32),
        "qkv_w": _trunc_normal(ks[3], (depth, dim, 3 * inner)),   # bias=False
        "out_w": _trunc_normal(ks[4], (depth, inner, dim)),
        "out_b": jnp.zeros((depth, 1, dim), jnp.float32),
        "ln2_g": jnp.ones((depth, 1, dim), jnp.float32),
        "ln2_b": jnp.zeros((depth, 1, dim), jnp.float32),
        "ff1_w": _trunc_normal(ks[5], (depth, dim, mlp)),
        "ff1_b": jnp.zeros((depth, 1, mlp), jnp.float32),
        "ff2_w": _trunc_normal(ks[6], (depth, mlp, dim)),
        "ff2_b": jnp.zeros((depth, 1, dim), jnp.float32),
        "head_ln_g": jnp.ones((1, dim), jnp.float32),
        "head_ln_b": jnp.zeros((1, dim), jnp.float32),
        "head_w": _trunc_normal(ks[7], (dim, cfg.num_classes)),
        "head_b": jnp.zeros((1, cfg.num_classes), jnp.float32),
    }


def vit_forward(img, params, cfg: ViTConfig):
    """img: NCHW float32 [B, C, H, W]."""
    B, C, H, W = img.shape
    p = cfg.patch_size
    hg, wg = H // p, W // p
    num_patches = hg * wg
    n_real, n_pad = cfg.seq_len, cfg.seq_pad

    # Rearrange('b c (h p1) (w p2) -> b (h w) (p1 p2 c)')  (pure layout glue)
    x = img.reshape(B, C, hg, p, wg, p)
    x = jnp.transpose(x, (0, 2, 4, 3, 5, 1))
    patches = x.reshape(B * num_patches, cfg.patch_dim)

    # pad positional embedding to the aligned sequence length (zeros beyond)
    pos = jnp.pad(params["pos_embedding"], ((0, n_pad - n_real), (0, 0)))

    inputs = [
        patches, params["patch_w"], params["patch_b"], params["cls_token"], pos,
        params["ln1_g"], params["ln1_b"], params["qkv_w"], params["out_w"],
        params["out_b"], params["ln2_g"], params["ln2_b"], params["ff1_w"],
        params["ff1_b"], params["ff2_w"], params["ff2_b"],
        params["head_ln_g"], params["head_ln_b"], params["head_w"],
        params["head_b"],
    ]

    def fullspec(a):
        nd = a.ndim
        return pl.BlockSpec(a.shape, lambda i, _nd=nd: (0,) * _nd)

    kern = functools.partial(
        _vit_kernel,
        batch=B, n_real=n_real, n_pad=n_pad, num_patches=num_patches,
        heads=cfg.num_heads, dim_head=cfg.dim_head, depth=cfg.depth,
        scale=cfg.dim_head ** (-0.5))

    return pl.pallas_call(
        kern,
        out_shape=jax.ShapeDtypeStruct((B, cfg.num_classes), jnp.float32),
        grid=(1,),
        in_specs=[fullspec(a) for a in inputs],
        out_specs=pl.BlockSpec((B, cfg.num_classes), lambda i: (0, 0)),
        scratch_shapes=[
            pltpu.VMEM((B * n_pad, cfg.embed_dim), jnp.float32),   # token slab
            pltpu.VMEM((B * n_pad, cfg.inner_dim), jnp.float32),   # attn output
        ],
        compiler_params=pltpu.CompilerParams(
            dimension_semantics=("arbitrary",)),
    )(*inputs)


# TODO(synk): get_attention_map (diagnostic, CUDA-specific distance tensor) and
# interpolate_pos_encoding's bicubic resize (no-op at matching resolution) are
# not part of the standard forward and are not ported. Dropout/DropPath are
# identity at inference (p=0.0).

# ----------------------------- driver -----------------------------

if __name__ == "__main__":
    cfg = ViTConfig()
    key = jax.random.PRNGKey(0)
    pkey, xkey = jax.random.split(key)

    params = init_params(pkey, cfg)
    img = jax.random.normal(
        xkey, (2, cfg.in_chans, cfg.img_size, cfg.img_size), jnp.float32)

    fwd = jax.jit(functools.partial(vit_forward, cfg=cfg))
    out = jax.block_until_ready(fwd(img, params))
    assert out.shape == (2, cfg.num_classes), out.shape
    assert bool(jnp.all(jnp.isfinite(out)))
    print("KERNEL_OK")
</pallas_src>

<mosaic_0001>
module attributes {stable_mosaic.version = 11 : i64} {
  func.func @_vit_kernel(%arg0: i32, %arg1: memref<32x48xf32, #tpu.memory_space<vmem>>, %arg2: memref<48x32xf32, #tpu.memory_space<vmem>>, %arg3: memref<1x32xf32, #tpu.memory_space<vmem>>, %arg4: memref<1x32xf32, #tpu.memory_space<vmem>>, %arg5: memref<24x32xf32, #tpu.memory_space<vmem>>, %arg6: memref<2x1x32xf32, #tpu.memory_space<vmem>>, %arg7: memref<2x1x32xf32, #tpu.memory_space<vmem>>, %arg8: memref<2x32x96xf32, #tpu.memory_space<vmem>>, %arg9: memref<2x32x32xf32, #tpu.memory_space<vmem>>, %arg10: memref<2x1x32xf32, #tpu.memory_space<vmem>>, %arg11: memref<2x1x32xf32, #tpu.memory_space<vmem>>, %arg12: memref<2x1x32xf32, #tpu.memory_space<vmem>>, %arg13: memref<2x32x128xf32, #tpu.memory_space<vmem>>, %arg14: memref<2x1x128xf32, #tpu.memory_space<vmem>>, %arg15: memref<2x128x32xf32, #tpu.memory_space<vmem>>, %arg16: memref<2x1x32xf32, #tpu.memory_space<vmem>>, %arg17: memref<1x32xf32, #tpu.memory_space<vmem>>, %arg18: memref<1x32xf32, #tpu.memory_space<vmem>>, %arg19: memref<32x10xf32, #tpu.memory_space<vmem>>, %arg20: memref<1x10xf32, #tpu.memory_space<vmem>>, %arg21: memref<2x10xf32, #tpu.memory_space<vmem>>, %arg22: memref<48x32xf32, #tpu.memory_space<vmem>>, %arg23: memref<48x32xf32, #tpu.memory_space<vmem>>) attributes {dimension_semantics = [#tpu.dimension_semantics<arbitrary>], iteration_bounds = array<i64: 1>, scalar_prefetch = 0 : i64, scratch_operands = 2 : i64, tpu.core_type = #tpu.core_type<tc>, window_params = [{pipeline_mode = #tpu.pipeline_mode<synchronous>, transform_indices = @transform_0, window_bounds = array<i64: 32, 48>}, {pipeline_mode = #tpu.pipeline_mode<synchronous>, transform_indices = @transform_1, window_bounds = array<i64: 48, 32>}, {pipeline_mode = #tpu.pipeline_mode<synchronous>, transform_indices = @transform_2, window_bounds = array<i64: 1, 32>}, {pipeline_mode = #tpu.pipeline_mode<synchronous>, transform_indices = @transform_3, window_bounds = array<i64: 1, 32>}, {pipeline_mode = #tpu.pipeline_mode<synchronous>, transform_indices = @transform_4, window_bounds = array<i64: 24, 32>}, {pipeline_mode = #tpu.pipeline_mode<synchronous>, transform_indices = @transform_5, window_bounds = array<i64: 2, 1, 32>}, {pipeline_mode = #tpu.pipeline_mode<synchronous>, transform_indices = @transform_6, window_bounds = array<i64: 2, 1, 32>}, {pipeline_mode = #tpu.pipeline_mode<synchronous>, transform_indices = @transform_7, window_bounds = array<i64: 2, 32, 96>}, {pipeline_mode = #tpu.pipeline_mode<synchronous>, transform_indices = @transform_8, window_bounds = array<i64: 2, 32, 32>}, {pipeline_mode = #tpu.pipeline_mode<synchronous>, transform_indices = @transform_9, window_bounds = array<i64: 2, 1, 32>}, {pipeline_mode = #tpu.pipeline_mode<synchronous>, transform_indices = @transform_10, window_bounds = array<i64: 2, 1, 32>}, {pipeline_mode = #tpu.pipeline_mode<synchronous>, transform_indices = @transform_11, window_bounds = array<i64: 2, 1, 32>}, {pipeline_mode = #tpu.pipeline_mode<synchronous>, transform_indices = @transform_12, window_bounds = array<i64: 2, 32, 128>}, {pipeline_mode = #tpu.pipeline_mode<synchronous>, transform_indices = @transform_13, window_bounds = array<i64: 2, 1, 128>}, {pipeline_mode = #tpu.pipeline_mode<synchronous>, transform_indices = @transform_14, window_bounds = array<i64: 2, 128, 32>}, {pipeline_mode = #tpu.pipeline_mode<synchronous>, transform_indices = @transform_15, window_bounds = array<i64: 2, 1, 32>}, {pipeline_mode = #tpu.pipeline_mode<synchronous>, transform_indices = @transform_16, window_bounds = array<i64: 1, 32>}, {pipeline_mode = #tpu.pipeline_mode<synchronous>, transform_indices = @transform_17, window_bounds = array<i64: 1, 32>}, {pipeline_mode = #tpu.pipeline_mode<synchronous>, transform_indices = @transform_18, window_bounds = array<i64: 32, 10>}, {pipeline_mode = #tpu.pipeline_mode<synchronous>, transform_indices = @transform_19, window_bounds = array<i64: 1, 10>}, {pipeline_mode = #tpu.pipeline_mode<synchronous>, transform_indices = @transform_20, window_bounds = array<i64: 2, 10>}]} {
    %c0 = arith.constant 0 : index
    %c0_0 = arith.constant 0 : index
    %0 = vector.load %arg1[%c0, %c0_0] : memref<32x48xf32, #tpu.memory_space<vmem>>, vector<32x48xf32>
    %c0_1 = arith.constant 0 : index
    %c0_2 = arith.constant 0 : index
    %1 = vector.load %arg2[%c0_1, %c0_2] : memref<48x32xf32, #tpu.memory_space<vmem>>, vector<48x32xf32>
    %cst = arith.constant dense<0.000000e+00> : vector<32x32xf32>
    %2 = tpu.matmul %0, %1, %cst {dimension_numbers = #tpu.dot_dimension_numbers<[1], [0], [0], [1], [0, 0, 1, 1], [], []>} : vector<32x48xf32>, vector<48x32xf32>, vector<32x32xf32> -> vector<32x32xf32>
    %c0_3 = arith.constant 0 : index
    %c0_4 = arith.constant 0 : index
    %3 = vector.load %arg3[%c0_3, %c0_4] : memref<1x32xf32, #tpu.memory_space<vmem>>, vector<1x32xf32>
    %4 = vector.broadcast %3 : vector<1x32xf32> to vector<32x32xf32>
    %5 = arith.addf %2, %4 : vector<32x32xf32>
    %c0_5 = arith.constant 0 : index
    %c0_6 = arith.constant 0 : index
    %6 = vector.load %arg4[%c0_5, %c0_6] : memref<1x32xf32, #tpu.memory_space<vmem>>, vector<1x32xf32>
    %c0_7 = arith.constant 0 : index
    %c0_8 = arith.constant 0 : index
    %7 = vector.load %arg5[%c0_7, %c0_8] : memref<24x32xf32, #tpu.memory_space<vmem>>, vector<24x32xf32>
    %8 = vector.extract_strided_slice %7 {offsets = [0, 0], sizes = [1, 32], strides = [1, 1]} : vector<24x32xf32> to vector<1x32xf32>
    %9 = arith.addf %6, %8 : vector<1x32xf32>
    %c0_9 = arith.constant 0 : index
    %c0_10 = arith.constant 0 : index
    %10 = vector.load %arg22[%c0_9, %c0_10] : memref<48x32xf32, #tpu.memory_space<vmem>>, vector<1x32xf32>
    tpu.vector_store %arg22[%c0_9, %c0_10], %9 {strides = array<i32>} : memref<48x32xf32, #tpu.memory_space<vmem>>, vector<1x32xf32>,
    %11 = vector.extract_strided_slice %5 {offsets = [0, 0], sizes = [16, 32], strides = [1, 1]} : vector<32x32xf32> to vector<16x32xf32>
    %12 = vector.extract_strided_slice %7 {offsets = [1, 0], sizes = [16, 32], strides = [1, 1]} : vector<24x32xf32> to vector<16x32xf32>
    %13 = arith.addf %11, %12 : vector<16x32xf32>
    %c1 = arith.constant 1 : index
    %c0_11 = arith.constant 0 : index
    %14 = vector.load %arg22[%c1, %c0_11] : memref<48x32xf32, #tpu.memory_space<vmem>>, vector<16x32xf32>
    tpu.vector_store %arg22[%c1, %c0_11], %13 {strides = array<i32>} : memref<48x32xf32, #tpu.memory_space<vmem>>, vector<16x32xf32>,
    %15 = vector.extract_strided_slice %7 {offsets = [17, 0], sizes = [7, 32], strides = [1, 1]} : vector<24x32xf32> to vector<7x32xf32>
    %c17 = arith.constant 17 : index
    %c0_12 = arith.constant 0 : index
    %16 = vector.load %arg22[%c17, %c0_12] : memref<48x32xf32, #tpu.memory_space<vmem>>, vector<7x32xf32>
    tpu.vector_store %arg22[%c17, %c0_12], %15 {strides = array<i32>} : memref<48x32xf32, #tpu.memory_space<vmem>>, vector<7x32xf32>,
    %17 = vector.extract_strided_slice %7 {offsets = [0, 0], sizes = [1, 32], strides = [1, 1]} : vector<24x32xf32> to vector<1x32xf32>
    %18 = arith.addf %6, %17 : vector<1x32xf32>
    %c24 = arith.constant 24 : index
    %c0_13 = arith.constant 0 : index
    %19 = vector.load %arg22[%c24, %c0_13] : memref<48x32xf32, #tpu.memory_space<vmem>>, vector<1x32xf32>
    tpu.vector_store %arg22[%c24, %c0_13], %18 {strides = array<i32>} : memref<48x32xf32, #tpu.memory_space<vmem>>, vector<1x32xf32>,
    %20 = vector.extract_strided_slice %5 {offsets = [16, 0], sizes = [16, 32], strides = [1, 1]} : vector<32x32xf32> to vector<16x32xf32>
    %21 = vector.extract_strided_slice %7 {offsets = [1, 0], sizes = [16, 32], strides = [1, 1]} : vector<24x32xf32> to vector<16x32xf32>
    %22 = arith.addf %20, %21 : vector<16x32xf32>
    %c25 = arith.constant 25 : index
    %c0_14 = arith.constant 0 : index
    %23 = vector.load %arg22[%c25, %c0_14] : memref<48x32xf32, #tpu.memory_space<vmem>>, vector<16x32xf32>
    tpu.vector_store %arg22[%c25, %c0_14], %22 {strides = array<i32>} : memref<48x32xf32, #tpu.memory_space<vmem>>, vector<16x32xf32>,
    %24 = vector.extract_strided_slice %7 {offsets = [17, 0], sizes = [7, 32], strides = [1, 1]} : vector<24x32xf32> to vector<7x32xf32>
    %c41 = arith.constant 41 : index
    %c0_15 = arith.constant 0 : index
    %25 = vector.load %arg22[%c41, %c0_15] : memref<48x32xf32, #tpu.memory_space<vmem>>, vector<7x32xf32>
    tpu.vector_store %arg22[%c41, %c0_15], %24 {strides = array<i32>} : memref<48x32xf32, #tpu.memory_space<vmem>>, vector<7x32xf32>,
    %c0_16 = arith.constant 0 : index
    %c0_17 = arith.constant 0 : index
    %26 = vector.load %arg22[%c0_16, %c0_17] : memref<48x32xf32, #tpu.memory_space<vmem>>, vector<48x32xf32>
    %27 = tpu.iota {dimensions = array<i32: 1>} : vector<24x24xi32>
    %c17_i32 = arith.constant 17 : i32
    %28 = vector.broadcast %c17_i32 : i32 to vector<24x24xi32>
    %29 = arith.cmpi slt, %27, %28 : vector<24x24xi32>
    %cst_18 = arith.constant 0.000000e+00 : f32
    %cst_19 = arith.constant -1.000000e+30 : f32
    %30 = vector.broadcast %cst_18 : f32 to vector<24x24xf32>
    %31 = vector.broadcast %cst_19 : f32 to vector<24x24xf32>
    %32 = arith.select %29, %30, %31 : vector<24x24xi1>, vector<24x24xf32>
    %c0_20 = arith.constant 0 : index
    %c0_21 = arith.constant 0 : index
    %c0_22 = arith.constant 0 : index
    %33 = vector.load %arg6[%c0_20, %c0_21, %c0_22] : memref<2x1x32xf32, #tpu.memory_space<vmem>>, vector<1x1x32xf32>
    %34 = vector.shape_cast %33 : vector<1x1x32xf32> to vector<1x32xf32>
    %c0_23 = arith.constant 0 : index
    %c0_24 = arith.constant 0 : index
    %c0_25 = arith.constant 0 : index
    %35 = vector.load %arg7[%c0_23, %c0_24, %c0_25] : memref<2x1x32xf32, #tpu.memory_space<vmem>>, vector<1x1x32xf32>
    %36 = vector.shape_cast %35 : vector<1x1x32xf32> to vector<1x32xf32>
    %cst_26 = arith.constant dense<0.000000e+00> : vector<48xf32>
    %37 = vector.multi_reduction <add>, %26, %cst_26 [1] : vector<48x32xf32> to vector<48xf32>
    %38 = vector.shape_cast %37 : vector<48xf32> to vector<48x1xf32>
    %cst_27 = arith.constant 3.200000e+01 : f32
    %39 = vector.broadcast %cst_27 : f32 to vector<48x1xf32>
    %40 = arith.divf %38, %39 : vector<48x1xf32>
    %41 = vector.broadcast %40 : vector<48x1xf32> to vector<48x32xf32>
    %42 = arith.subf %26, %41 : vector<48x32xf32>
    %43 = arith.mulf %42, %42 : vector<48x32xf32>
    %cst_28 = arith.constant dense<0.000000e+00> : vector<48xf32>
    %44 = vector.multi_reduction <add>, %43, %cst_28 [1] : vector<48x32xf32> to vector<48xf32>
    %45 = vector.shape_cast %44 : vector<48xf32> to vector<48x1xf32>
    %cst_29 = arith.constant 3.200000e+01 : f32
    %46 = vector.broadcast %cst_29 : f32 to vector<48x1xf32>
    %47 = arith.divf %45, %46 : vector<48x1xf32>
    %48 = vector.broadcast %40 : vector<48x1xf32> to vector<48x32xf32>
    %49 = arith.subf %26, %48 : vector<48x32xf32>
    %cst_30 = arith.constant 9.99999974E-6 : f32
    %50 = vector.broadcast %cst_30 : f32 to vector<48x1xf32>
    %51 = arith.addf %47, %50 : vector<48x1xf32>
    %52 = math.rsqrt %51 : vector<48x1xf32>
    %53 = vector.broadcast %52 : vector<48x1xf32> to vector<48x32xf32>
    %54 = arith.mulf %49, %53 : vector<48x32xf32>
    %55 = vector.broadcast %34 : vector<1x32xf32> to vector<48x32xf32>
    %56 = arith.mulf %54, %55 : vector<48x32xf32>
    %57 = vector.broadcast %36 : vector<1x32xf32> to vector<48x32xf32>
    %58 = arith.addf %56, %57 : vector<48x32xf32>
    %c0_31 = arith.constant 0 : index
    %c0_32 = arith.constant 0 : index
    %c0_33 = arith.constant 0 : index
    %59 = vector.load %arg8[%c0_31, %c0_32, %c0_33] : memref<2x32x96xf32, #tpu.memory_space<vmem>>, vector<1x32x96xf32>
    %60 = vector.shape_cast %59 : vector<1x32x96xf32> to vector<32x96xf32>
    %cst_34 = arith.constant dense<0.000000e+00> : vector<48x96xf32>
    %61 = tpu.matmul %58, %60, %cst_34 {dimension_numbers = #tpu.dot_dimension_numbers<[1], [0], [0], [1], [0, 0, 1, 1], [], []>} : vector<48x32xf32>, vector<32x96xf32>, vector<48x96xf32> -> vector<48x96xf32>
    %62 = vector.extract_strided_slice %61 {offsets = [0, 0], sizes = [24, 8], strides = [1, 1]} : vector<48x96xf32> to vector<24x8xf32>
    %63 = vector.extract_strided_slice %61 {offsets = [0, 32], sizes = [24, 8], strides = [1, 1]} : vector<48x96xf32> to vector<24x8xf32>
    %64 = vector.extract_strided_slice %61 {offsets = [0, 64], sizes = [24, 8], strides = [1, 1]} : vector<48x96xf32> to vector<24x8xf32>
    %65 = tpu.transpose %63, [1, 0] : vector<24x8xf32> -> vector<8x24xf32>
    %cst_35 = arith.constant dense<0.000000e+00> : vector<24x24xf32>
    %66 = tpu.matmul %62, %65, %cst_35 {dimension_numbers = #tpu.dot_dimension_numbers<[1], [0], [0], [1], [0, 0, 1, 1], [], []>} : vector<24x8xf32>, vector<8x24xf32>, vector<24x24xf32> -> vector<24x24xf32>
    %cst_36 = arith.constant 0.353553385 : f32
    %67 = vector.broadcast %cst_36 : f32 to vector<24x24xf32>
    %68 = arith.mulf %66, %67 : vector<24x24xf32>
    %69 = arith.addf %68, %32 : vector<24x24xf32>
    %cst_37 = arith.constant dense<0xFF800000> : vector<24xf32>
    %70 = vector.multi_reduction <maximumf>, %69, %cst_37 [1] : vector<24x24xf32> to vector<24xf32>
    %71 = vector.shape_cast %70 : vector<24xf32> to vector<24x1xf32>
    %72 = vector.broadcast %71 : vector<24x1xf32> to vector<24x24xf32>
    %73 = arith.subf %69, %72 : vector<24x24xf32>
    %74 = math.exp %73 : vector<24x24xf32>
    %cst_38 = arith.constant dense<0.000000e+00> : vector<24xf32>
    %75 = vector.multi_reduction <add>, %74, %cst_38 [1] : vector<24x24xf32> to vector<24xf32>
    %76 = vector.shape_cast %75 : vector<24xf32> to vector<24x1xf32>
    %77 = tpu.reciprocal %76 {approx = true} : vector<24x1xf32> -> vector<24x1xf32>
    %78 = vector.broadcast %77 : vector<24x1xf32> to vector<24x24xf32>
    %79 = arith.mulf %74, %78 : vector<24x24xf32>
    %cst_39 = arith.constant dense<0.000000e+00> : vector<24x8xf32>
    %80 = tpu.matmul %79, %64, %cst_39 {dimension_numbers = #tpu.dot_dimension_numbers<[1], [0], [0], [1], [0, 0, 1, 1], [], []>} : vector<24x24xf32>, vector<24x8xf32>, vector<24x8xf32> -> vector<24x8xf32>
    %c0_40 = arith.constant 0 : index
    %c0_41 = arith.constant 0 : index
    %81 = vector.load %arg23[%c0_40, %c0_41] : memref<48x32xf32, #tpu.memory_space<vmem>>, vector<24x8xf32>
    tpu.vector_store %arg23[%c0_40, %c0_41], %80 {strides = array<i32>} : memref<48x32xf32, #tpu.memory_space<vmem>>, vector<24x8xf32>,
    %82 = vector.extract_strided_slice %61 {offsets = [0, 8], sizes = [24, 8], strides = [1, 1]} : vector<48x96xf32> to vector<24x8xf32>
    %83 = vector.extract_strided_slice %61 {offsets = [0, 40], sizes = [24, 8], strides = [1, 1]} : vector<48x96xf32> to vector<24x8xf32>
    %84 = vector.extract_strided_slice %61 {offsets = [0, 72], sizes = [24, 8], strides = [1, 1]} : vector<48x96xf32> to vector<24x8xf32>
    %85 = tpu.transpose %83, [1, 0] : vector<24x8xf32> -> vector<8x24xf32>
    %cst_42 = arith.constant dense<0.000000e+00> : vector<24x24xf32>
    %86 = tpu.matmul %82, %85, %cst_42 {dimension_numbers = #tpu.dot_dimension_numbers<[1], [0], [0], [1], [0, 0, 1, 1], [], []>} : vector<24x8xf32>, vector<8x24xf32>, vector<24x24xf32> -> vector<24x24xf32>
    %cst_43 = arith.constant 0.353553385 : f32
    %87 = vector.broadcast %cst_43 : f32 to vector<24x24xf32>
    %88 = arith.mulf %86, %87 : vector<24x24xf32>
    %89 = arith.addf %88, %32 : vector<24x24xf32>
    %cst_44 = arith.constant dense<0xFF800000> : vector<24xf32>
    %90 = vector.multi_reduction <maximumf>, %89, %cst_44 [1] : vector<24x24xf32> to vector<24xf32>
    %91 = vector.shape_cast %90 : vector<24xf32> to vector<24x1xf32>
    %92 = vector.broadcast %91 : vector<24x1xf32> to vector<24x24xf32>
    %93 = arith.subf %89, %92 : vector<24x24xf32>
    %94 = math.exp %93 : vector<24x24xf32>
    %cst_45 = arith.constant dense<0.000000e+00> : vector<24xf32>
    %95 = vector.multi_reduction <add>, %94, %cst_45 [1] : vector<24x24xf32> to vector<24xf32>
    %96 = vector.shape_cast %95 : vector<24xf32> to vector<24x1xf32>
    %97 = tpu.reciprocal %96 {approx = true} : vector<24x1xf32> -> vector<24x1xf32>
    %98 = vector.broadcast %97 : vector<24x1xf32> to vector<24x24xf32>
    %99 = arith.mulf %94, %98 : vector<24x24xf32>
    %cst_46 = arith.constant dense<0.000000e+00> : vector<24x8xf32>
    %100 = tpu.matmul %99, %84, %cst_46 {dimension_numbers = #tpu.dot_dimension_numbers<[1], [0], [0], [1], [0, 0, 1, 1], [], []>} : vector<24x24xf32>, vector<24x8xf32>, vector<24x8xf32> -> vector<24x8xf32>
    %c0_47 = arith.constant 0 : index
    %c8 = arith.constant 8 : index
    %101 = vector.load %arg23[%c0_47, %c8] : memref<48x32xf32, #tpu.memory_space<vmem>>, vector<24x8xf32>
    tpu.vector_store %arg23[%c0_47, %c8], %100 {strides = array<i32>} : memref<48x32xf32, #tpu.memory_space<vmem>>, vector<24x8xf32>,
    %102 = vector.extract_strided_slice %61 {offsets = [0, 16], sizes = [24, 8], strides = [1, 1]} : vector<48x96xf32> to vector<24x8xf32>
    %103 = vector.extract_strided_slice %61 {offsets = [0, 48], sizes = [24, 8], strides = [1, 1]} : vector<48x96xf32> to vector<24x8xf32>
    %104 = vector.extract_strided_slice %61 {offsets = [0, 80], sizes = [24, 8], strides = [1, 1]} : vector<48x96xf32> to vector<24x8xf32>
    %105 = tpu.transpose %103, [1, 0] : vector<24x8xf32> -> vector<8x24xf32>
    %cst_48 = arith.constant dense<0.000000e+00> : vector<24x24xf32>
    %106 = tpu.matmul %102, %105, %cst_48 {dimension_numbers = #tpu.dot_dimension_numbers<[1], [0], [0], [1], [0, 0, 1, 1], [], []>} : vector<24x8xf32>, vector<8x24xf32>, vector<24x24xf32> -> vector<24x24xf32>
    %cst_49 = arith.constant 0.353553385 : f32
    %107 = vector.broadcast %cst_49 : f32 to vector<24x24xf32>
    %108 = arith.mulf %106, %107 : vector<24x24xf32>
    %109 = arith.addf %108, %32 : vector<24x24xf32>
    %cst_50 = arith.constant dense<0xFF800000> : vector<24xf32>
    %110 = vector.multi_reduction <maximumf>, %109, %cst_50 [1] : vector<24x24xf32> to vector<24xf32>
    %111 = vector.shape_cast %110 : vector<24xf32> to vector<24x1xf32>
    %112 = vector.broadcast %111 : vector<24x1xf32> to vector<24x24xf32>
    %113 = arith.subf %109, %112 : vector<24x24xf32>
    %114 = math.exp %113 : vector<24x24xf32>
    %cst_51 = arith.constant dense<0.000000e+00> : vector<24xf32>
    %115 = vector.multi_reduction <add>, %114, %cst_51 [1] : vector<24x24xf32> to vector<24xf32>
    %116 = vector.shape_cast %115 : vector<24xf32> to vector<24x1xf32>
    %117 = tpu.reciprocal %116 {approx = true} : vector<24x1xf32> -> vector<24x1xf32>
    %118 = vector.broadcast %117 : vector<24x1xf32> to vector<24x24xf32>
    %119 = arith.mulf %114, %118 : vector<24x24xf32>
    %cst_52 = arith.constant dense<0.000000e+00> : vector<24x8xf32>
    %120 = tpu.matmul %119, %104, %cst_52 {dimension_numbers = #tpu.dot_dimension_numbers<[1], [0], [0], [1], [0, 0, 1, 1], [], []>} : vector<24x24xf32>, vector<24x8xf32>, vector<24x8xf32> -> vector<24x8xf32>
    %c0_53 = arith.constant 0 : index
    %c16 = arith.constant 16 : index
    %121 = vector.load %arg23[%c0_53, %c16] : memref<48x32xf32, #tpu.memory_space<vmem>>, vector<24x8xf32>
    tpu.vector_store %arg23[%c0_53, %c16], %120 {strides = array<i32>} : memref<48x32xf32, #tpu.memory_space<vmem>>, vector<24x8xf32>,
    %122 = vector.extract_strided_slice %61 {offsets = [0, 24], sizes = [24, 8], strides = [1, 1]} : vector<48x96xf32> to vector<24x8xf32>
    %123 = vector.extract_strided_slice %61 {offsets = [0, 56], sizes = [24, 8], strides = [1, 1]} : vector<48x96xf32> to vector<24x8xf32>
    %124 = vector.extract_strided_slice %61 {offsets = [0, 88], sizes = [24, 8], strides = [1, 1]} : vector<48x96xf32> to vector<24x8xf32>
    %125 = tpu.transpose %123, [1, 0] : vector<24x8xf32> -> vector<8x24xf32>
    %cst_54 = arith.constant dense<0.000000e+00> : vector<24x24xf32>
    %126 = tpu.matmul %122, %125, %cst_54 {dimension_numbers = #tpu.dot_dimension_numbers<[1], [0], [0], [1], [0, 0, 1, 1], [], []>} : vector<24x8xf32>, vector<8x24xf32>, vector<24x24xf32> -> vector<24x24xf32>
    %cst_55 = arith.constant 0.353553385 : f32
    %127 = vector.broadcast %cst_55 : f32 to vector<24x24xf32>
    %128 = arith.mulf %126, %127 : vector<24x24xf32>
    %129 = arith.addf %128, %32 : vector<24x24xf32>
    %cst_56 = arith.constant dense<0xFF800000> : vector<24xf32>
    %130 = vector.multi_reduction <maximumf>, %129, %cst_56 [1] : vector<24x24xf32> to vector<24xf32>
    %131 = vector.shape_cast %130 : vector<24xf32> to vector<24x1xf32>
    %132 = vector.broadcast %131 : vector<24x1xf32> to vector<24x24xf32>
    %133 = arith.subf %129, %132 : vector<24x24xf32>
    %134 = math.exp %133 : vector<24x24xf32>
    %cst_57 = arith.constant dense<0.000000e+00> : vector<24xf32>
    %135 = vector.multi_reduction <add>, %134, %cst_57 [1] : vector<24x24xf32> to vector<24xf32>
    %136 = vector.shape_cast %135 : vector<24xf32> to vector<24x1xf32>
    %137 = tpu.reciprocal %136 {approx = true} : vector<24x1xf32> -> vector<24x1xf32>
    %138 = vector.broadcast %137 : vector<24x1xf32> to vector<24x24xf32>
    %139 = arith.mulf %134, %138 : vector<24x24xf32>
    %cst_58 = arith.constant dense<0.000000e+00> : vector<24x8xf32>
    %140 = tpu.matmul %139, %124, %cst_58 {dimension_numbers = #tpu.dot_dimension_numbers<[1], [0], [0], [1], [0, 0, 1, 1], [], []>} : vector<24x24xf32>, vector<24x8xf32>, vector<24x8xf32> -> vector<24x8xf32>
    %c0_59 = arith.constant 0 : index
    %c24_60 = arith.constant 24 : index
    %141 = vector.load %arg23[%c0_59, %c24_60] : memref<48x32xf32, #tpu.memory_space<vmem>>, vector<24x8xf32>
    tpu.vector_store %arg23[%c0_59, %c24_60], %140 {strides = array<i32>} : memref<48x32xf32, #tpu.memory_space<vmem>>, vector<24x8xf32>,
    %142 = vector.extract_strided_slice %61 {offsets = [24, 0], sizes = [24, 8], strides = [1, 1]} : vector<48x96xf32> to vector<24x8xf32>
    %143 = vector.extract_strided_slice %61 {offsets = [24, 32], sizes = [24, 8], strides = [1, 1]} : vector<48x96xf32> to vector<24x8xf32>
    %144 = vector.extract_strided_slice %61 {offsets = [24, 64], sizes = [24, 8], strides = [1, 1]} : vector<48x96xf32> to vector<24x8xf32>
    %145 = tpu.transpose %143, [1, 0] : vector<24x8xf32> -> vector<8x24xf32>
    %cst_61 = arith.constant dense<0.000000e+00> : vector<24x24xf32>
    %146 = tpu.matmul %142, %145, %cst_61 {dimension_numbers = #tpu.dot_dimension_numbers<[1], [0], [0], [1], [0, 0, 1, 1], [], []>} : vector<24x8xf32>, vector<8x24xf32>, vector<24x24xf32> -> vector<24x24xf32>
    %cst_62 = arith.constant 0.353553385 : f32
    %147 = vector.broadcast %cst_62 : f32 to vector<24x24xf32>
    %148 = arith.mulf %146, %147 : vector<24x24xf32>
    %149 = arith.addf %148, %32 : vector<24x24xf32>
    %cst_63 = arith.constant dense<0xFF800000> : vector<24xf32>
    %150 = vector.multi_reduction <maximumf>, %149, %cst_63 [1] : vector<24x24xf32> to vector<24xf32>
    %151 = vector.shape_cast %150 : vector<24xf32> to vector<24x1xf32>
    %152 = vector.broadcast %151 : vector<24x1xf32> to vector<24x24xf32>
    %153 = arith.subf %149, %152 : vector<24x24xf32>
    %154 = math.exp %153 : vector<24x24xf32>
    %cst_64 = arith.constant dense<0.000000e+00> : vector<24xf32>
    %155 = vector.multi_reduction <add>, %154, %cst_64 [1] : vector<24x24xf32> to vector<24xf32>
    %156 = vector.shape_cast %155 : vector<24xf32> to vector<24x1xf32>
    %157 = tpu.reciprocal %156 {approx = true} : vector<24x1xf32> -> vector<24x1xf32>
    %158 = vector.broadcast %157 : vector<24x1xf32> to vector<24x24xf32>
    %159 = arith.mulf %154, %158 : vector<24x24xf32>
    %cst_65 = arith.constant dense<0.000000e+00> : vector<24x8xf32>
    %160 = tpu.matmul %159, %144, %cst_65 {dimension_numbers = #tpu.dot_dimension_numbers<[1], [0], [0], [1], [0, 0, 1, 1], [], []>} : vector<24x24xf32>, vector<24x8xf32>, vector<24x8xf32> -> vector<24x8xf32>
    %c24_66 = arith.constant 24 : index
    %c0_67 = arith.constant 0 : index
    %161 = vector.load %arg23[%c24_66, %c0_67] : memref<48x32xf32, #tpu.memory_space<vmem>>, vector<24x8xf32>
    tpu.vector_store %arg23[%c24_66, %c0_67], %160 {strides = array<i32>} : memref<48x32xf32, #tpu.memory_space<vmem>>, vector<24x8xf32>,
    %162 = vector.extract_strided_slice %61 {offsets = [24, 8], sizes = [24, 8], strides = [1, 1]} : vector<48x96xf32> to vector<24x8xf32>
    %163 = vector.extract_strided_slice %61 {offsets = [24, 40], sizes = [24, 8], strides = [1, 1]} : vector<48x96xf32> to vector<24x8xf32>
    %164 = vector.extract_strided_slice %61 {offsets = [24, 72], sizes = [24, 8], strides = [1, 1]} : vector<48x96xf32> to vector<24x8xf32>
    %165 = tpu.transpose %163, [1, 0] : vector<24x8xf32> -> vector<8x24xf32>
    %cst_68 = arith.constant dense<0.000000e+00> : vector<24x24xf32>
    %166 = tpu.matmul %162, %165, %cst_68 {dimension_numbers = #tpu.dot_dimension_numbers<[1], [0], [0], [1], [0, 0, 1, 1], [], []>} : vector<24x8xf32>, vector<8x24xf32>, vector<24x24xf32> -> vector<24x24xf32>
    %cst_69 = arith.constant 0.353553385 : f32
    %167 = vector.broadcast %cst_69 : f32 to vector<24x24xf32>
    %168 = arith.mulf %166, %167 : vector<24x24xf32>
    %169 = arith.addf %168, %32 : vector<24x24xf32>
    %cst_70 = arith.constant dense<0xFF800000> : vector<24xf32>
    %170 = vector.multi_reduction <maximumf>, %169, %cst_70 [1] : vector<24x24xf32> to vector<24xf32>
    %171 = vector.shape_cast %170 : vector<24xf32> to vector<24x1xf32>
    %172 = vector.broadcast %171 : vector<24x1xf32> to vector<24x24xf32>
    %173 = arith.subf %169, %172 : vector<24x24xf32>
    %174 = math.exp %173 : vector<24x24xf32>
    %cst_71 = arith.constant dense<0.000000e+00> : vector<24xf32>
    %175 = vector.multi_reduction <add>, %174, %cst_71 [1] : vector<24x24xf32> to vector<24xf32>
    %176 = vector.shape_cast %175 : vector<24xf32> to vector<24x1xf32>
    %177 = tpu.reciprocal %176 {approx = true} : vector<24x1xf32> -> vector<24x1xf32>
    %178 = vector.broadcast %177 : vector<24x1xf32> to vector<24x24xf32>
    %179 = arith.mulf %174, %178 : vector<24x24xf32>
    %cst_72 = arith.constant dense<0.000000e+00> : vector<24x8xf32>
    %180 = tpu.matmul %179, %164, %cst_72 {dimension_numbers = #tpu.dot_dimension_numbers<[1], [0], [0], [1], [0, 0, 1, 1], [], []>} : vector<24x24xf32>, vector<24x8xf32>, vector<24x8xf32> -> vector<24x8xf32>
    %c24_73 = arith.constant 24 : index
    %c8_74 = arith.constant 8 : index
    %181 = vector.load %arg23[%c24_73, %c8_74] : memref<48x32xf32, #tpu.memory_space<vmem>>, vector<24x8xf32>
    tpu.vector_store %arg23[%c24_73, %c8_74], %180 {strides = array<i32>} : memref<48x32xf32, #tpu.memory_space<vmem>>, vector<24x8xf32>,
    %182 = vector.extract_strided_slice %61 {offsets = [24, 16], sizes = [24, 8], strides = [1, 1]} : vector<48x96xf32> to vector<24x8xf32>
    %183 = vector.extract_strided_slice %61 {offsets = [24, 48], sizes = [24, 8], strides = [1, 1]} : vector<48x96xf32> to vector<24x8xf32>
    %184 = vector.extract_strided_slice %61 {offsets = [24, 80], sizes = [24, 8], strides = [1, 1]} : vector<48x96xf32> to vector<24x8xf32>
    %185 = tpu.transpose %183, [1, 0] : vector<24x8xf32> -> vector<8x24xf32>
    %cst_75 = arith.constant dense<0.000000e+00> : vector<24x24xf32>
    %186 = tpu.matmul %182, %185, %cst_75 {dimension_numbers = #tpu.dot_dimension_numbers<[1], [0], [0], [1], [0, 0, 1, 1], [], []>} : vector<24x8xf32>, vector<8x24xf32>, vector<24x24xf32> -> vector<24x24xf32>
    %cst_76 = arith.constant 0.353553385 : f32
    %187 = vector.broadcast %cst_76 : f32 to vector<24x24xf32>
    %188 = arith.mulf %186, %187 : vector<24x24xf32>
    %189 = arith.addf %188, %32 : vector<24x24xf32>
    %cst_77 = arith.constant dense<0xFF800000> : vector<24xf32>
    %190 = vector.multi_reduction <maximumf>, %189, %cst_77 [1] : vector<24x24xf32> to vector<24xf32>
    %191 = vector.shape_cast %190 : vector<24xf32> to vector<24x1xf32>
    %192 = vector.broadcast %191 : vector<24x1xf32> to vector<24x24xf32>
    %193 = arith.subf %189, %192 : vector<24x24xf32>
    %194 = math.exp %193 : vector<24x24xf32>
    %cst_78 = arith.constant dense<0.000000e+00> : vector<24xf32>
    %195 = vector.multi_reduction <add>, %194, %cst_78 [1] : vector<24x24xf32> to vector<24xf32>
    %196 = vector.shape_cast %195 : vector<24xf32> to vector<24x1xf32>
    %197 = tpu.reciprocal %196 {approx = true} : vector<24x1xf32> -> vector<24x1xf32>
    %198 = vector.broadcast %197 : vector<24x1xf32> to vector<24x24xf32>
    %199 = arith.mulf %194, %198 : vector<24x24xf32>
    %cst_79 = arith.constant dense<0.000000e+00> : vector<24x8xf32>
    %200 = tpu.matmul %199, %184, %cst_79 {dimension_numbers = #tpu.dot_dimension_numbers<[1], [0], [0], [1], [0, 0, 1, 1], [], []>} : vector<24x24xf32>, vector<24x8xf32>, vector<24x8xf32> -> vector<24x8xf32>
    %c24_80 = arith.constant 24 : index
    %c16_81 = arith.constant 16 : index
    %201 = vector.load %arg23[%c24_80, %c16_81] : memref<48x32xf32, #tpu.memory_space<vmem>>, vector<24x8xf32>
    tpu.vector_store %arg23[%c24_80, %c16_81], %200 {strides = array<i32>} : memref<48x32xf32, #tpu.memory_space<vmem>>, vector<24x8xf32>,
    %202 = vector.extract_strided_slice %61 {offsets = [24, 24], sizes = [24, 8], strides = [1, 1]} : vector<48x96xf32> to vector<24x8xf32>
    %203 = vector.extract_strided_slice %61 {offsets = [24, 56], sizes = [24, 8], strides = [1, 1]} : vector<48x96xf32> to vector<24x8xf32>
    %204 = vector.extract_strided_slice %61 {offsets = [24, 88], sizes = [24, 8], strides = [1, 1]} : vector<48x96xf32> to vector<24x8xf32>
    %205 = tpu.transpose %203, [1, 0] : vector<24x8xf32> -> vector<8x24xf32>
    %cst_82 = arith.constant dense<0.000000e+00> : vector<24x24xf32>
    %206 = tpu.matmul %202, %205, %cst_82 {dimension_numbers = #tpu.dot_dimension_numbers<[1], [0], [0], [1], [0, 0, 1, 1], [], []>} : vector<24x8xf32>, vector<8x24xf32>, vector<24x24xf32> -> vector<24x24xf32>
    %cst_83 = arith.constant 0.353553385 : f32
    %207 = vector.broadcast %cst_83 : f32 to vector<24x24xf32>
    %208 = arith.mulf %206, %207 : vector<24x24xf32>
    %209 = arith.addf %208, %32 : vector<24x24xf32>
    %cst_84 = arith.constant dense<0xFF800000> : vector<24xf32>
    %210 = vector.multi_reduction <maximumf>, %209, %cst_84 [1] : vector<24x24xf32> to vector<24xf32>
    %211 = vector.shape_cast %210 : vector<24xf32> to vector<24x1xf32>
    %212 = vector.broadcast %211 : vector<24x1xf32> to vector<24x24xf32>
    %213 = arith.subf %209, %212 : vector<24x24xf32>
    %214 = math.exp %213 : vector<24x24xf32>
    %cst_85 = arith.constant dense<0.000000e+00> : vector<24xf32>
    %215 = vector.multi_reduction <add>, %214, %cst_85 [1] : vector<24x24xf32> to vector<24xf32>
    %216 = vector.shape_cast %215 : vector<24xf32> to vector<24x1xf32>
    %217 = tpu.reciprocal %216 {approx = true} : vector<24x1xf32> -> vector<24x1xf32>
    %218 = vector.broadcast %217 : vector<24x1xf32> to vector<24x24xf32>
    %219 = arith.mulf %214, %218 : vector<24x24xf32>
    %cst_86 = arith.constant dense<0.000000e+00> : vector<24x8xf32>
    %220 = tpu.matmul %219, %204, %cst_86 {dimension_numbers = #tpu.dot_dimension_numbers<[1], [0], [0], [1], [0, 0, 1, 1], [], []>} : vector<24x24xf32>, vector<24x8xf32>, vector<24x8xf32> -> vector<24x8xf32>
    %c24_87 = arith.constant 24 : index
    %c24_88 = arith.constant 24 : index
    %221 = vector.load %arg23[%c24_87, %c24_88] : memref<48x32xf32, #tpu.memory_space<vmem>>, vector<24x8xf32>
    tpu.vector_store %arg23[%c24_87, %c24_88], %220 {strides = array<i32>} : memref<48x32xf32, #tpu.memory_space<vmem>>, vector<24x8xf32>,
    %c0_89 = arith.constant 0 : index
    %c0_90 = arith.constant 0 : index
    %222 = vector.load %arg23[%c0_89, %c0_90] : memref<48x32xf32, #tpu.memory_space<vmem>>, vector<48x32xf32>
    %c0_91 = arith.constant 0 : index
    %c0_92 = arith.constant 0 : index
    %c0_93 = arith.constant 0 : index
    %223 = vector.load %arg9[%c0_91, %c0_92, %c0_93] : memref<2x32x32xf32, #tpu.memory_space<vmem>>, vector<1x32x32xf32>
    %224 = vector.shape_cast %223 : vector<1x32x32xf32> to vector<32x32xf32>
    %cst_94 = arith.constant dense<0.000000e+00> : vector<48x32xf32>
    %225 = tpu.matmul %222, %224, %cst_94 {dimension_numbers = #tpu.dot_dimension_numbers<[1], [0], [0], [1], [0, 0, 1, 1], [], []>} : vector<48x32xf32>, vector<32x32xf32>, vector<48x32xf32> -> vector<48x32xf32>
    %c0_95 = arith.constant 0 : index
    %c0_96 = arith.constant 0 : index
    %c0_97 = arith.constant 0 : index
    %226 = vector.load %arg10[%c0_95, %c0_96, %c0_97] : memref<2x1x32xf32, #tpu.memory_space<vmem>>, vector<1x1x32xf32>
    %227 = vector.shape_cast %226 : vector<1x1x32xf32> to vector<1x32xf32>
    %228 = vector.broadcast %227 : vector<1x32xf32> to vector<48x32xf32>
    %229 = arith.addf %225, %228 : vector<48x32xf32>
    %230 = arith.addf %26, %229 : vector<48x32xf32>
    %c0_98 = arith.constant 0 : index
    %c0_99 = arith.constant 0 : index
    %c0_100 = arith.constant 0 : index
    %231 = vector.load %arg11[%c0_98, %c0_99, %c0_100] : memref<2x1x32xf32, #tpu.memory_space<vmem>>, vector<1x1x32xf32>
    %232 = vector.shape_cast %231 : vector<1x1x32xf32> to vector<1x32xf32>
    %c0_101 = arith.constant 0 : index
    %c0_102 = arith.constant 0 : index
    %c0_103 = arith.constant 0 : index
    %233 = vector.load %arg12[%c0_101, %c0_102, %c0_103] : memref<2x1x32xf32, #tpu.memory_space<vmem>>, vector<1x1x32xf32>
    %234 = vector.shape_cast %233 : vector<1x1x32xf32> to vector<1x32xf32>
    %cst_104 = arith.constant dense<0.000000e+00> : vector<48xf32>
    %235 = vector.multi_reduction <add>, %230, %cst_104 [1] : vector<48x32xf32> to vector<48xf32>
    %236 = vector.shape_cast %235 : vector<48xf32> to vector<48x1xf32>
    %cst_105 = arith.constant 3.200000e+01 : f32
    %237 = vector.broadcast %cst_105 : f32 to vector<48x1xf32>
    %238 = arith.divf %236, %237 : vector<48x1xf32>
    %239 = vector.broadcast %238 : vector<48x1xf32> to vector<48x32xf32>
    %240 = arith.subf %230, %239 : vector<48x32xf32>
    %241 = arith.mulf %240, %240 : vector<48x32xf32>
    %cst_106 = arith.constant dense<0.000000e+00> : vector<48xf32>
    %242 = vector.multi_reduction <add>, %241, %cst_106 [1] : vector<48x32xf32> to vector<48xf32>
    %243 = vector.shape_cast %242 : vector<48xf32> to vector<48x1xf32>
    %cst_107 = arith.constant 3.200000e+01 : f32
    %244 = vector.broadcast %cst_107 : f32 to vector<48x1xf32>
    %245 = arith.divf %243, %244 : vector<48x1xf32>
    %246 = vector.broadcast %238 : vector<48x1xf32> to vector<48x32xf32>
    %247 = arith.subf %230, %246 : vector<48x32xf32>
    %cst_108 = arith.constant 9.99999974E-6 : f32
    %248 = vector.broadcast %cst_108 : f32 to vector<48x1xf32>
    %249 = arith.addf %245, %248 : vector<48x1xf32>
    %250 = math.rsqrt %249 : vector<48x1xf32>
    %251 = vector.broadcast %250 : vector<48x1xf32> to vector<48x32xf32>
    %252 = arith.mulf %247, %251 : vector<48x32xf32>
    %253 = vector.broadcast %232 : vector<1x32xf32> to vector<48x32xf32>
    %254 = arith.mulf %252, %253 : vector<48x32xf32>
    %255 = vector.broadcast %234 : vector<1x32xf32> to vector<48x32xf32>
    %256 = arith.addf %254, %255 : vector<48x32xf32>
    %c0_109 = arith.constant 0 : index
    %c0_110 = arith.constant 0 : index
    %c0_111 = arith.constant 0 : index
    %257 = vector.load %arg13[%c0_109, %c0_110, %c0_111] : memref<2x32x128xf32, #tpu.memory_space<vmem>>, vector<1x32x128xf32>
    %258 = vector.shape_cast %257 : vector<1x32x128xf32> to vector<32x128xf32>
    %cst_112 = arith.constant dense<0.000000e+00> : vector<48x128xf32>
    %259 = tpu.matmul %256, %258, %cst_112 {dimension_numbers = #tpu.dot_dimension_numbers<[1], [0], [0], [1], [0, 0, 1, 1], [], []>} : vector<48x32xf32>, vector<32x128xf32>, vector<48x128xf32> -> vector<48x128xf32>
    %c0_113 = arith.constant 0 : index
    %c0_114 = arith.constant 0 : index
    %c0_115 = arith.constant 0 : index
    %260 = vector.load %arg14[%c0_113, %c0_114, %c0_115] : memref<2x1x128xf32, #tpu.memory_space<vmem>>, vector<1x1x128xf32>
    %261 = vector.shape_cast %260 : vector<1x1x128xf32> to vector<1x128xf32>
    %262 = vector.broadcast %261 : vector<1x128xf32> to vector<48x128xf32>
    %263 = arith.addf %259, %262 : vector<48x128xf32>
    %cst_116 = arith.constant 5.000000e-01 : f32
    %264 = vector.broadcast %cst_116 : f32 to vector<48x128xf32>
    %265 = arith.mulf %264, %263 : vector<48x128xf32>
    %cst_117 = arith.constant 0.707106769 : f32
    %266 = vector.broadcast %cst_117 : f32 to vector<48x128xf32>
    %267 = arith.mulf %263, %266 : vector<48x128xf32>
    %268 = math.absf %267 : vector<48x128xf32>
    %cst_118 = arith.constant 0.327591091 : f32
    %269 = vector.broadcast %cst_118 : f32 to vector<48x128xf32>
    %270 = arith.mulf %269, %268 : vector<48x128xf32>
    %cst_119 = arith.constant 1.000000e+00 : f32
    %271 = vector.broadcast %cst_119 : f32 to vector<48x128xf32>
    %272 = arith.addf %271, %270 : vector<48x128xf32>
    %cst_120 = arith.constant 1.000000e+00 : f32
    %273 = vector.broadcast %cst_120 : f32 to vector<48x128xf32>
    %274 = arith.divf %273, %272 : vector<48x128xf32>
    %cst_121 = arith.constant 1.06140542 : f32
    %275 = vector.broadcast %cst_121 : f32 to vector<48x128xf32>
    %276 = arith.mulf %275, %274 : vector<48x128xf32>
    %cst_122 = arith.constant -1.45315206 : f32
    %277 = vector.broadcast %cst_122 : f32 to vector<48x128xf32>
    %278 = arith.addf %276, %277 : vector<48x128xf32>
    %279 = arith.mulf %278, %274 : vector<48x128xf32>
    %cst_123 = arith.constant 1.42141378 : f32
    %280 = vector.broadcast %cst_123 : f32 to vector<48x128xf32>
    %281 = arith.addf %279, %280 : vector<48x128xf32>
    %282 = arith.mulf %281, %274 : vector<48x128xf32>
    %cst_124 = arith.constant -0.284496725 : f32
    %283 = vector.broadcast %cst_124 : f32 to vector<48x128xf32>
    %284 = arith.addf %282, %283 : vector<48x128xf32>
    %285 = arith.mulf %284, %274 : vector<48x128xf32>
    %cst_125 = arith.constant 0.254829586 : f32
    %286 = vector.broadcast %cst_125 : f32 to vector<48x128xf32>
    %287 = arith.addf %285, %286 : vector<48x128xf32>
    %288 = arith.mulf %287, %274 : vector<48x128xf32>
    %cst_126 = arith.constant 0.000000e+00 : f32
    %289 = vector.broadcast %cst_126 : f32 to vector<48x128xf32>
    %290 = arith.subf %289, %268 : vector<48x128xf32>
    %291 = arith.mulf %290, %268 : vector<48x128xf32>
    %292 = math.exp %291 : vector<48x128xf32>
    %293 = arith.mulf %288, %292 : vector<48x128xf32>
    %cst_127 = arith.constant 1.000000e+00 : f32
    %294 = vector.broadcast %cst_127 : f32 to vector<48x128xf32>
    %295 = arith.subf %294, %293 : vector<48x128xf32>
    %cst_128 = arith.constant 0.000000e+00 : f32
    %296 = vector.broadcast %cst_128 : f32 to vector<48x128xf32>
    %297 = arith.cmpf oge, %267, %296 : vector<48x128xf32>
    %cst_129 = arith.constant 0.000000e+00 : f32
    %298 = vector.broadcast %cst_129 : f32 to vector<48x128xf32>
    %299 = arith.subf %298, %295 : vector<48x128xf32>
    %300 = arith.select %297, %295, %299 : vector<48x128xi1>, vector<48x128xf32>
    %cst_130 = arith.constant 1.000000e+00 : f32
    %301 = vector.broadcast %cst_130 : f32 to vector<48x128xf32>
    %302 = arith.addf %301, %300 : vector<48x128xf32>
    %303 = arith.mulf %265, %302 : vector<48x128xf32>
    %c0_131 = arith.constant 0 : index
    %c0_132 = arith.constant 0 : index
    %c0_133 = arith.constant 0 : index
    %304 = vector.load %arg15[%c0_131, %c0_132, %c0_133] : memref<2x128x32xf32, #tpu.memory_space<vmem>>, vector<1x128x32xf32>
    %305 = vector.shape_cast %304 : vector<1x128x32xf32> to vector<128x32xf32>
    %cst_134 = arith.constant dense<0.000000e+00> : vector<48x32xf32>
    %306 = tpu.matmul %303, %305, %cst_134 {dimension_numbers = #tpu.dot_dimension_numbers<[1], [0], [0], [1], [0, 0, 1, 1], [], []>} : vector<48x128xf32>, vector<128x32xf32>, vector<48x32xf32> -> vector<48x32xf32>
    %c0_135 = arith.constant 0 : index
    %c0_136 = arith.constant 0 : index
    %c0_137 = arith.constant 0 : index
    %307 = vector.load %arg16[%c0_135, %c0_136, %c0_137] : memref<2x1x32xf32, #tpu.memory_space<vmem>>, vector<1x1x32xf32>
    %308 = vector.shape_cast %307 : vector<1x1x32xf32> to vector<1x32xf32>
    %309 = vector.broadcast %308 : vector<1x32xf32> to vector<48x32xf32>
    %310 = arith.addf %306, %309 : vector<48x32xf32>
    %311 = arith.addf %230, %310 : vector<48x32xf32>
    %c1_138 = arith.constant 1 : index
    %c0_139 = arith.constant 0 : index
    %c0_140 = arith.constant 0 : index
    %312 = vector.load %arg6[%c1_138, %c0_139, %c0_140] : memref<2x1x32xf32, #tpu.memory_space<vmem>>, vector<1x1x32xf32>
    %313 = vector.shape_cast %312 : vector<1x1x32xf32> to vector<1x32xf32>
    %c1_141 = arith.constant 1 : index
    %c0_142 = arith.constant 0 : index
    %c0_143 = arith.constant 0 : index
    %314 = vector.load %arg7[%c1_141, %c0_142, %c0_143] : memref<2x1x32xf32, #tpu.memory_space<vmem>>, vector<1x1x32xf32>
    %315 = vector.shape_cast %314 : vector<1x1x32xf32> to vector<1x32xf32>
    %cst_144 = arith.constant dense<0.000000e+00> : vector<48xf32>
    %316 = vector.multi_reduction <add>, %311, %cst_144 [1] : vector<48x32xf32> to vector<48xf32>
    %317 = vector.shape_cast %316 : vector<48xf32> to vector<48x1xf32>
    %cst_145 = arith.constant 3.200000e+01 : f32
    %318 = vector.broadcast %cst_145 : f32 to vector<48x1xf32>
    %319 = arith.divf %317, %318 : vector<48x1xf32>
    %320 = vector.broadcast %319 : vector<48x1xf32> to vector<48x32xf32>
    %321 = arith.subf %311, %320 : vector<48x32xf32>
    %322 = arith.mulf %321, %321 : vector<48x32xf32>
    %cst_146 = arith.constant dense<0.000000e+00> : vector<48xf32>
    %323 = vector.multi_reduction <add>, %322, %cst_146 [1] : vector<48x32xf32> to vector<48xf32>
    %324 = vector.shape_cast %323 : vector<48xf32> to vector<48x1xf32>
    %cst_147 = arith.constant 3.200000e+01 : f32
    %325 = vector.broadcast %cst_147 : f32 to vector<48x1xf32>
    %326 = arith.divf %324, %325 : vector<48x1xf32>
    %327 = vector.broadcast %319 : vector<48x1xf32> to vector<48x32xf32>
    %328 = arith.subf %311, %327 : vector<48x32xf32>
    %cst_148 = arith.constant 9.99999974E-6 : f32
    %329 = vector.broadcast %cst_148 : f32 to vector<48x1xf32>
    %330 = arith.addf %326, %329 : vector<48x1xf32>
    %331 = math.rsqrt %330 : vector<48x1xf32>
    %332 = vector.broadcast %331 : vector<48x1xf32> to vector<48x32xf32>
    %333 = arith.mulf %328, %332 : vector<48x32xf32>
    %334 = vector.broadcast %313 : vector<1x32xf32> to vector<48x32xf32>
    %335 = arith.mulf %333, %334 : vector<48x32xf32>
    %336 = vector.broadcast %315 : vector<1x32xf32> to vector<48x32xf32>
    %337 = arith.addf %335, %336 : vector<48x32xf32>
    %c1_149 = arith.constant 1 : index
    %c0_150 = arith.constant 0 : index
    %c0_151 = arith.constant 0 : index
    %338 = vector.load %arg8[%c1_149, %c0_150, %c0_151] : memref<2x32x96xf32, #tpu.memory_space<vmem>>, vector<1x32x96xf32>
    %339 = vector.shape_cast %338 : vector<1x32x96xf32> to vector<32x96xf32>
    %cst_152 = arith.constant dense<0.000000e+00> : vector<48x96xf32>
    %340 = tpu.matmul %337, %339, %cst_152 {dimension_numbers = #tpu.dot_dimension_numbers<[1], [0], [0], [1], [0, 0, 1, 1], [], []>} : vector<48x32xf32>, vector<32x96xf32>, vector<48x96xf32> -> vector<48x96xf32>
    %341 = vector.extract_strided_slice %340 {offsets = [0, 0], sizes = [24, 8], strides = [1, 1]} : vector<48x96xf32> to vector<24x8xf32>
    %342 = vector.extract_strided_slice %340 {offsets = [0, 32], sizes = [24, 8], strides = [1, 1]} : vector<48x96xf32> to vector<24x8xf32>
    %343 = vector.extract_strided_slice %340 {offsets = [0, 64], sizes = [24, 8], strides = [1, 1]} : vector<48x96xf32> to vector<24x8xf32>
    %344 = tpu.transpose %342, [1, 0] : vector<24x8xf32> -> vector<8x24xf32>
    %cst_153 = arith.constant dense<0.000000e+00> : vector<24x24xf32>
    %345 = tpu.matmul %341, %344, %cst_153 {dimension_numbers = #tpu.dot_dimension_numbers<[1], [0], [0], [1], [0, 0, 1, 1], [], []>} : vector<24x8xf32>, vector<8x24xf32>, vector<24x24xf32> -> vector<24x24xf32>
    %cst_154 = arith.constant 0.353553385 : f32
    %346 = vector.broadcast %cst_154 : f32 to vector<24x24xf32>
    %347 = arith.mulf %345, %346 : vector<24x24xf32>
    %348 = arith.addf %347, %32 : vector<24x24xf32>
    %cst_155 = arith.constant dense<0xFF800000> : vector<24xf32>
    %349 = vector.multi_reduction <maximumf>, %348, %cst_155 [1] : vector<24x24xf32> to vector<24xf32>
    %350 = vector.shape_cast %349 : vector<24xf32> to vector<24x1xf32>
    %351 = vector.broadcast %350 : vector<24x1xf32> to vector<24x24xf32>
    %352 = arith.subf %348, %351 : vector<24x24xf32>
    %353 = math.exp %352 : vector<24x24xf32>
    %cst_156 = arith.constant dense<0.000000e+00> : vector<24xf32>
    %354 = vector.multi_reduction <add>, %353, %cst_156 [1] : vector<24x24xf32> to vector<24xf32>
    %355 = vector.shape_cast %354 : vector<24xf32> to vector<24x1xf32>
    %356 = tpu.reciprocal %355 {approx = true} : vector<24x1xf32> -> vector<24x1xf32>
    %357 = vector.broadcast %356 : vector<24x1xf32> to vector<24x24xf32>
    %358 = arith.mulf %353, %357 : vector<24x24xf32>
    %cst_157 = arith.constant dense<0.000000e+00> : vector<24x8xf32>
    %359 = tpu.matmul %358, %343, %cst_157 {dimension_numbers = #tpu.dot_dimension_numbers<[1], [0], [0], [1], [0, 0, 1, 1], [], []>} : vector<24x24xf32>, vector<24x8xf32>, vector<24x8xf32> -> vector<24x8xf32>
    %c0_158 = arith.constant 0 : index
    %c0_159 = arith.constant 0 : index
    %360 = vector.load %arg23[%c0_158, %c0_159] : memref<48x32xf32, #tpu.memory_space<vmem>>, vector<24x8xf32>
    tpu.vector_store %arg23[%c0_158, %c0_159], %359 {strides = array<i32>} : memref<48x32xf32, #tpu.memory_space<vmem>>, vector<24x8xf32>,
    %361 = vector.extract_strided_slice %340 {offsets = [0, 8], sizes = [24, 8], strides = [1, 1]} : vector<48x96xf32> to vector<24x8xf32>
    %362 = vector.extract_strided_slice %340 {offsets = [0, 40], sizes = [24, 8], strides = [1, 1]} : vector<48x96xf32> to vector<24x8xf32>
    %363 = vector.extract_strided_slice %340 {offsets = [0, 72], sizes = [24, 8], strides = [1, 1]} : vector<48x96xf32> to vector<24x8xf32>
    %364 = tpu.transpose %362, [1, 0] : vector<24x8xf32> -> vector<8x24xf32>
    %cst_160 = arith.constant dense<0.000000e+00> : vector<24x24xf32>
    %365 = tpu.matmul %361, %364, %cst_160 {dimension_numbers = #tpu.dot_dimension_numbers<[1], [0], [0], [1], [0, 0, 1, 1], [], []>} : vector<24x8xf32>, vector<8x24xf32>, vector<24x24xf32> -> vector<24x24xf32>
    %cst_161 = arith.constant 0.353553385 : f32
    %366 = vector.broadcast %cst_161 : f32 to vector<24x24xf32>
    %367 = arith.mulf %365, %366 : vector<24x24xf32>
    %368 = arith.addf %367, %32 : vector<24x24xf32>
    %cst_162 = arith.constant dense<0xFF800000> : vector<24xf32>
    %369 = vector.multi_reduction <maximumf>, %368, %cst_162 [1] : vector<24x24xf32> to vector<24xf32>
    %370 = vector.shape_cast %369 : vector<24xf32> to vector<24x1xf32>
    %371 = vector.broadcast %370 : vector<24x1xf32> to vector<24x24xf32>
    %372 = arith.subf %368, %371 : vector<24x24xf32>
    %373 = math.exp %372 : vector<24x24xf32>
    %cst_163 = arith.constant dense<0.000000e+00> : vector<24xf32>
    %374 = vector.multi_reduction <add>, %373, %cst_163 [1] : vector<24x24xf32> to vector<24xf32>
    %375 = vector.shape_cast %374 : vector<24xf32> to vector<24x1xf32>
    %376 = tpu.reciprocal %375 {approx = true} : vector<24x1xf32> -> vector<24x1xf32>
    %377 = vector.broadcast %376 : vector<24x1xf32> to vector<24x24xf32>
    %378 = arith.mulf %373, %377 : vector<24x24xf32>
    %cst_164 = arith.constant dense<0.000000e+00> : vector<24x8xf32>
    %379 = tpu.matmul %378, %363, %cst_164 {dimension_numbers = #tpu.dot_dimension_numbers<[1], [0], [0], [1], [0, 0, 1, 1], [], []>} : vector<24x24xf32>, vector<24x8xf32>, vector<24x8xf32> -> vector<24x8xf32>
    %c0_165 = arith.constant 0 : index
    %c8_166 = arith.constant 8 : index
    %380 = vector.load %arg23[%c0_165, %c8_166] : memref<48x32xf32, #tpu.memory_space<vmem>>, vector<24x8xf32>
    tpu.vector_store %arg23[%c0_165, %c8_166], %379 {strides = array<i32>} : memref<48x32xf32, #tpu.memory_space<vmem>>, vector<24x8xf32>,
    %381 = vector.extract_strided_slice %340 {offsets = [0, 16], sizes = [24, 8], strides = [1, 1]} : vector<48x96xf32> to vector<24x8xf32>
    %382 = vector.extract_strided_slice %340 {offsets = [0, 48], sizes = [24, 8], strides = [1, 1]} : vector<48x96xf32> to vector<24x8xf32>
    %383 = vector.extract_strided_slice %340 {offsets = [0, 80], sizes = [24, 8], strides = [1, 1]} : vector<48x96xf32> to vector<24x8xf32>
    %384 = tpu.transpose %382, [1, 0] : vector<24x8xf32> -> vector<8x24xf32>
    %cst_167 = arith.constant dense<0.000000e+00> : vector<24x24xf32>
    %385 = tpu.matmul %381, %384, %cst_167 {dimension_numbers = #tpu.dot_dimension_numbers<[1], [0], [0], [1], [0, 0, 1, 1], [], []>} : vector<24x8xf32>, vector<8x24xf32>, vector<24x24xf32> -> vector<24x24xf32>
    %cst_168 = arith.constant 0.353553385 : f32
    %386 = vector.broadcast %cst_168 : f32 to vector<24x24xf32>
    %387 = arith.mulf %385, %386 : vector<24x24xf32>
    %388 = arith.addf %387, %32 : vector<24x24xf32>
    %cst_169 = arith.constant dense<0xFF800000> : vector<24xf32>
    %389 = vector.multi_reduction <maximumf>, %388, %cst_169 [1] : vector<24x24xf32> to vector<24xf32>
    %390 = vector.shape_cast %389 : vector<24xf32> to vector<24x1xf32>
    %391 = vector.broadcast %390 : vector<24x1xf32> to vector<24x24xf32>
    %392 = arith.subf %388, %391 : vector<24x24xf32>
    %393 = math.exp %392 : vector<24x24xf32>
    %cst_170 = arith.constant dense<0.000000e+00> : vector<24xf32>
    %394 = vector.multi_reduction <add>, %393, %cst_170 [1] : vector<24x24xf32> to vector<24xf32>
    %395 = vector.shape_cast %394 : vector<24xf32> to vector<24x1xf32>
    %396 = tpu.reciprocal %395 {approx = true} : vector<24x1xf32> -> vector<24x1xf32>
    %397 = vector.broadcast %396 : vector<24x1xf32> to vector<24x24xf32>
    %398 = arith.mulf %393, %397 : vector<24x24xf32>
    %cst_171 = arith.constant dense<0.000000e+00> : vector<24x8xf32>
    %399 = tpu.matmul %398, %383, %cst_171 {dimension_numbers = #tpu.dot_dimension_numbers<[1], [0], [0], [1], [0, 0, 1, 1], [], []>} : vector<24x24xf32>, vector<24x8xf32>, vector<24x8xf32> -> vector<24x8xf32>
    %c0_172 = arith.constant 0 : index
    %c16_173 = arith.constant 16 : index
    %400 = vector.load %arg23[%c0_172, %c16_173] : memref<48x32xf32, #tpu.memory_space<vmem>>, vector<24x8xf32>
    tpu.vector_store %arg23[%c0_172, %c16_173], %399 {strides = array<i32>} : memref<48x32xf32, #tpu.memory_space<vmem>>, vector<24x8xf32>,
    %401 = vector.extract_strided_slice %340 {offsets = [0, 24], sizes = [24, 8], strides = [1, 1]} : vector<48x96xf32> to vector<24x8xf32>
    %402 = vector.extract_strided_slice %340 {offsets = [0, 56], sizes = [24, 8], strides = [1, 1]} : vector<48x96xf32> to vector<24x8xf32>
    %403 = vector.extract_strided_slice %340 {offsets = [0, 88], sizes = [24, 8], strides = [1, 1]} : vector<48x96xf32> to vector<24x8xf32>
    %404 = tpu.transpose %402, [1, 0] : vector<24x8xf32> -> vector<8x24xf32>
    %cst_174 = arith.constant dense<0.000000e+00> : vector<24x24xf32>
    %405 = tpu.matmul %401, %404, %cst_174 {dimension_numbers = #tpu.dot_dimension_numbers<[1], [0], [0], [1], [0, 0, 1, 1], [], []>} : vector<24x8xf32>, vector<8x24xf32>, vector<24x24xf32> -> vector<24x24xf32>
    %cst_175 = arith.constant 0.353553385 : f32
    %406 = vector.broadcast %cst_175 : f32 to vector<24x24xf32>
    %407 = arith.mulf %405, %406 : vector<24x24xf32>
    %408 = arith.addf %407, %32 : vector<24x24xf32>
    %cst_176 = arith.constant dense<0xFF800000> : vector<24xf32>
    %409 = vector.multi_reduction <maximumf>, %408, %cst_176 [1] : vector<24x24xf32> to vector<24xf32>
    %410 = vector.shape_cast %409 : vector<24xf32> to vector<24x1xf32>
    %411 = vector.broadcast %410 : vector<24x1xf32> to vector<24x24xf32>
    %412 = arith.subf %408, %411 : vector<24x24xf32>
    %413 = math.exp %412 : vector<24x24xf32>
    %cst_177 = arith.constant dense<0.000000e+00> : vector<24xf32>
    %414 = vector.multi_reduction <add>, %413, %cst_177 [1] : vector<24x24xf32> to vector<24xf32>
    %415 = vector.shape_cast %414 : vector<24xf32> to vector<24x1xf32>
    %416 = tpu.reciprocal %415 {approx = true} : vector<24x1xf32> -> vector<24x1xf32>
    %417 = vector.broadcast %416 : vector<24x1xf32> to vector<24x24xf32>
    %418 = arith.mulf %413, %417 : vector<24x24xf32>
    %cst_178 = arith.constant dense<0.000000e+00> : vector<24x8xf32>
    %419 = tpu.matmul %418, %403, %cst_178 {dimension_numbers = #tpu.dot_dimension_numbers<[1], [0], [0], [1], [0, 0, 1, 1], [], []>} : vector<24x24xf32>, vector<24x8xf32>, vector<24x8xf32> -> vector<24x8xf32>
    %c0_179 = arith.constant 0 : index
    %c24_180 = arith.constant 24 : index
    %420 = vector.load %arg23[%c0_179, %c24_180] : memref<48x32xf32, #tpu.memory_space<vmem>>, vector<24x8xf32>
    tpu.vector_store %arg23[%c0_179, %c24_180], %419 {strides = array<i32>} : memref<48x32xf32, #tpu.memory_space<vmem>>, vector<24x8xf32>,
    %421 = vector.extract_strided_slice %340 {offsets = [24, 0], sizes = [24, 8], strides = [1, 1]} : vector<48x96xf32> to vector<24x8xf32>
    %422 = vector.extract_strided_slice %340 {offsets = [24, 32], sizes = [24, 8], strides = [1, 1]} : vector<48x96xf32> to vector<24x8xf32>
    %423 = vector.extract_strided_slice %340 {offsets = [24, 64], sizes = [24, 8], strides = [1, 1]} : vector<48x96xf32> to vector<24x8xf32>
    %424 = tpu.transpose %422, [1, 0] : vector<24x8xf32> -> vector<8x24xf32>
    %cst_181 = arith.constant dense<0.000000e+00> : vector<24x24xf32>
    %425 = tpu.matmul %421, %424, %cst_181 {dimension_numbers = #tpu.dot_dimension_numbers<[1], [0], [0], [1], [0, 0, 1, 1], [], []>} : vector<24x8xf32>, vector<8x24xf32>, vector<24x24xf32> -> vector<24x24xf32>
    %cst_182 = arith.constant 0.353553385 : f32
    %426 = vector.broadcast %cst_182 : f32 to vector<24x24xf32>
    %427 = arith.mulf %425, %426 : vector<24x24xf32>
    %428 = arith.addf %427, %32 : vector<24x24xf32>
    %cst_183 = arith.constant dense<0xFF800000> : vector<24xf32>
    %429 = vector.multi_reduction <maximumf>, %428, %cst_183 [1] : vector<24x24xf32> to vector<24xf32>
    %430 = vector.shape_cast %429 : vector<24xf32> to vector<24x1xf32>
    %431 = vector.broadcast %430 : vector<24x1xf32> to vector<24x24xf32>
    %432 = arith.subf %428, %431 : vector<24x24xf32>
    %433 = math.exp %432 : vector<24x24xf32>
    %cst_184 = arith.constant dense<0.000000e+00> : vector<24xf32>
    %434 = vector.multi_reduction <add>, %433, %cst_184 [1] : vector<24x24xf32> to vector<24xf32>
    %435 = vector.shape_cast %434 : vector<24xf32> to vector<24x1xf32>
    %436 = tpu.reciprocal %435 {approx = true} : vector<24x1xf32> -> vector<24x1xf32>
    %437 = vector.broadcast %436 : vector<24x1xf32> to vector<24x24xf32>
    %438 = arith.mulf %433, %437 : vector<24x24xf32>
    %cst_185 = arith.constant dense<0.000000e+00> : vector<24x8xf32>
    %439 = tpu.matmul %438, %423, %cst_185 {dimension_numbers = #tpu.dot_dimension_numbers<[1], [0], [0], [1], [0, 0, 1, 1], [], []>} : vector<24x24xf32>, vector<24x8xf32>, vector<24x8xf32> -> vector<24x8xf32>
    %c24_186 = arith.constant 24 : index
    %c0_187 = arith.constant 0 : index
    %440 = vector.load %arg23[%c24_186, %c0_187] : memref<48x32xf32, #tpu.memory_space<vmem>>, vector<24x8xf32>
    tpu.vector_store %arg23[%c24_186, %c0_187], %439 {strides = array<i32>} : memref<48x32xf32, #tpu.memory_space<vmem>>, vector<24x8xf32>,
    %441 = vector.extract_strided_slice %340 {offsets = [24, 8], sizes = [24, 8], strides = [1, 1]} : vector<48x96xf32> to vector<24x8xf32>
    %442 = vector.extract_strided_slice %340 {offsets = [24, 40], sizes = [24, 8], strides = [1, 1]} : vector<48x96xf32> to vector<24x8xf32>
    %443 = vector.extract_strided_slice %340 {offsets = [24, 72], sizes = [24, 8], strides = [1, 1]} : vector<48x96xf32> to vector<24x8xf32>
    %444 = tpu.transpose %442, [1, 0] : vector<24x8xf32> -> vector<8x24xf32>
    %cst_188 = arith.constant dense<0.000000e+00> : vector<24x24xf32>
    %445 = tpu.matmul %441, %444, %cst_188 {dimension_numbers = #tpu.dot_dimension_numbers<[1], [0], [0], [1], [0, 0, 1, 1], [], []>} : vector<24x8xf32>, vector<8x24xf32>, vector<24x24xf32> -> vector<24x24xf32>
    %cst_189 = arith.constant 0.353553385 : f32
    %446 = vector.broadcast %cst_189 : f32 to vector<24x24xf32>
    %447 = arith.mulf %445, %446 : vector<24x24xf32>
    %448 = arith.addf %447, %32 : vector<24x24xf32>
    %cst_190 = arith.constant dense<0xFF800000> : vector<24xf32>
    %449 = vector.multi_reduction <maximumf>, %448, %cst_190 [1] : vector<24x24xf32> to vector<24xf32>
    %450 = vector.shape_cast %449 : vector<24xf32> to vector<24x1xf32>
    %451 = vector.broadcast %450 : vector<24x1xf32> to vector<24x24xf32>
    %452 = arith.subf %448, %451 : vector<24x24xf32>
    %453 = math.exp %452 : vector<24x24xf32>
    %cst_191 = arith.constant dense<0.000000e+00> : vector<24xf32>
    %454 = vector.multi_reduction <add>, %453, %cst_191 [1] : vector<24x24xf32> to vector<24xf32>
    %455 = vector.shape_cast %454 : vector<24xf32> to vector<24x1xf32>
    %456 = tpu.reciprocal %455 {approx = true} : vector<24x1xf32> -> vector<24x1xf32>
    %457 = vector.broadcast %456 : vector<24x1xf32> to vector<24x24xf32>
    %458 = arith.mulf %453, %457 : vector<24x24xf32>
    %cst_192 = arith.constant dense<0.000000e+00> : vector<24x8xf32>
    %459 = tpu.matmul %458, %443, %cst_192 {dimension_numbers = #tpu.dot_dimension_numbers<[1], [0], [0], [1], [0, 0, 1, 1], [], []>} : vector<24x24xf32>, vector<24x8xf32>, vector<24x8xf32> -> vector<24x8xf32>
    %c24_193 = arith.constant 24 : index
    %c8_194 = arith.constant 8 : index
    %460 = vector.load %arg23[%c24_193, %c8_194] : memref<48x32xf32, #tpu.memory_space<vmem>>, vector<24x8xf32>
    tpu.vector_store %arg23[%c24_193, %c8_194], %459 {strides = array<i32>} : memref<48x32xf32, #tpu.memory_space<vmem>>, vector<24x8xf32>,
    %461 = vector.extract_strided_slice %340 {offsets = [24, 16], sizes = [24, 8], strides = [1, 1]} : vector<48x96xf32> to vector<24x8xf32>
    %462 = vector.extract_strided_slice %340 {offsets = [24, 48], sizes = [24, 8], strides = [1, 1]} : vector<48x96xf32> to vector<24x8xf32>
    %463 = vector.extract_strided_slice %340 {offsets = [24, 80], sizes = [24, 8], strides = [1, 1]} : vector<48x96xf32> to vector<24x8xf32>
    %464 = tpu.transpose %462, [1, 0] : vector<24x8xf32> -> vector<8x24xf32>
    %cst_195 = arith.constant dense<0.000000e+00> : vector<24x24xf32>
    %465 = tpu.matmul %461, %464, %cst_195 {dimension_numbers = #tpu.dot_dimension_numbers<[1], [0], [0], [1], [0, 0, 1, 1], [], []>} : vector<24x8xf32>, vector<8x24xf32>, vector<24x24xf32> -> vector<24x24xf32>
    %cst_196 = arith.constant 0.353553385 : f32
    %466 = vector.broadcast %cst_196 : f32 to vector<24x24xf32>
    %467 = arith.mulf %465, %466 : vector<24x24xf32>
    %468 = arith.addf %467, %32 : vector<24x24xf32>
    %cst_197 = arith.constant dense<0xFF800000> : vector<24xf32>
    %469 = vector.multi_reduction <maximumf>, %468, %cst_197 [1] : vector<24x24xf32> to vector<24xf32>
    %470 = vector.shape_cast %469 : vector<24xf32> to vector<24x1xf32>
    %471 = vector.broadcast %470 : vector<24x1xf32> to vector<24x24xf32>
    %472 = arith.subf %468, %471 : vector<24x24xf32>
    %473 = math.exp %472 : vector<24x24xf32>
    %cst_198 = arith.constant dense<0.000000e+00> : vector<24xf32>
    %474 = vector.multi_reduction <add>, %473, %cst_198 [1] : vector<24x24xf32> to vector<24xf32>
    %475 = vector.shape_cast %474 : vector<24xf32> to vector<24x1xf32>
    %476 = tpu.reciprocal %475 {approx = true} : vector<24x1xf32> -> vector<24x1xf32>
    %477 = vector.broadcast %476 : vector<24x1xf32> to vector<24x24xf32>
    %478 = arith.mulf %473, %477 : vector<24x24xf32>
    %cst_199 = arith.constant dense<0.000000e+00> : vector<24x8xf32>
    %479 = tpu.matmul %478, %463, %cst_199 {dimension_numbers = #tpu.dot_dimension_numbers<[1], [0], [0], [1], [0, 0, 1, 1], [], []>} : vector<24x24xf32>, vector<24x8xf32>, vector<24x8xf32> -> vector<24x8xf32>
    %c24_200 = arith.constant 24 : index
    %c16_201 = arith.constant 16 : index
    %480 = vector.load %arg23[%c24_200, %c16_201] : memref<48x32xf32, #tpu.memory_space<vmem>>, vector<24x8xf32>
    tpu.vector_store %arg23[%c24_200, %c16_201], %479 {strides = array<i32>} : memref<48x32xf32, #tpu.memory_space<vmem>>, vector<24x8xf32>,
    %481 = vector.extract_strided_slice %340 {offsets = [24, 24], sizes = [24, 8], strides = [1, 1]} : vector<48x96xf32> to vector<24x8xf32>
    %482 = vector.extract_strided_slice %340 {offsets = [24, 56], sizes = [24, 8], strides = [1, 1]} : vector<48x96xf32> to vector<24x8xf32>
    %483 = vector.extract_strided_slice %340 {offsets = [24, 88], sizes = [24, 8], strides = [1, 1]} : vector<48x96xf32> to vector<24x8xf32>
    %484 = tpu.transpose %482, [1, 0] : vector<24x8xf32> -> vector<8x24xf32>
    %cst_202 = arith.constant dense<0.000000e+00> : vector<24x24xf32>
    %485 = tpu.matmul %481, %484, %cst_202 {dimension_numbers = #tpu.dot_dimension_numbers<[1], [0], [0], [1], [0, 0, 1, 1], [], []>} : vector<24x8xf32>, vector<8x24xf32>, vector<24x24xf32> -> vector<24x24xf32>
    %cst_203 = arith.constant 0.353553385 : f32
    %486 = vector.broadcast %cst_203 : f32 to vector<24x24xf32>
    %487 = arith.mulf %485, %486 : vector<24x24xf32>
    %488 = arith.addf %487, %32 : vector<24x24xf32>
    %cst_204 = arith.constant dense<0xFF800000> : vector<24xf32>
    %489 = vector.multi_reduction <maximumf>, %488, %cst_204 [1] : vector<24x24xf32> to vector<24xf32>
    %490 = vector.shape_cast %489 : vector<24xf32> to vector<24x1xf32>
    %491 = vector.broadcast %490 : vector<24x1xf32> to vector<24x24xf32>
    %492 = arith.subf %488, %491 : vector<24x24xf32>
    %493 = math.exp %492 : vector<24x24xf32>
    %cst_205 = arith.constant dense<0.000000e+00> : vector<24xf32>
    %494 = vector.multi_reduction <add>, %493, %cst_205 [1] : vector<24x24xf32> to vector<24xf32>
    %495 = vector.shape_cast %494 : vector<24xf32> to vector<24x1xf32>
    %496 = tpu.reciprocal %495 {approx = true} : vector<24x1xf32> -> vector<24x1xf32>
    %497 = vector.broadcast %496 : vector<24x1xf32> to vector<24x24xf32>
    %498 = arith.mulf %493, %497 : vector<24x24xf32>
    %cst_206 = arith.constant dense<0.000000e+00> : vector<24x8xf32>
    %499 = tpu.matmul %498, %483, %cst_206 {dimension_numbers = #tpu.dot_dimension_numbers<[1], [0], [0], [1], [0, 0, 1, 1], [], []>} : vector<24x24xf32>, vector<24x8xf32>, vector<24x8xf32> -> vector<24x8xf32>
    %c24_207 = arith.constant 24 : index
    %c24_208 = arith.constant 24 : index
    %500 = vector.load %arg23[%c24_207, %c24_208] : memref<48x32xf32, #tpu.memory_space<vmem>>, vector<24x8xf32>
    tpu.vector_store %arg23[%c24_207, %c24_208], %499 {strides = array<i32>} : memref<48x32xf32, #tpu.memory_space<vmem>>, vector<24x8xf32>,
    %c0_209 = arith.constant 0 : index
    %c0_210 = arith.constant 0 : index
    %501 = vector.load %arg23[%c0_209, %c0_210] : memref<48x32xf32, #tpu.memory_space<vmem>>, vector<48x32xf32>
    %c1_211 = arith.constant 1 : index
    %c0_212 = arith.constant 0 : index
    %c0_213 = arith.constant 0 : index
    %502 = vector.load %arg9[%c1_211, %c0_212, %c0_213] : memref<2x32x32xf32, #tpu.memory_space<vmem>>, vector<1x32x32xf32>
    %503 = vector.shape_cast %502 : vector<1x32x32xf32> to vector<32x32xf32>
    %cst_214 = arith.constant dense<0.000000e+00> : vector<48x32xf32>
    %504 = tpu.matmul %501, %503, %cst_214 {dimension_numbers = #tpu.dot_dimension_numbers<[1], [0], [0], [1], [0, 0, 1, 1], [], []>} : vector<48x32xf32>, vector<32x32xf32>, vector<48x32xf32> -> vector<48x32xf32>
    %c1_215 = arith.constant 1 : index
    %c0_216 = arith.constant 0 : index
    %c0_217 = arith.constant 0 : index
    %505 = vector.load %arg10[%c1_215, %c0_216, %c0_217] : memref<2x1x32xf32, #tpu.memory_space<vmem>>, vector<1x1x32xf32>
    %506 = vector.shape_cast %505 : vector<1x1x32xf32> to vector<1x32xf32>
    %507 = vector.broadcast %506 : vector<1x32xf32> to vector<48x32xf32>
    %508 = arith.addf %504, %507 : vector<48x32xf32>
    %509 = arith.addf %311, %508 : vector<48x32xf32>
    %c1_218 = arith.constant 1 : index
    %c0_219 = arith.constant 0 : index
    %c0_220 = arith.constant 0 : index
    %510 = vector.load %arg11[%c1_218, %c0_219, %c0_220] : memref<2x1x32xf32, #tpu.memory_space<vmem>>, vector<1x1x32xf32>
    %511 = vector.shape_cast %510 : vector<1x1x32xf32> to vector<1x32xf32>
    %c1_221 = arith.constant 1 : index
    %c0_222 = arith.constant 0 : index
    %c0_223 = arith.constant 0 : index
    %512 = vector.load %arg12[%c1_221, %c0_222, %c0_223] : memref<2x1x32xf32, #tpu.memory_space<vmem>>, vector<1x1x32xf32>
    %513 = vector.shape_cast %512 : vector<1x1x32xf32> to vector<1x32xf32>
    %cst_224 = arith.constant dense<0.000000e+00> : vector<48xf32>
    %514 = vector.multi_reduction <add>, %509, %cst_224 [1] : vector<48x32xf32> to vector<48xf32>
    %515 = vector.shape_cast %514 : vector<48xf32> to vector<48x1xf32>
    %cst_225 = arith.constant 3.200000e+01 : f32
    %516 = vector.broadcast %cst_225 : f32 to vector<48x1xf32>
    %517 = arith.divf %515, %516 : vector<48x1xf32>
    %518 = vector.broadcast %517 : vector<48x1xf32> to vector<48x32xf32>
    %519 = arith.subf %509, %518 : vector<48x32xf32>
    %520 = arith.mulf %519, %519 : vector<48x32xf32>
    %cst_226 = arith.constant dense<0.000000e+00> : vector<48xf32>
    %521 = vector.multi_reduction <add>, %520, %cst_226 [1] : vector<48x32xf32> to vector<48xf32>
    %522 = vector.shape_cast %521 : vector<48xf32> to vector<48x1xf32>
    %cst_227 = arith.constant 3.200000e+01 : f32
    %523 = vector.broadcast %cst_227 : f32 to vector<48x1xf32>
    %524 = arith.divf %522, %523 : vector<48x1xf32>
    %525 = vector.broadcast %517 : vector<48x1xf32> to vector<48x32xf32>
    %526 = arith.subf %509, %525 : vector<48x32xf32>
    %cst_228 = arith.constant 9.99999974E-6 : f32
    %527 = vector.broadcast %cst_228 : f32 to vector<48x1xf32>
    %528 = arith.addf %524, %527 : vector<48x1xf32>
    %529 = math.rsqrt %528 : vector<48x1xf32>
    %530 = vector.broadcast %529 : vector<48x1xf32> to vector<48x32xf32>
    %531 = arith.mulf %526, %530 : vector<48x32xf32>
    %532 = vector.broadcast %511 : vector<1x32xf32> to vector<48x32xf32>
    %533 = arith.mulf %531, %532 : vector<48x32xf32>
    %534 = vector.broadcast %513 : vector<1x32xf32> to vector<48x32xf32>
    %535 = arith.addf %533, %534 : vector<48x32xf32>
    %c1_229 = arith.constant 1 : index
    %c0_230 = arith.constant 0 : index
    %c0_231 = arith.constant 0 : index
    %536 = vector.load %arg13[%c1_229, %c0_230, %c0_231] : memref<2x32x128xf32, #tpu.memory_space<vmem>>, vector<1x32x128xf32>
    %537 = vector.shape_cast %536 : vector<1x32x128xf32> to vector<32x128xf32>
    %cst_232 = arith.constant dense<0.000000e+00> : vector<48x128xf32>
    %538 = tpu.matmul %535, %537, %cst_232 {dimension_numbers = #tpu.dot_dimension_numbers<[1], [0], [0], [1], [0, 0, 1, 1], [], []>} : vector<48x32xf32>, vector<32x128xf32>, vector<48x128xf32> -> vector<48x128xf32>
    %c1_233 = arith.constant 1 : index
    %c0_234 = arith.constant 0 : index
    %c0_235 = arith.constant 0 : index
    %539 = vector.load %arg14[%c1_233, %c0_234, %c0_235] : memref<2x1x128xf32, #tpu.memory_space<vmem>>, vector<1x1x128xf32>
    %540 = vector.shape_cast %539 : vector<1x1x128xf32> to vector<1x128xf32>
    %541 = vector.broadcast %540 : vector<1x128xf32> to vector<48x128xf32>
    %542 = arith.addf %538, %541 : vector<48x128xf32>
    %cst_236 = arith.constant 5.000000e-01 : f32
    %543 = vector.broadcast %cst_236 : f32 to vector<48x128xf32>
    %544 = arith.mulf %543, %542 : vector<48x128xf32>
    %cst_237 = arith.constant 0.707106769 : f32
    %545 = vector.broadcast %cst_237 : f32 to vector<48x128xf32>
    %546 = arith.mulf %542, %545 : vector<48x128xf32>
    %547 = math.absf %546 : vector<48x128xf32>
    %cst_238 = arith.constant 0.327591091 : f32
    %548 = vector.broadcast %cst_238 : f32 to vector<48x128xf32>
    %549 = arith.mulf %548, %547 : vector<48x128xf32>
    %cst_239 = arith.constant 1.000000e+00 : f32
    %550 = vector.broadcast %cst_239 : f32 to vector<48x128xf32>
    %551 = arith.addf %550, %549 : vector<48x128xf32>
    %cst_240 = arith.constant 1.000000e+00 : f32
    %552 = vector.broadcast %cst_240 : f32 to vector<48x128xf32>
    %553 = arith.divf %552, %551 : vector<48x128xf32>
    %cst_241 = arith.constant 1.06140542 : f32
    %554 = vector.broadcast %cst_241 : f32 to vector<48x128xf32>
    %555 = arith.mulf %554, %553 : vector<48x128xf32>
    %cst_242 = arith.constant -1.45315206 : f32
    %556 = vector.broadcast %cst_242 : f32 to vector<48x128xf32>
    %557 = arith.addf %555, %556 : vector<48x128xf32>
    %558 = arith.mulf %557, %553 : vector<48x128xf32>
    %cst_243 = arith.constant 1.42141378 : f32
    %559 = vector.broadcast %cst_243 : f32 to vector<48x128xf32>
    %560 = arith.addf %558, %559 : vector<48x128xf32>
    %561 = arith.mulf %560, %553 : vector<48x128xf32>
    %cst_244 = arith.constant -0.284496725 : f32
    %562 = vector.broadcast %cst_244 : f32 to vector<48x128xf32>
    %563 = arith.addf %561, %562 : vector<48x128xf32>
    %564 = arith.mulf %563, %553 : vector<48x128xf32>
    %cst_245 = arith.constant 0.254829586 : f32
    %565 = vector.broadcast %cst_245 : f32 to vector<48x128xf32>
    %566 = arith.addf %564, %565 : vector<48x128xf32>
    %567 = arith.mulf %566, %553 : vector<48x128xf32>
    %cst_246 = arith.constant 0.000000e+00 : f32
    %568 = vector.broadcast %cst_246 : f32 to vector<48x128xf32>
    %569 = arith.subf %568, %547 : vector<48x128xf32>
    %570 = arith.mulf %569, %547 : vector<48x128xf32>
    %571 = math.exp %570 : vector<48x128xf32>
    %572 = arith.mulf %567, %571 : vector<48x128xf32>
    %cst_247 = arith.constant 1.000000e+00 : f32
    %573 = vector.broadcast %cst_247 : f32 to vector<48x128xf32>
    %574 = arith.subf %573, %572 : vector<48x128xf32>
    %cst_248 = arith.constant 0.000000e+00 : f32
    %575 = vector.broadcast %cst_248 : f32 to vector<48x128xf32>
    %576 = arith.cmpf oge, %546, %575 : vector<48x128xf32>
    %cst_249 = arith.constant 0.000000e+00 : f32
    %577 = vector.broadcast %cst_249 : f32 to vector<48x128xf32>
    %578 = arith.subf %577, %574 : vector<48x128xf32>
    %579 = arith.select %576, %574, %578 : vector<48x128xi1>, vector<48x128xf32>
    %cst_250 = arith.constant 1.000000e+00 : f32
    %580 = vector.broadcast %cst_250 : f32 to vector<48x128xf32>
    %581 = arith.addf %580, %579 : vector<48x128xf32>
    %582 = arith.mulf %544, %581 : vector<48x128xf32>
    %c1_251 = arith.constant 1 : index
    %c0_252 = arith.constant 0 : index
    %c0_253 = arith.constant 0 : index
    %583 = vector.load %arg15[%c1_251, %c0_252, %c0_253] : memref<2x128x32xf32, #tpu.memory_space<vmem>>, vector<1x128x32xf32>
    %584 = vector.shape_cast %583 : vector<1x128x32xf32> to vector<128x32xf32>
    %cst_254 = arith.constant dense<0.000000e+00> : vector<48x32xf32>
    %585 = tpu.matmul %582, %584, %cst_254 {dimension_numbers = #tpu.dot_dimension_numbers<[1], [0], [0], [1], [0, 0, 1, 1], [], []>} : vector<48x128xf32>, vector<128x32xf32>, vector<48x32xf32> -> vector<48x32xf32>
    %c1_255 = arith.constant 1 : index
    %c0_256 = arith.constant 0 : index
    %c0_257 = arith.constant 0 : index
    %586 = vector.load %arg16[%c1_255, %c0_256, %c0_257] : memref<2x1x32xf32, #tpu.memory_space<vmem>>, vector<1x1x32xf32>
    %587 = vector.shape_cast %586 : vector<1x1x32xf32> to vector<1x32xf32>
    %588 = vector.broadcast %587 : vector<1x32xf32> to vector<48x32xf32>
    %589 = arith.addf %585, %588 : vector<48x32xf32>
    %590 = arith.addf %509, %589 : vector<48x32xf32>
    %591 = vector.extract_strided_slice %590 {offsets = [0, 0], sizes = [1, 32], strides = [1, 1]} : vector<48x32xf32> to vector<1x32xf32>
    %c0_258 = arith.constant 0 : index
    %c0_259 = arith.constant 0 : index
    %592 = vector.load %arg17[%c0_258, %c0_259] : memref<1x32xf32, #tpu.memory_space<vmem>>, vector<1x32xf32>
    %c0_260 = arith.constant 0 : index
    %c0_261 = arith.constant 0 : index
    %593 = vector.load %arg18[%c0_260, %c0_261] : memref<1x32xf32, #tpu.memory_space<vmem>>, vector<1x32xf32>
    %cst_262 = arith.constant dense<0.000000e+00> : vector<1xf32>
    %594 = vector.multi_reduction <add>, %591, %cst_262 [1] : vector<1x32xf32> to vector<1xf32>
    %595 = vector.shape_cast %594 : vector<1xf32> to vector<1x1xf32>
    %cst_263 = arith.constant 3.200000e+01 : f32
    %596 = vector.broadcast %cst_263 : f32 to vector<1x1xf32>
    %597 = arith.divf %595, %596 : vector<1x1xf32>
    %598 = vector.broadcast %597 : vector<1x1xf32> to vector<1x32xf32>
    %599 = arith.subf %591, %598 : vector<1x32xf32>
    %600 = arith.mulf %599, %599 : vector<1x32xf32>
    %cst_264 = arith.constant dense<0.000000e+00> : vector<1xf32>
    %601 = vector.multi_reduction <add>, %600, %cst_264 [1] : vector<1x32xf32> to vector<1xf32>
    %602 = vector.shape_cast %601 : vector<1xf32> to vector<1x1xf32>
    %cst_265 = arith.constant 3.200000e+01 : f32
    %603 = vector.broadcast %cst_265 : f32 to vector<1x1xf32>
    %604 = arith.divf %602, %603 : vector<1x1xf32>
    %605 = vector.broadcast %597 : vector<1x1xf32> to vector<1x32xf32>
    %606 = arith.subf %591, %605 : vector<1x32xf32>
    %cst_266 = arith.constant 9.99999974E-6 : f32
    %607 = vector.broadcast %cst_266 : f32 to vector<1x1xf32>
    %608 = arith.addf %604, %607 : vector<1x1xf32>
    %609 = math.rsqrt %608 : vector<1x1xf32>
    %610 = vector.broadcast %609 : vector<1x1xf32> to vector<1x32xf32>
    %611 = arith.mulf %606, %610 : vector<1x32xf32>
    %612 = arith.mulf %611, %592 : vector<1x32xf32>
    %613 = arith.addf %612, %593 : vector<1x32xf32>
    %c0_267 = arith.constant 0 : index
    %c0_268 = arith.constant 0 : index
    %614 = vector.load %arg19[%c0_267, %c0_268] : memref<32x10xf32, #tpu.memory_space<vmem>>, vector<32x10xf32>
    %cst_269 = arith.constant dense<0.000000e+00> : vector<1x10xf32>
    %615 = tpu.matmul %613, %614, %cst_269 {dimension_numbers = #tpu.dot_dimension_numbers<[1], [0], [0], [1], [0, 0, 1, 1], [], []>} : vector<1x32xf32>, vector<32x10xf32>, vector<1x10xf32> -> vector<1x10xf32>
    %c0_270 = arith.constant 0 : index
    %c0_271 = arith.constant 0 : index
    %616 = vector.load %arg20[%c0_270, %c0_271] : memref<1x10xf32, #tpu.memory_space<vmem>>, vector<1x10xf32>
    %617 = arith.addf %615, %616 : vector<1x10xf32>
    %c0_272 = arith.constant 0 : index
    %c0_273 = arith.constant 0 : index
    %618 = vector.load %arg21[%c0_272, %c0_273] : memref<2x10xf32, #tpu.memory_space<vmem>>, vector<1x10xf32>
    tpu.vector_store %arg21[%c0_272, %c0_273], %617 {strides = array<i32>} : memref<2x10xf32, #tpu.memory_space<vmem>>, vector<1x10xf32>,
    %619 = vector.extract_strided_slice %590 {offsets = [24, 0], sizes = [1, 32], strides = [1, 1]} : vector<48x32xf32> to vector<1x32xf32>
    %c0_274 = arith.constant 0 : index
    %c0_275 = arith.constant 0 : index
    %620 = vector.load %arg17[%c0_274, %c0_275] : memref<1x32xf32, #tpu.memory_space<vmem>>, vector<1x32xf32>
    %c0_276 = arith.constant 0 : index
    %c0_277 = arith.constant 0 : index
    %621 = vector.load %arg18[%c0_276, %c0_277] : memref<1x32xf32, #tpu.memory_space<vmem>>, vector<1x32xf32>
    %cst_278 = arith.constant dense<0.000000e+00> : vector<1xf32>
    %622 = vector.multi_reduction <add>, %619, %cst_278 [1] : vector<1x32xf32> to vector<1xf32>
    %623 = vector.shape_cast %622 : vector<1xf32> to vector<1x1xf32>
    %cst_279 = arith.constant 3.200000e+01 : f32
    %624 = vector.broadcast %cst_279 : f32 to vector<1x1xf32>
    %625 = arith.divf %623, %624 : vector<1x1xf32>
    %626 = vector.broadcast %625 : vector<1x1xf32> to vector<1x32xf32>
    %627 = arith.subf %619, %626 : vector<1x32xf32>
    %628 = arith.mulf %627, %627 : vector<1x32xf32>
    %cst_280 = arith.constant dense<0.000000e+00> : vector<1xf32>
    %629 = vector.multi_reduction <add>, %628, %cst_280 [1] : vector<1x32xf32> to vector<1xf32>
    %630 = vector.shape_cast %629 : vector<1xf32> to vector<1x1xf32>
    %cst_281 = arith.constant 3.200000e+01 : f32
    %631 = vector.broadcast %cst_281 : f32 to vector<1x1xf32>
    %632 = arith.divf %630, %631 : vector<1x1xf32>
    %633 = vector.broadcast %625 : vector<1x1xf32> to vector<1x32xf32>
    %634 = arith.subf %619, %633 : vector<1x32xf32>
    %cst_282 = arith.constant 9.99999974E-6 : f32
    %635 = vector.broadcast %cst_282 : f32 to vector<1x1xf32>
    %636 = arith.addf %632, %635 : vector<1x1xf32>
    %637 = math.rsqrt %636 : vector<1x1xf32>
    %638 = vector.broadcast %637 : vector<1x1xf32> to vector<1x32xf32>
    %639 = arith.mulf %634, %638 : vector<1x32xf32>
    %640 = arith.mulf %639, %620 : vector<1x32xf32>
    %641 = arith.addf %640, %621 : vector<1x32xf32>
    %c0_283 = arith.constant 0 : index
    %c0_284 = arith.constant 0 : index
    %642 = vector.load %arg19[%c0_283, %c0_284] : memref<32x10xf32, #tpu.memory_space<vmem>>, vector<32x10xf32>
    %cst_285 = arith.constant dense<0.000000e+00> : vector<1x10xf32>
    %643 = tpu.matmul %641, %642, %cst_285 {dimension_numbers = #tpu.dot_dimension_numbers<[1], [0], [0], [1], [0, 0, 1, 1], [], []>} : vector<1x32xf32>, vector<32x10xf32>, vector<1x10xf32> -> vector<1x10xf32>
    %c0_286 = arith.constant 0 : index
    %c0_287 = arith.constant 0 : index
    %644 = vector.load %arg20[%c0_286, %c0_287] : memref<1x10xf32, #tpu.memory_space<vmem>>, vector<1x10xf32>
    %645 = arith.addf %643, %644 : vector<1x10xf32>
    %c1_288 = arith.constant 1 : index
    %c0_289 = arith.constant 0 : index
    %646 = vector.load %arg21[%c1_288, %c0_289] : memref<2x10xf32, #tpu.memory_space<vmem>>, vector<1x10xf32>
    tpu.vector_store %arg21[%c1_288, %c0_289], %645 {strides = array<i32>} : memref<2x10xf32, #tpu.memory_space<vmem>>, vector<1x10xf32>,
    return
  }
  func.func @transform_0(%arg0: i32) -> (i32, i32) {
    %c0_i32 = arith.constant 0 : i32
    %c0_i32_0 = arith.constant 0 : i32
    %c0_i32_1 = arith.constant 0 : i32
    return %c0_i32, %c0_i32_0 : i32, i32
  }
  func.func @transform_1(%arg0: i32) -> (i32, i32) {
    %c0_i32 = arith.constant 0 : i32
    %c0_i32_0 = arith.constant 0 : i32
    %c0_i32_1 = arith.constant 0 : i32
    return %c0_i32, %c0_i32_0 : i32, i32
  }
  func.func @transform_2(%arg0: i32) -> (i32, i32) {
    %c0_i32 = arith.constant 0 : i32
    %c0_i32_0 = arith.constant 0 : i32
    %c0_i32_1 = arith.constant 0 : i32
    return %c0_i32, %c0_i32_0 : i32, i32
  }
  func.func @transform_3(%arg0: i32) -> (i32, i32) {
    %c0_i32 = arith.constant 0 : i32
    %c0_i32_0 = arith.constant 0 : i32
    %c0_i32_1 = arith.constant 0 : i32
    return %c0_i32, %c0_i32_0 : i32, i32
  }
  func.func @transform_4(%arg0: i32) -> (i32, i32) {
    %c0_i32 = arith.constant 0 : i32
    %c0_i32_0 = arith.constant 0 : i32
    %c0_i32_1 = arith.constant 0 : i32
    return %c0_i32, %c0_i32_0 : i32, i32
  }
  func.func @transform_5(%arg0: i32) -> (i32, i32, i32) {
    %c0_i32 = arith.constant 0 : i32
    %c0_i32_0 = arith.constant 0 : i32
    %c0_i32_1 = arith.constant 0 : i32
    %c0_i32_2 = arith.constant 0 : i32
    return %c0_i32, %c0_i32_0, %c0_i32_1 : i32, i32, i32
  }
  func.func @transform_6(%arg0: i32) -> (i32, i32, i32) {
    %c0_i32 = arith.constant 0 : i32
    %c0_i32_0 = arith.constant 0 : i32
    %c0_i32_1 = arith.constant 0 : i32
    %c0_i32_2 = arith.constant 0 : i32
    return %c0_i32, %c0_i32_0, %c0_i32_1 : i32, i32, i32
  }
  func.func @transform_7(%arg0: i32) -> (i32, i32, i32) {
    %c0_i32 = arith.constant 0 : i32
    %c0_i32_0 = arith.constant 0 : i32
    %c0_i32_1 = arith.constant 0 : i32
    %c0_i32_2 = arith.constant 0 : i32
    return %c0_i32, %c0_i32_0, %c0_i32_1 : i32, i32, i32
  }
  func.func @transform_8(%arg0: i32) -> (i32, i32, i32) {
    %c0_i32 = arith.constant 0 : i32
    %c0_i32_0 = arith.constant 0 : i32
    %c0_i32_1 = arith.constant 0 : i32
    %c0_i32_2 = arith.constant 0 : i32
    return %c0_i32, %c0_i32_0, %c0_i32_1 : i32, i32, i32
  }
  func.func @transform_9(%arg0: i32) -> (i32, i32, i32) {
    %c0_i32 = arith.constant 0 : i32
    %c0_i32_0 = arith.constant 0 : i32
    %c0_i32_1 = arith.constant 0 : i32
    %c0_i32_2 = arith.constant 0 : i32
    return %c0_i32, %c0_i32_0, %c0_i32_1 : i32, i32, i32
  }
  func.func @transform_10(%arg0: i32) -> (i32, i32, i32) {
    %c0_i32 = arith.constant 0 : i32
    %c0_i32_0 = arith.constant 0 : i32
    %c0_i32_1 = arith.constant 0 : i32
    %c0_i32_2 = arith.constant 0 : i32
    return %c0_i32, %c0_i32_0, %c0_i32_1 : i32, i32, i32
  }
  func.func @transform_11(%arg0: i32) -> (i32, i32, i32) {
    %c0_i32 = arith.constant 0 : i32
    %c0_i32_0 = arith.constant 0 : i32
    %c0_i32_1 = arith.constant 0 : i32
    %c0_i32_2 = arith.constant 0 : i32
    return %c0_i32, %c0_i32_0, %c0_i32_1 : i32, i32, i32
  }
  func.func @transform_12(%arg0: i32) -> (i32, i32, i32) {
    %c0_i32 = arith.constant 0 : i32
    %c0_i32_0 = arith.constant 0 : i32
    %c0_i32_1 = arith.constant 0 : i32
    %c0_i32_2 = arith.constant 0 : i32
    return %c0_i32, %c0_i32_0, %c0_i32_1 : i32, i32, i32
  }
  func.func @transform_13(%arg0: i32) -> (i32, i32, i32) {
    %c0_i32 = arith.constant 0 : i32
    %c0_i32_0 = arith.constant 0 : i32
    %c0_i32_1 = arith.constant 0 : i32
    %c0_i32_2 = arith.constant 0 : i32
    return %c0_i32, %c0_i32_0, %c0_i32_1 : i32, i32, i32
  }
  func.func @transform_14(%arg0: i32) -> (i32, i32, i32) {
    %c0_i32 = arith.constant 0 : i32
    %c0_i32_0 = arith.constant 0 : i32
    %c0_i32_1 = arith.constant 0 : i32
    %c0_i32_2 = arith.constant 0 : i32
    return %c0_i32, %c0_i32_0, %c0_i32_1 : i32, i32, i32
  }
  func.func @transform_15(%arg0: i32) -> (i32, i32, i32) {
    %c0_i32 = arith.constant 0 : i32
    %c0_i32_0 = arith.constant 0 : i32
    %c0_i32_1 = arith.constant 0 : i32
    %c0_i32_2 = arith.constant 0 : i32
    return %c0_i32, %c0_i32_0, %c0_i32_1 : i32, i32, i32
  }
  func.func @transform_16(%arg0: i32) -> (i32, i32) {
    %c0_i32 = arith.constant 0 : i32
    %c0_i32_0 = arith.constant 0 : i32
    %c0_i32_1 = arith.constant 0 : i32
    return %c0_i32, %c0_i32_0 : i32, i32
  }
  func.func @transform_17(%arg0: i32) -> (i32, i32) {
    %c0_i32 = arith.constant 0 : i32
    %c0_i32_0 = arith.constant 0 : i32
    %c0_i32_1 = arith.constant 0 : i32
    return %c0_i32, %c0_i32_0 : i32, i32
  }
  func.func @transform_18(%arg0: i32) -> (i32, i32) {
    %c0_i32 = arith.constant 0 : i32
    %c0_i32_0 = arith.constant 0 : i32
    %c0_i32_1 = arith.constant 0 : i32
    return %c0_i32, %c0_i32_0 : i32, i32
  }
  func.func @transform_19(%arg0: i32) -> (i32, i32) {
    %c0_i32 = arith.constant 0 : i32
    %c0_i32_0 = arith.constant 0 : i32
    %c0_i32_1 = arith.constant 0 : i32
    return %c0_i32, %c0_i32_0 : i32, i32
  }
  func.func @transform_20(%arg0: i32) -> (i32, i32) {
    %c0_i32 = arith.constant 0 : i32
    %c0_i32_0 = arith.constant 0 : i32
    %c0_i32_1 = arith.constant 0 : i32
    return %c0_i32, %c0_i32_0 : i32, i32
  }
}

</mosaic_0001>

<llo_original>
// kernel: vit_forward.1
$region0: #{vit_forward.1}
  #allocation0 [shape = 'u32[]', space=smem, size = 0x4, offset = 0x4, fixed_abs, tag = 'smem constant byte address 0x4 - core index']
  #allocation1 [shape = 'u32[72,128]{1,0:T(1,128)}', space=vmem, size = 0x9000, scoped, tag = 'internal scratch']
  #allocation2 [shape = 'f32[48,32]{1,0:T(8,128)}', space=vmem, size = 0x6000, scoped, tag = 'scratch operand']
  #allocation3 [shape = 'f32[48,32]{1,0:T(8,128)}', space=vmem, size = 0x6000, scoped, tag = 'scratch operand']
  %s0 = inlined_call_operand.vmem [shape: f32[32,48], index: 0, kind: input, shape index: {}]
  %s1 = inlined_call_operand.vmem [shape: f32[48,32], index: 1, kind: input, shape index: {}]
  %s2 = inlined_call_operand.vmem [shape: f32[1,32], index: 2, kind: input, shape index: {}]
  %s3 = inlined_call_operand.vmem [shape: f32[1,32], index: 3, kind: input, shape index: {}]
  %s4 = inlined_call_operand.vmem [shape: f32[24,32], index: 4, kind: input, shape index: {}]
  %s5 = inlined_call_operand.vmem [shape: f32[2,1,32], index: 5, kind: input, shape index: {}]
  %s6 = inlined_call_operand.vmem [shape: f32[2,1,32], index: 6, kind: input, shape index: {}]
  %s7 = inlined_call_operand.vmem [shape: f32[2,32,96], index: 7, kind: input, shape index: {}]
  %s8 = inlined_call_operand.vmem [shape: f32[2,32,32], index: 8, kind: input, shape index: {}]
  %s9 = inlined_call_operand.vmem [shape: f32[2,1,32], index: 9, kind: input, shape index: {}]
  %s10 = inlined_call_operand.vmem [shape: f32[2,1,32], index: 10, kind: input, shape index: {}]
  %s11 = inlined_call_operand.vmem [shape: f32[2,1,32], index: 11, kind: input, shape index: {}]
  %s12 = inlined_call_operand.vmem [shape: f32[2,32,128], index: 12, kind: input, shape index: {}]
  %s13 = inlined_call_operand.vmem [shape: f32[2,1,128], index: 13, kind: input, shape index: {}]
  %s14 = inlined_call_operand.vmem [shape: f32[2,128,32], index: 14, kind: input, shape index: {}]
  %s15 = inlined_call_operand.vmem [shape: f32[2,1,32], index: 15, kind: input, shape index: {}]
  %s16 = inlined_call_operand.vmem [shape: f32[1,32], index: 16, kind: input, shape index: {}]
  %s17 = inlined_call_operand.vmem [shape: f32[1,32], index: 17, kind: input, shape index: {}]
  %s18 = inlined_call_operand.vmem [shape: f32[32,10], index: 18, kind: input, shape index: {}]
  %s19 = inlined_call_operand.vmem [shape: f32[1,10], index: 19, kind: input, shape index: {}]
  %s20 = inlined_call_operand.hbm [shape: f32[2,10], index: 20, kind: output, shape index: {}]
  %s21 = sld [smem:[#allocation0]]
  $region90: #{vit_forward.1} parent=0
    _
  %s23 = ssub.s32 1, %s21
  %s24 = scalar_select 0, %s23, %s21
  $region1: #{vit_forward.1} parent=0
    #allocation4 [shape = 'u8[1024]{0}', space=vmem, size = 0x400, scoped, tag = 'output window, operand 0, single buffered']
    #allocation5 [shape = 's32[1]{0}', space=sflag, size = 0x4, scoped, tag = 'scoped memory for vit_forward.1']
    %25 = vsyncpa [#allocation5], 0
    // Predicated region
    $region2: #{vit_forward.1} parent=1 // pred_check
      _
    $region3: #{vit_forward.1} parent=1 // pred_check_branch
      %27 = sbr.rel (0) target = $region5
    $region4: #{vit_forward.1} parent=1 // pred_region
      _
    $region5: #{vit_forward.1} parent=1 // pred_fallthru
      _
    // Predicated region
    $region6: #{vit_forward.1} parent=1 // pred_check
      _
    $region7: #{vit_forward.1} parent=1 // pred_check_branch
      %29 = sbr.rel (0) target = $region9
    $region8: #{vit_forward.1} parent=1 // pred_region
      _
    $region9: #{vit_forward.1} parent=1 // pred_fallthru
      _
    // Predicated region
    $region10: #{vit_forward.1} parent=1 // pred_check
      _
    $region11: #{vit_forward.1} parent=1 // pred_check_branch
      %31 = sbr.rel (0) target = $region13
    $region12: #{vit_forward.1} parent=1 // pred_region
      _
    $region13: #{vit_forward.1} parent=1 // pred_fallthru
      _
    // Predicated region
    $region14: #{vit_forward.1} parent=1 // pred_check
      _
    $region15: #{vit_forward.1} parent=1 // pred_check_branch
      %33 = sbr.rel (0) target = $region17
    $region16: #{vit_forward.1} parent=1 // pred_region
      _
    $region17: #{vit_forward.1} parent=1 // pred_fallthru
      _
    // Predicated region
    $region18: #{vit_forward.1} parent=1 // pred_check
      _
    $region19: #{vit_forward.1} parent=1 // pred_check_branch
      %35 = sbr.rel (0) target = $region21
    $region20: #{vit_forward.1} parent=1 // pred_region
      _
    $region21: #{vit_forward.1} parent=1 // pred_fallthru
      _
    // Predicated region
    $region22: #{vit_forward.1} parent=1 // pred_check
      _
    $region23: #{vit_forward.1} parent=1 // pred_check_branch
      %37 = sbr.rel (0) target = $region25
    $region24: #{vit_forward.1} parent=1 // pred_region
      _
    $region25: #{vit_forward.1} parent=1 // pred_fallthru
      _
    // Predicated region
    $region26: #{vit_forward.1} parent=1 // pred_check
      _
    $region27: #{vit_forward.1} parent=1 // pred_check_branch
      %39 = sbr.rel (0) target = $region29
    $region28: #{vit_forward.1} parent=1 // pred_region
      _
    $region29: #{vit_forward.1} parent=1 // pred_fallthru
      _
    // Predicated region
    $region30: #{vit_forward.1} parent=1 // pred_check
      _
    $region31: #{vit_forward.1} parent=1 // pred_check_branch
      %41 = sbr.rel (0) target = $region33
    $region32: #{vit_forward.1} parent=1 // pred_region
      _
    $region33: #{vit_forward.1} parent=1 // pred_fallthru
      _
    // Predicated region
    $region34: #{vit_forward.1} parent=1 // pred_check
      _
    $region35: #{vit_forward.1} parent=1 // pred_check_branch
      %43 = sbr.rel (0) target = $region37
    $region36: #{vit_forward.1} parent=1 // pred_region
      _
    $region37: #{vit_forward.1} parent=1 // pred_fallthru
      _
    // Predicated region
    $region38: #{vit_forward.1} parent=1 // pred_check
      _
    $region39: #{vit_forward.1} parent=1 // pred_check_branch
      %45 = sbr.rel (0) target = $region41
    $region40: #{vit_forward.1} parent=1 // pred_region
      _
    $region41: #{vit_forward.1} parent=1 // pred_fallthru
      _
    // Predicated region
    $region42: #{vit_forward.1} parent=1 // pred_check
      _
    $region43: #{vit_forward.1} parent=1 // pred_check_branch
      %47 = sbr.rel (0) target = $region45
    $region44: #{vit_forward.1} parent=1 // pred_region
      _
    $region45: #{vit_forward.1} parent=1 // pred_fallthru
      _
    // Predicated region
    $region46: #{vit_forward.1} parent=1 // pred_check
      _
    $region47: #{vit_forward.1} parent=1 // pred_check_branch
      %49 = sbr.rel (0) target = $region49
    $region48: #{vit_forward.1} parent=1 // pred_region
      _
    $region49: #{vit_forward.1} parent=1 // pred_fallthru
      _
    // Predicated region
    $region50: #{vit_forward.1} parent=1 // pred_check
      _
    $region51: #{vit_forward.1} parent=1 // pred_check_branch
      %51 = sbr.rel (0) target = $region53
    $region52: #{vit_forward.1} parent=1 // pred_region
      _
    $region53: #{vit_forward.1} parent=1 // pred_fallthru
      _
    // Predicated region
    $region54: #{vit_forward.1} parent=1 // pred_check
      _
    $region55: #{vit_forward.1} parent=1 // pred_check_branch
      %53 = sbr.rel (0) target = $region57
    $region56: #{vit_forward.1} parent=1 // pred_region
      _
    $region57: #{vit_forward.1} parent=1 // pred_fallthru
      _
    // Predicated region
    $region58: #{vit_forward.1} parent=1 // pred_check
      _
    $region59: #{vit_forward.1} parent=1 // pred_check_branch
      %55 = sbr.rel (0) target = $region61
    $region60: #{vit_forward.1} parent=1 // pred_region
      _
    $region61: #{vit_forward.1} parent=1 // pred_fallthru
      _
    // Predicated region
    $region62: #{vit_forward.1} parent=1 // pred_check
      _
    $region63: #{vit_forward.1} parent=1 // pred_check_branch
      %57 = sbr.rel (0) target = $region65
    $region64: #{vit_forward.1} parent=1 // pred_region
      _
    $region65: #{vit_forward.1} parent=1 // pred_fallthru
      _
    // Predicated region
    $region66: #{vit_forward.1} parent=1 // pred_check
      _
    $region67: #{vit_forward.1} parent=1 // pred_check_branch
      %59 = sbr.rel (0) target = $region69
    $region68: #{vit_forward.1} parent=1 // pred_region
      _
    $region69: #{vit_forward.1} parent=1 // pred_fallthru
      _
    // Predicated region
    $region70: #{vit_forward.1} parent=1 // pred_check
      _
    $region71: #{vit_forward.1} parent=1 // pred_check_branch
      %61 = sbr.rel (0) target = $region73
    $region72: #{vit_forward.1} parent=1 // pred_region
      _
    $region73: #{vit_forward.1} parent=1 // pred_fallthru
      _
    // Predicated region
    $region74: #{vit_forward.1} parent=1 // pred_check
      _
    $region75: #{vit_forward.1} parent=1 // pred_check_branch
      %63 = sbr.rel (0) target = $region77
    $region76: #{vit_forward.1} parent=1 // pred_region
      _
    $region77: #{vit_forward.1} parent=1 // pred_fallthru
      _
    // Predicated region
    $region78: #{vit_forward.1} parent=1 // pred_check
      _
    $region79: #{vit_forward.1} parent=1 // pred_check_branch
      %65 = sbr.rel (0) target = $region81
    $region80: #{vit_forward.1} parent=1 // pred_region
      _
    $region81: #{vit_forward.1} parent=1 // pred_fallthru
      _
    %v66 = vld [vmem:[%s0] sm:$0xff]
    %v67 = vld [vmem:[%s0 + $0x8] sm:$0xff]
    %v68 = vld [vmem:[%s0 + $0x10] sm:$0xff]
    %v69 = vld [vmem:[%s0 + $0x18] sm:$0xff]
    %v70 = vld [vmem:[%s1] sm:$0xff]
    %v71 = vld [vmem:[%s1 + $0x8] sm:$0xff]
    %v72 = vld [vmem:[%s1 + $0x10] sm:$0xff]
    %v73 = vld [vmem:[%s1 + $0x18] sm:$0xff]
    %v74 = vld [vmem:[%s1 + $0x20] sm:$0xff]
    %v75 = vld [vmem:[%s1 + $0x28] sm:$0xff]
    %v76 = vld [vmem:[%s2] sm:$0x1]
    %v78 = vperm.slane %v76, 0
    %vm80 = vcmask 392192
    %v82 = vsel %vm80, %v66, 0
    %v85 = vsel %vm80, %v67, 0
    %v88 = vsel %vm80, %v68, 0
    %v91 = vsel %vm80, %v69, 0
    %93 = vmatpush.msra.mxu0 0.0
    %94 = vmatpush.msra.mxu0 0.0
    %95 = vmatpush.msra.mxu0 0.0
    %96 = vmatpush.msra.mxu0 0.0
    %97 = vmatpush.msra.mxu0 0.0
    %98 = vmatpush.msra.mxu0 0.0
    %99 = vmatpush.msra.mxu0 0.0
    %100 = vmatpush.msra.mxu0 0.0
    %101 = vmatpush.msra.mxu0 0.0
    %102 = vmatpush.msra.mxu0 0.0
    %103 = vmatpush.msra.mxu0 %v75
    %104 = vmatpush.msra.mxu0 %v74
    %105 = vmatpush.msra.mxu0 %v73
    %106 = vmatpush.msra.mxu0 %v72
    %107 = vmatpush.msra.mxu0 %v71
    %108 = vmatpush.msra.mxu0 %v70
    %109 = vmatmul.f32.gmra.mxu0 %v82
    %v110 = vpop.f32.mrf.mxu0
    %v111 = vadd.f32 %v78, %v110
    %112 = vmatmul.f32.gmra.mxu0 %v85
    %v113 = vpop.f32.mrf.mxu0
    %v114 = vadd.f32 %v78, %v113
    %115 = vmatmul.f32.gmra.mxu0 %v88
    %v116 = vpop.f32.mrf.mxu0
    %v117 = vadd.f32 %v78, %v116
    %118 = vmatmul.f32.gmra.mxu0 %v91
    %v119 = vpop.f32.mrf.mxu0
    %v120 = vadd.f32 %v78, %v119
    %121 = vdwg.mxu0
    %v122 = vld [vmem:[%s3] sm:$0x1]
    %v123 = vld [vmem:[%s4] sm:$0xff]
    %v124 = vld [vmem:[%s4 + $0x8] sm:$0xff]
    %v125 = vld [vmem:[%s4 + $0x10] sm:$0xff]
    %v126 = vadd.f32 %v122, %v123
    %vm127 = vcmask 253952
    %128 = vst.msk [vmem:[#allocation2] sm:$0x1] %vm127, %v126
    %vm132 = vcmask 1046528
    %v133 = vrot.slane %v123, 1
    %v134 = vrot.slane %v124, 1
    %v135 = vsel %vm132, %v133, %v134
    %v136 = vrot.slane %v125, 1
    %v137 = vsel %vm132, %v134, %v136
    %v140 = vadd.f32 %v111, %v135
    %v141 = vadd.f32 %v114, %v137
    %vm142 = vcmask 261120
    %143 = vst.msk [vmem:[#allocation2 + $0x1] sm:$0xff] %vm142, %v140
    %144 = vst.msk [vmem:[#allocation2 + $0x9] sm:$0xff] %vm142, %v141
    %vm145 = vcmask 261121
    %146 = vst.msk [vmem:[#allocation2 + $0x10] sm:$0xfe] %vm145, %v125
    %147 = vst.msk [vmem:[#allocation2 + $0x18] sm:$0x1] %vm127, %v126
    %v148 = vadd.f32 %v117, %v135
    %v149 = vadd.f32 %v120, %v137
    %150 = vst.msk [vmem:[#allocation2 + $0x19] sm:$0xff] %vm142, %v148
    %151 = vst.msk [vmem:[#allocation2 + $0x21] sm:$0xff] %vm142, %v149
    %152 = vst.msk [vmem:[#allocation2 + $0x28] sm:$0xfe] %vm145, %v125
    %v153 = vld [vmem:[#allocation2] sm:$0xff]
    %v154 = vld [vmem:[#allocation2 + $0x8] sm:$0xff]
    %v155 = vld [vmem:[#allocation2 + $0x10] sm:$0xff]
    %v156 = vld [vmem:[#allocation2 + $0x18] sm:$0xff]
    %v157 = vld [vmem:[#allocation2 + $0x20] sm:$0xff]
    %v158 = vld [vmem:[#allocation2 + $0x28] sm:$0xff]
    %v159 = vlaneseq
    %v160 = vand.u32 %v159, 127
    %vm161 = vcmp.lt.s32.totalorder %v160, 17
    %v162 = vsel %vm161, 0.0, -1e+30
    %v163 = vld [vmem:[%s5] sm:$0x1]
    %v164 = vld [vmem:[%s6] sm:$0x1]
    %v165 = vsel %vm142, %v153, 0.0
    %166 = vadd.xlane.f32.xlu0 %v165
    %v167 = vpop.xlane.xlu0 %166
    %v168 = vsel %vm142, %v154, 0.0
    %169 = vadd.xlane.f32.xlu0 %v168
    %v170 = vpop.xlane.xlu0 %169
    %v171 = vsel %vm142, %v155, 0.0
    %172 = vadd.xlane.f32.xlu0 %v171
    %v173 = vpop.xlane.xlu0 %172
    %v174 = vsel %vm142, %v156, 0.0
    %175 = vadd.xlane.f32.xlu0 %v174
    %v176 = vpop.xlane.xlu0 %175
    %v177 = vsel %vm142, %v157, 0.0
    %178 = vadd.xlane.f32.xlu0 %v177
    %v179 = vpop.xlane.xlu0 %178
    %v180 = vsel %vm142, %v158, 0.0
    %181 = vadd.xlane.f32.xlu0 %v180
    %v182 = vpop.xlane.xlu0 %181
    %v183 = vrcp.pop 32.0
    %v184 = vmul.f32 32.0, %v183
    %v185 = vsub.f32 1.0, %v184
    %v186 = vmul.f32 %v183, %v185
    %v187 = vadd.f32 %v183, %v186
    %vm188 = vweird.f32 %v183
    %v189 = vsel %vm188, %v183, %v187
    %v190 = vmul.f32 %v167, %v189
    %v191 = vmul.f32 %v170, %v189
    %v192 = vmul.f32 %v173, %v189
    %v193 = vmul.f32 %v176, %v189
    %v194 = vmul.f32 %v179, %v189
    %v195 = vmul.f32 %v182, %v189
    %v196 = vsub.f32 %v153, %v190
    %v197 = vsub.f32 %v154, %v191
    %v198 = vsub.f32 %v155, %v192
    %v199 = vsub.f32 %v156, %v193
    %v200 = vsub.f32 %v157, %v194
    %v201 = vsub.f32 %v158, %v195
    %v202 = vmul.f32 %v196, %v196
    %v203 = vmul.f32 %v197, %v197
    %v204 = vmul.f32 %v198, %v198
    %v205 = vmul.f32 %v199, %v199
    %v206 = vmul.f32 %v200, %v200
    %v207 = vmul.f32 %v201, %v201
    %v208 = vsel %vm142, %v202, 0.0
    %209 = vadd.xlane.f32.xlu0 %v208
    %v210 = vpop.xlane.xlu0 %209
    %v211 = vsel %vm142, %v203, 0.0
    %212 = vadd.xlane.f32.xlu0 %v211
    %v213 = vpop.xlane.xlu0 %212
    %v214 = vsel %vm142, %v204, 0.0
    %215 = vadd.xlane.f32.xlu0 %v214
    %v216 = vpop.xlane.xlu0 %215
    %v217 = vsel %vm142, %v205, 0.0
    %218 = vadd.xlane.f32.xlu0 %v217
    %v219 = vpop.xlane.xlu0 %218
    %v220 = vsel %vm142, %v206, 0.0
    %221 = vadd.xlane.f32.xlu0 %v220
    %v222 = vpop.xlane.xlu0 %221
    %v223 = vsel %vm142, %v207, 0.0
    %224 = vadd.xlane.f32.xlu0 %v223
    %v225 = vpop.xlane.xlu0 %224
    %v226 = vmul.f32 %v210, %v189
    %v227 = vmul.f32 %v213, %v189
    %v228 = vmul.f32 %v216, %v189
    %v229 = vmul.f32 %v219, %v189
    %v230 = vmul.f32 %v222, %v189
    %v231 = vmul.f32 %v225, %v189
    %v232 = vadd.f32 %v226, 1e-05
    %v233 = vadd.f32 %v227, 1e-05
    %v234 = vadd.f32 %v228, 1e-05
    %v235 = vadd.f32 %v229, 1e-05
    %v236 = vadd.f32 %v230, 1e-05
    %v237 = vadd.f32 %v231, 1e-05
    %v238 = vrsqrt.pop %v232
    %v239 = vmul.f32 %v238, %v232
    %v240 = vmul.f32 %v239, %v238
    %v241 = vmul.f32 0.5, %v240
    %v242 = vsub.f32 1.5, %v241
    %v243 = vmul.f32 %v238, %v242
    %vm244 = vweird.f32 %v232
    %vm245 = vweird.f32 %v238
    %vm246 = vmor %vm244, %vm245
    %v247 = vsel %vm246, %v238, %v243
    %v248 = vrsqrt.pop %v233
    %v249 = vmul.f32 %v248, %v233
    %v250 = vmul.f32 %v249, %v248
    %v251 = vmul.f32 0.5, %v250
    %v252 = vsub.f32 1.5, %v251
    %v253 = vmul.f32 %v248, %v252
    %vm254 = vweird.f32 %v233
    %vm255 = vweird.f32 %v248
    %vm256 = vmor %vm254, %vm255
    %v257 = vsel %vm256, %v248, %v253
    %v258 = vrsqrt.pop %v234
    %v259 = vmul.f32 %v258, %v234
    %v260 = vmul.f32 %v259, %v258
    %v261 = vmul.f32 0.5, %v260
    %v262 = vsub.f32 1.5, %v261
    %v263 = vmul.f32 %v258, %v262
    %vm264 = vweird.f32 %v234
    %vm265 = vweird.f32 %v258
    %vm266 = vmor %vm264, %vm265
    %v267 = vsel %vm266, %v258, %v263
    %v268 = vrsqrt.pop %v235
    %v269 = vmul.f32 %v268, %v235
    %v270 = vmul.f32 %v269, %v268
    %v271 = vmul.f32 0.5, %v270
    %v272 = vsub.f32 1.5, %v271
    %v273 = vmul.f32 %v268, %v272
    %vm274 = vweird.f32 %v235
    %vm275 = vweird.f32 %v268
    %vm276 = vmor %vm274, %vm275
    %v277 = vsel %vm276, %v268, %v273
    %v278 = vrsqrt.pop %v236
    %v279 = vmul.f32 %v278, %v236
    %v280 = vmul.f32 %v279, %v278
    %v281 = vmul.f32 0.5, %v280
    %v282 = vsub.f32 1.5, %v281
    %v283 = vmul.f32 %v278, %v282
    %vm284 = vweird.f32 %v236
    %vm285 = vweird.f32 %v278
    %vm286 = vmor %vm284, %vm285
    %v287 = vsel %vm286, %v278, %v283
    %v288 = vrsqrt.pop %v237
    %v289 = vmul.f32 %v288, %v237
    %v290 = vmul.f32 %v289, %v288
    %v291 = vmul.f32 0.5, %v290
    %v292 = vsub.f32 1.5, %v291
    %v293 = vmul.f32 %v288, %v292
    %vm294 = vweird.f32 %v237
    %vm295 = vweird.f32 %v288
    %vm296 = vmor %vm294, %vm295
    %v297 = vsel %vm296, %v288, %v293
    %v298 = vmul.f32 %v196, %v247
    %v299 = vmul.f32 %v197, %v257
    %v300 = vmul.f32 %v198, %v267
    %v301 = vmul.f32 %v199, %v277
    %v302 = vmul.f32 %v200, %v287
    %v303 = vmul.f32 %v201, %v297
    %v305 = vperm.slane %v163, 0
    %v307 = vmul.f32 %v298, %v305
    %v308 = vmul.f32 %v299, %v305
    %v309 = vmul.f32 %v300, %v305
    %v310 = vmul.f32 %v301, %v305
    %v311 = vmul.f32 %v302, %v305
    %v312 = vmul.f32 %v303, %v305
    %v314 = vperm.slane %v164, 0
    %v316 = vadd.f32 %v307, %v314
    %v317 = vadd.f32 %v308, %v314
    %v318 = vadd.f32 %v309, %v314
    %v319 = vadd.f32 %v310, %v314
    %v320 = vadd.f32 %v311, %v314
    %v321 = vadd.f32 %v312, %v314
    %v322 = vld [vmem:[%s7] sm:$0xff]
    %v323 = vld [vmem:[%s7 + $0x8] sm:$0xff]
    %v324 = vld [vmem:[%s7 + $0x10] sm:$0xff]
    %v325 = vld [vmem:[%s7 + $0x18] sm:$0xff]
    %v327 = vsel %vm142, %v316, 0
    %v330 = vsel %vm142, %v317, 0
    %v333 = vsel %vm142, %v318, 0
    %v336 = vsel %vm142, %v319, 0
    %v339 = vsel %vm142, %v320, 0
    %v342 = vsel %vm142, %v321, 0
    %344 = vmatpush.msra.mxu0 0.0
    %345 = vmatpush.msra.mxu0 0.0
    %346 = vmatpush.msra.mxu0 0.0
    %347 = vmatpush.msra.mxu0 0.0
    %348 = vmatpush.msra.mxu0 0.0
    %349 = vmatpush.msra.mxu0 0.0
    %350 = vmatpush.msra.mxu0 0.0
    %351 = vmatpush.msra.mxu0 0.0
    %352 = vmatpush.msra.mxu0 0.0
    %353 = vmatpush.msra.mxu0 0.0
    %354 = vmatpush.msra.mxu0 0.0
    %355 = vmatpush.msra.mxu0 0.0
    %356 = vmatpush.msra.mxu0 %v325
    %357 = vmatpush.msra.mxu0 %v324
    %358 = vmatpush.msra.mxu0 %v323
    %359 = vmatpush.msra.mxu0 %v322
    %360 = vmatmul.f32.gmra.mxu0 %v327
    %v361 = vpop.f32.mrf.mxu0
    %v362 = vadd.f32 0.0, %v361
    %363 = vmatmul.f32.gmra.mxu0 %v330
    %v364 = vpop.f32.mrf.mxu0
    %v365 = vadd.f32 0.0, %v364
    %366 = vmatmul.f32.gmra.mxu0 %v333
    %v367 = vpop.f32.mrf.mxu0
    %v368 = vadd.f32 0.0, %v367
    %369 = vmatmul.f32.gmra.mxu0 %v336
    %v370 = vpop.f32.mrf.mxu0
    %v371 = vadd.f32 0.0, %v370
    %372 = vmatmul.f32.gmra.mxu0 %v339
    %v373 = vpop.f32.mrf.mxu0
    %v374 = vadd.f32 0.0, %v373
    %375 = vmatmul.f32.gmra.mxu0 %v342
    %v376 = vpop.f32.mrf.mxu0
    %v377 = vadd.f32 0.0, %v376
    %378 = vdwg.mxu0
    %382 = vrot.lane.b32.xlu0 %v362, 96
    %v383 = vpop.permute.xlu0 %382
    %384 = vrot.lane.b32.xlu0 %v365, 96
    %v385 = vpop.permute.xlu0 %384
    %386 = vrot.lane.b32.xlu0 %v368, 96
    %v387 = vpop.permute.xlu0 %386
    %vm388 = vcmask 64512
    %v389 = vsel %vm388, %v362, 0
    %v391 = vsel %vm388, %v365, 0
    %v393 = vsel %vm388, %v368, 0
    %v395 = vsel %vm388, %v383, 0
    %v397 = vsel %vm388, %v385, 0
    %v399 = vsel %vm388, %v387, 0
    %401 = vmatpush.xpose.msra.mxu0 0.0
    %402 = vmatpush.xpose.msra.mxu0 0.0
    %403 = vmatpush.xpose.msra.mxu0 0.0
    %404 = vmatpush.xpose.msra.mxu0 0.0
    %405 = vmatpush.xpose.msra.mxu0 0.0
    %406 = vmatpush.xpose.msra.mxu0 0.0
    %407 = vmatpush.xpose.msra.mxu0 0.0
    %408 = vmatpush.xpose.msra.mxu0 0.0
    %409 = vmatpush.xpose.msra.mxu0 0.0
    %410 = vmatpush.xpose.msra.mxu0 0.0
    %411 = vmatpush.xpose.msra.mxu0 0.0
    %412 = vmatpush.xpose.msra.mxu0 0.0
    %413 = vmatpush.xpose.msra.mxu0 0.0
    %414 = vmatpush.xpose.msra.mxu0 %v399
    %415 = vmatpush.xpose.msra.mxu0 %v397
    %416 = vmatpush.xpose.msra.mxu0 %v395
    %417 = vmatmul.f32.gmra.mxu0 %v389
    %v418 = vpop.f32.mrf.mxu0
    %v419 = vadd.f32 0.0, %v418
    %420 = vmatmul.f32.gmra.mxu0 %v391
    %v421 = vpop.f32.mrf.mxu0
    %v422 = vadd.f32 0.0, %v421
    %423 = vmatmul.f32.gmra.mxu0 %v393
    %v424 = vpop.f32.mrf.mxu0
    %v425 = vadd.f32 0.0, %v424
    %426 = vdwg.mxu0
    %v427 = vmul.f32 %v419, 0.35355338
    %v428 = vmul.f32 %v422, 0.35355338
    %v429 = vmul.f32 %v425, 0.35355338
    %v430 = vadd.f32 %v427, %v162
    %v431 = vadd.f32 %v428, %v162
    %v432 = vadd.f32 %v429, %v162
    %vm433 = vcmask 195584
    %v434 = vsel %vm433, %v430, -inf
    %435 = vmax.xlane.f32.xlu0 %v434
    %v436 = vpop.xlane.xlu0 %435
    %v437 = vsel %vm433, %v431, -inf
    %438 = vmax.xlane.f32.xlu0 %v437
    %v439 = vpop.xlane.xlu0 %438
    %v440 = vsel %vm433, %v432, -inf
    %441 = vmax.xlane.f32.xlu0 %v440
    %v442 = vpop.xlane.xlu0 %441
    %v443 = vsub.f32 %v430, %v436
    %v444 = vsub.f32 %v431, %v439
    %v445 = vsub.f32 %v432, %v442
    %v446 = vmul.f32 %v443, 1.442695
    %v447 = vpow.pop %v446
    %v448 = vmul.f32 %v444, 1.442695
    %v449 = vpow.pop %v448
    %v450 = vmul.f32 %v445, 1.442695
    %v451 = vpow.pop %v450
    %v452 = vsel %vm433, %v447, 0.0
    %453 = vadd.xlane.f32.xlu0 %v452
    %v454 = vpop.xlane.xlu0 %453
    %v455 = vsel %vm433, %v449, 0.0
    %456 = vadd.xlane.f32.xlu0 %v455
    %v457 = vpop.xlane.xlu0 %456
    %v458 = vsel %vm433, %v451, 0.0
    %459 = vadd.xlane.f32.xlu0 %v458
    %v460 = vpop.xlane.xlu0 %459
    %v461 = vrcp.pop %v454
    %v462 = vrcp.pop %v457
    %v463 = vrcp.pop %v460
    %v464 = vmul.f32 %v447, %v461
    %v465 = vmul.f32 %v449, %v462
    %v466 = vmul.f32 %v451, %v463
    %467 = vrot.lane.b32.xlu0 %v362, 64
    %v468 = vpop.permute.xlu0 %467
    %469 = vrot.lane.b32.xlu0 %v365, 64
    %v470 = vpop.permute.xlu0 %469
    %471 = vrot.lane.b32.xlu0 %v368, 64
    %v472 = vpop.permute.xlu0 %471
    %v477 = vsel %vm433, %v464, 0
    %v480 = vsel %vm433, %v465, 0
    %v483 = vsel %vm433, %v466, 0
    %485 = vmatpush.msra.mxu0 0.0
    %486 = vmatpush.msra.mxu0 0.0
    %487 = vmatpush.msra.mxu0 0.0
    %488 = vmatpush.msra.mxu0 0.0
    %489 = vmatpush.msra.mxu0 0.0
    %490 = vmatpush.msra.mxu0 0.0
    %491 = vmatpush.msra.mxu0 0.0
    %492 = vmatpush.msra.mxu0 0.0
    %493 = vmatpush.msra.mxu0 0.0
    %494 = vmatpush.msra.mxu0 0.0
    %495 = vmatpush.msra.mxu0 0.0
    %496 = vmatpush.msra.mxu0 0.0
    %497 = vmatpush.msra.mxu0 0.0
    %498 = vmatpush.msra.mxu0 %v472
    %499 = vmatpush.msra.mxu0 %v470
    %500 = vmatpush.msra.mxu0 %v468
    %501 = vmatmul.f32.gmra.mxu0 %v477
    %v502 = vpop.f32.mrf.mxu0
    %v503 = vadd.f32 0.0, %v502
    %504 = vmatmul.f32.gmra.mxu0 %v480
    %v505 = vpop.f32.mrf.mxu0
    %v506 = vadd.f32 0.0, %v505
    %507 = vmatmul.f32.gmra.mxu0 %v483
    %v508 = vpop.f32.mrf.mxu0
    %v509 = vadd.f32 0.0, %v508
    %510 = vdwg.mxu0
    %511 = vst.msk [vmem:[#allocation3] sm:$0xff] %vm388, %v503
    %512 = vst.msk [vmem:[#allocation3 + $0x8] sm:$0xff] %vm388, %v506
    %513 = vst.msk [vmem:[#allocation3 + $0x10] sm:$0xff] %vm388, %v509
    %514 = vrot.lane.b32.xlu0 %v362, 120
    %v515 = vpop.permute.xlu0 %514
    %516 = vrot.lane.b32.xlu0 %v365, 120
    %v517 = vpop.permute.xlu0 %516
    %518 = vrot.lane.b32.xlu0 %v368, 120
    %v519 = vpop.permute.xlu0 %518
    %520 = vrot.lane.b32.xlu0 %v362, 88
    %v521 = vpop.permute.xlu0 %520
    %522 = vrot.lane.b32.xlu0 %v365, 88
    %v523 = vpop.permute.xlu0 %522
    %524 = vrot.lane.b32.xlu0 %v368, 88
    %v525 = vpop.permute.xlu0 %524
    %v526 = vsel %vm388, %v515, 0
    %v528 = vsel %vm388, %v517, 0
    %v530 = vsel %vm388, %v519, 0
    %v532 = vsel %vm388, %v521, 0
    %v534 = vsel %vm388, %v523, 0
    %v536 = vsel %vm388, %v525, 0
    %538 = vmatpush.xpose.msra.mxu0 0.0
    %539 = vmatpush.xpose.msra.mxu0 0.0
    %540 = vmatpush.xpose.msra.mxu0 0.0
    %541 = vmatpush.xpose.msra.mxu0 0.0
    %542 = vmatpush.xpose.msra.mxu0 0.0
    %543 = vmatpush.xpose.msra.mxu0 0.0
    %544 = vmatpush.xpose.msra.mxu0 0.0
    %545 = vmatpush.xpose.msra.mxu0 0.0
    %546 = vmatpush.xpose.msra.mxu0 0.0
    %547 = vmatpush.xpose.msra.mxu0 0.0
    %548 = vmatpush.xpose.msra.mxu0 0.0
    %549 = vmatpush.xpose.msra.mxu0 0.0
    %550 = vmatpush.xpose.msra.mxu0 0.0
    %551 = vmatpush.xpose.msra.mxu0 %v536
    %552 = vmatpush.xpose.msra.mxu0 %v534
    %553 = vmatpush.xpose.msra.mxu0 %v532
    %554 = vmatmul.f32.gmra.mxu0 %v526
    %v555 = vpop.f32.mrf.mxu0
    %v556 = vadd.f32 0.0, %v555
    %557 = vmatmul.f32.gmra.mxu0 %v528
    %v558 = vpop.f32.mrf.mxu0
    %v559 = vadd.f32 0.0, %v558
    %560 = vmatmul.f32.gmra.mxu0 %v530
    %v561 = vpop.f32.mrf.mxu0
    %v562 = vadd.f32 0.0, %v561
    %563 = vdwg.mxu0
    %v564 = vmul.f32 %v556, 0.35355338
    %v565 = vmul.f32 %v559, 0.35355338
    %v566 = vmul.f32 %v562, 0.35355338
    %v567 = vadd.f32 %v564, %v162
    %v568 = vadd.f32 %v565, %v162
    %v569 = vadd.f32 %v566, %v162
    %v570 = vsel %vm433, %v567, -inf
    %571 = vmax.xlane.f32.xlu0 %v570
    %v572 = vpop.xlane.xlu0 %571
    %v573 = vsel %vm433, %v568, -inf
    %574 = vmax.xlane.f32.xlu0 %v573
    %v575 = vpop.xlane.xlu0 %574
    %v576 = vsel %vm433, %v569, -inf
    %577 = vmax.xlane.f32.xlu0 %v576
    %v578 = vpop.xlane.xlu0 %577
    %v579 = vsub.f32 %v567, %v572
    %v580 = vsub.f32 %v568, %v575
    %v581 = vsub.f32 %v569, %v578
    %v582 = vmul.f32 %v579, 1.442695
    %v583 = vpow.pop %v582
    %v584 = vmul.f32 %v580, 1.442695
    %v585 = vpow.pop %v584
    %v586 = vmul.f32 %v581, 1.442695
    %v587 = vpow.pop %v586
    %v588 = vsel %vm433, %v583, 0.0
    %589 = vadd.xlane.f32.xlu0 %v588
    %v590 = vpop.xlane.xlu0 %589
    %v591 = vsel %vm433, %v585, 0.0
    %592 = vadd.xlane.f32.xlu0 %v591
    %v593 = vpop.xlane.xlu0 %592
    %v594 = vsel %vm433, %v587, 0.0
    %595 = vadd.xlane.f32.xlu0 %v594
    %v596 = vpop.xlane.xlu0 %595
    %v597 = vrcp.pop %v590
    %v598 = vrcp.pop %v593
    %v599 = vrcp.pop %v596
    %v600 = vmul.f32 %v583, %v597
    %v601 = vmul.f32 %v585, %v598
    %v602 = vmul.f32 %v587, %v599
    %603 = vrot.lane.b32.xlu0 %v362, 56
    %v604 = vpop.permute.xlu0 %603
    %605 = vrot.lane.b32.xlu0 %v365, 56
    %v606 = vpop.permute.xlu0 %605
    %607 = vrot.lane.b32.xlu0 %v368, 56
    %v608 = vpop.permute.xlu0 %607
    %v613 = vsel %vm433, %v600, 0
    %v616 = vsel %vm433, %v601, 0
    %v619 = vsel %vm433, %v602, 0
    %621 = vmatpush.msra.mxu0 0.0
    %622 = vmatpush.msra.mxu0 0.0
    %623 = vmatpush.msra.mxu0 0.0
    %624 = vmatpush.msra.mxu0 0.0
    %625 = vmatpush.msra.mxu0 0.0
    %626 = vmatpush.msra.mxu0 0.0
    %627 = vmatpush.msra.mxu0 0.0
    %628 = vmatpush.msra.mxu0 0.0
    %629 = vmatpush.msra.mxu0 0.0
    %630 = vmatpush.msra.mxu0 0.0
    %631 = vmatpush.msra.mxu0 0.0
    %632 = vmatpush.msra.mxu0 0.0
    %633 = vmatpush.msra.mxu0 0.0
    %634 = vmatpush.msra.mxu0 %v608
    %635 = vmatpush.msra.mxu0 %v606
    %636 = vmatpush.msra.mxu0 %v604
    %637 = vmatmul.f32.gmra.mxu0 %v613
    %v638 = vpop.f32.mrf.mxu0
    %v639 = vadd.f32 0.0, %v638
    %640 = vmatmul.f32.gmra.mxu0 %v616
    %v641 = vpop.f32.mrf.mxu0
    %v642 = vadd.f32 0.0, %v641
    %643 = vmatmul.f32.gmra.mxu0 %v619
    %v644 = vpop.f32.mrf.mxu0
    %v645 = vadd.f32 0.0, %v644
    %646 = vdwg.mxu0
    %650 = vrot.lane.b32.xlu0 %v639, 8
    %v651 = vpop.permute.xlu0 %650
    %652 = vrot.lane.b32.xlu0 %v642, 8
    %v653 = vpop.permute.xlu0 %652
    %654 = vrot.lane.b32.xlu0 %v645, 8
    %v655 = vpop.permute.xlu0 %654
    %vm659 = vcmask 130112
    %660 = vst.msk [vmem:[#allocation3] sm:$0xff] %vm659, %v651
    %661 = vst.msk [vmem:[#allocation3 + $0x8] sm:$0xff] %vm659, %v653
    %662 = vst.msk [vmem:[#allocation3 + $0x10] sm:$0xff] %vm659, %v655
    %663 = vrot.lane.b32.xlu0 %v362, 112
    %v664 = vpop.permute.xlu0 %663
    %665 = vrot.lane.b32.xlu0 %v365, 112
    %v666 = vpop.permute.xlu0 %665
    %667 = vrot.lane.b32.xlu0 %v368, 112
    %v668 = vpop.permute.xlu0 %667
    %669 = vrot.lane.b32.xlu0 %v362, 80
    %v670 = vpop.permute.xlu0 %669
    %671 = vrot.lane.b32.xlu0 %v365, 80
    %v672 = vpop.permute.xlu0 %671
    %673 = vrot.lane.b32.xlu0 %v368, 80
    %v674 = vpop.permute.xlu0 %673
    %v675 = vsel %vm388, %v664, 0
    %v677 = vsel %vm388, %v666, 0
    %v679 = vsel %vm388, %v668, 0
    %v681 = vsel %vm388, %v670, 0
    %v683 = vsel %vm388, %v672, 0
    %v685 = vsel %vm388, %v674, 0
    %687 = vmatpush.xpose.msra.mxu0 0.0
    %688 = vmatpush.xpose.msra.mxu0 0.0
    %689 = vmatpush.xpose.msra.mxu0 0.0
    %690 = vmatpush.xpose.msra.mxu0 0.0
    %691 = vmatpush.xpose.msra.mxu0 0.0
    %692 = vmatpush.xpose.msra.mxu0 0.0
    %693 = vmatpush.xpose.msra.mxu0 0.0
    %694 = vmatpush.xpose.msra.mxu0 0.0
    %695 = vmatpush.xpose.msra.mxu0 0.0
    %696 = vmatpush.xpose.msra.mxu0 0.0
    %697 = vmatpush.xpose.msra.mxu0 0.0
    %698 = vmatpush.xpose.msra.mxu0 0.0
    %699 = vmatpush.xpose.msra.mxu0 0.0
    %700 = vmatpush.xpose.msra.mxu0 %v685
    %701 = vmatpush.xpose.msra.mxu0 %v683
    %702 = vmatpush.xpose.msra.mxu0 %v681
    %703 = vmatmul.f32.gmra.mxu0 %v675
    %v704 = vpop.f32.mrf.mxu0
    %v705 = vadd.f32 0.0, %v704
    %706 = vmatmul.f32.gmra.mxu0 %v677
    %v707 = vpop.f32.mrf.mxu0
    %v708 = vadd.f32 0.0, %v707
    %709 = vmatmul.f32.gmra.mxu0 %v679
    %v710 = vpop.f32.mrf.mxu0
    %v711 = vadd.f32 0.0, %v710
    %712 = vdwg.mxu0
    %v713 = vmul.f32 %v705, 0.35355338
    %v714 = vmul.f32 %v708, 0.35355338
    %v715 = vmul.f32 %v711, 0.35355338
    %v716 = vadd.f32 %v713, %v162
    %v717 = vadd.f32 %v714, %v162
    %v718 = vadd.f32 %v715, %v162
    %v719 = vsel %vm433, %v716, -inf
    %720 = vmax.xlane.f32.xlu0 %v719
    %v721 = vpop.xlane.xlu0 %720
    %v722 = vsel %vm433, %v717, -inf
    %723 = vmax.xlane.f32.xlu0 %v722
    %v724 = vpop.xlane.xlu0 %723
    %v725 = vsel %vm433, %v718, -inf
    %726 = vmax.xlane.f32.xlu0 %v725
    %v727 = vpop.xlane.xlu0 %726
    %v728 = vsub.f32 %v716, %v721
    %v729 = vsub.f32 %v717, %v724
    %v730 = vsub.f32 %v718, %v727
    %v731 = vmul.f32 %v728, 1.442695
    %v732 = vpow.pop %v731
    %v733 = vmul.f32 %v729, 1.442695
    %v734 = vpow.pop %v733
    %v735 = vmul.f32 %v730, 1.442695
    %v736 = vpow.pop %v735
    %v737 = vsel %vm433, %v732, 0.0
    %738 = vadd.xlane.f32.xlu0 %v737
    %v739 = vpop.xlane.xlu0 %738
    %v740 = vsel %vm433, %v734, 0.0
    %741 = vadd.xlane.f32.xlu0 %v740
    %v742 = vpop.xlane.xlu0 %741
    %v743 = vsel %vm433, %v736, 0.0
    %744 = vadd.xlane.f32.xlu0 %v743
    %v745 = vpop.xlane.xlu0 %744
    %v746 = vrcp.pop %v739
    %v747 = vrcp.pop %v742
    %v748 = vrcp.pop %v745
    %v749 = vmul.f32 %v732, %v746
    %v750 = vmul.f32 %v734, %v747
    %v751 = vmul.f32 %v736, %v748
    %752 = vrot.lane.b32.xlu0 %v362, 48
    %v753 = vpop.permute.xlu0 %752
    %754 = vrot.lane.b32.xlu0 %v365, 48
    %v755 = vpop.permute.xlu0 %754
    %756 = vrot.lane.b32.xlu0 %v368, 48
    %v757 = vpop.permute.xlu0 %756
    %v762 = vsel %vm433, %v749, 0
    %v765 = vsel %vm433, %v750, 0
    %v768 = vsel %vm433, %v751, 0
    %770 = vmatpush.msra.mxu0 0.0
    %771 = vmatpush.msra.mxu0 0.0
    %772 = vmatpush.msra.mxu0 0.0
    %773 = vmatpush.msra.mxu0 0.0
    %774 = vmatpush.msra.mxu0 0.0
    %775 = vmatpush.msra.mxu0 0.0
    %776 = vmatpush.msra.mxu0 0.0
    %777 = vmatpush.msra.mxu0 0.0
    %778 = vmatpush.msra.mxu0 0.0
    %779 = vmatpush.msra.mxu0 0.0
    %780 = vmatpush.msra.mxu0 0.0
    %781 = vmatpush.msra.mxu0 0.0
    %782 = vmatpush.msra.mxu0 0.0
    %783 = vmatpush.msra.mxu0 %v757
    %784 = vmatpush.msra.mxu0 %v755
    %785 = vmatpush.msra.mxu0 %v753
    %786 = vmatmul.f32.gmra.mxu0 %v762
    %v787 = vpop.f32.mrf.mxu0
    %v788 = vadd.f32 0.0, %v787
    %789 = vmatmul.f32.gmra.mxu0 %v765
    %v790 = vpop.f32.mrf.mxu0
    %v791 = vadd.f32 0.0, %v790
    %792 = vmatmul.f32.gmra.mxu0 %v768
    %v793 = vpop.f32.mrf.mxu0
    %v794 = vadd.f32 0.0, %v793
    %795 = vdwg.mxu0
    %799 = vrot.lane.b32.xlu0 %v788, 16
    %v800 = vpop.permute.xlu0 %799
    %801 = vrot.lane.b32.xlu0 %v791, 16
    %v802 = vpop.permute.xlu0 %801
    %803 = vrot.lane.b32.xlu0 %v794, 16
    %v804 = vpop.permute.xlu0 %803
    %vm808 = vcmask 195712
    %809 = vst.msk [vmem:[#allocation3] sm:$0xff] %vm808, %v800
    %810 = vst.msk [vmem:[#allocation3 + $0x8] sm:$0xff] %vm808, %v802
    %811 = vst.msk [vmem:[#allocation3 + $0x10] sm:$0xff] %vm808, %v804
    %812 = vrot.lane.b32.xlu0 %v362, 104
    %v813 = vpop.permute.xlu0 %812
    %814 = vrot.lane.b32.xlu0 %v365, 104
    %v815 = vpop.permute.xlu0 %814
    %816 = vrot.lane.b32.xlu0 %v368, 104
    %v817 = vpop.permute.xlu0 %816
    %818 = vrot.lane.b32.xlu0 %v362, 72
    %v819 = vpop.permute.xlu0 %818
    %820 = vrot.lane.b32.xlu0 %v365, 72
    %v821 = vpop.permute.xlu0 %820
    %822 = vrot.lane.b32.xlu0 %v368, 72
    %v823 = vpop.permute.xlu0 %822
    %v824 = vsel %vm388, %v813, 0
    %v826 = vsel %vm388, %v815, 0
    %v828 = vsel %vm388, %v817, 0
    %v830 = vsel %vm388, %v819, 0
    %v832 = vsel %vm388, %v821, 0
    %v834 = vsel %vm388, %v823, 0
    %836 = vmatpush.xpose.msra.mxu0 0.0
    %837 = vmatpush.xpose.msra.mxu0 0.0
    %838 = vmatpush.xpose.msra.mxu0 0.0
    %839 = vmatpush.xpose.msra.mxu0 0.0
    %840 = vmatpush.xpose.msra.mxu0 0.0
    %841 = vmatpush.xpose.msra.mxu0 0.0
    %842 = vmatpush.xpose.msra.mxu0 0.0
    %843 = vmatpush.xpose.msra.mxu0 0.0
    %844 = vmatpush.xpose.msra.mxu0 0.0
    %845 = vmatpush.xpose.msra.mxu0 0.0
    %846 = vmatpush.xpose.msra.mxu0 0.0
    %847 = vmatpush.xpose.msra.mxu0 0.0
    %848 = vmatpush.xpose.msra.mxu0 0.0
    %849 = vmatpush.xpose.msra.mxu0 %v834
    %850 = vmatpush.xpose.msra.mxu0 %v832
    %851 = vmatpush.xpose.msra.mxu0 %v830
    %852 = vmatmul.f32.gmra.mxu0 %v824
    %v853 = vpop.f32.mrf.mxu0
    %v854 = vadd.f32 0.0, %v853
    %855 = vmatmul.f32.gmra.mxu0 %v826
    %v856 = vpop.f32.mrf.mxu0
    %v857 = vadd.f32 0.0, %v856
    %858 = vmatmul.f32.gmra.mxu0 %v828
    %v859 = vpop.f32.mrf.mxu0
    %v860 = vadd.f32 0.0, %v859
    %861 = vdwg.mxu0
    %v862 = vmul.f32 %v854, 0.35355338
    %v863 = vmul.f32 %v857, 0.35355338
    %v864 = vmul.f32 %v860, 0.35355338
    %v865 = vadd.f32 %v862, %v162
    %v866 = vadd.f32 %v863, %v162
    %v867 = vadd.f32 %v864, %v162
    %v868 = vsel %vm433, %v865, -inf
    %869 = vmax.xlane.f32.xlu0 %v868
    %v870 = vpop.xlane.xlu0 %869
    %v871 = vsel %vm433, %v866, -inf
    %872 = vmax.xlane.f32.xlu0 %v871
    %v873 = vpop.xlane.xlu0 %872
    %v874 = vsel %vm433, %v867, -inf
    %875 = vmax.xlane.f32.xlu0 %v874
    %v876 = vpop.xlane.xlu0 %875
    %v877 = vsub.f32 %v865, %v870
    %v878 = vsub.f32 %v866, %v873
    %v879 = vsub.f32 %v867, %v876
    %v880 = vmul.f32 %v877, 1.442695
    %v881 = vpow.pop %v880
    %v882 = vmul.f32 %v878, 1.442695
    %v883 = vpow.pop %v882
    %v884 = vmul.f32 %v879, 1.442695
    %v885 = vpow.pop %v884
    %v886 = vsel %vm433, %v881, 0.0
    %887 = vadd.xlane.f32.xlu0 %v886
    %v888 = vpop.xlane.xlu0 %887
    %v889 = vsel %vm433, %v883, 0.0
    %890 = vadd.xlane.f32.xlu0 %v889
    %v891 = vpop.xlane.xlu0 %890
    %v892 = vsel %vm433, %v885, 0.0
    %893 = vadd.xlane.f32.xlu0 %v892
    %v894 = vpop.xlane.xlu0 %893
    %v895 = vrcp.pop %v888
    %v896 = vrcp.pop %v891
    %v897 = vrcp.pop %v894
    %v898 = vmul.f32 %v881, %v895
    %v899 = vmul.f32 %v883, %v896
    %v900 = vmul.f32 %v885, %v897
    %901 = vrot.lane.b32.xlu0 %v362, 40
    %v902 = vpop.permute.xlu0 %901
    %903 = vrot.lane.b32.xlu0 %v365, 40
    %v904 = vpop.permute.xlu0 %903
    %905 = vrot.lane.b32.xlu0 %v368, 40
    %v906 = vpop.permute.xlu0 %905
    %v911 = vsel %vm433, %v898, 0
    %v914 = vsel %vm433, %v899, 0
    %v917 = vsel %vm433, %v900, 0
    %919 = vmatpush.msra.mxu0 0.0
    %920 = vmatpush.msra.mxu0 0.0
    %921 = vmatpush.msra.mxu0 0.0
    %922 = vmatpush.msra.mxu0 0.0
    %923 = vmatpush.msra.mxu0 0.0
    %924 = vmatpush.msra.mxu0 0.0
    %925 = vmatpush.msra.mxu0 0.0
    %926 = vmatpush.msra.mxu0 0.0
    %927 = vmatpush.msra.mxu0 0.0
    %928 = vmatpush.msra.mxu0 0.0
    %929 = vmatpush.msra.mxu0 0.0
    %930 = vmatpush.msra.mxu0 0.0
    %931 = vmatpush.msra.mxu0 0.0
    %932 = vmatpush.msra.mxu0 %v906
    %933 = vmatpush.msra.mxu0 %v904
    %934 = vmatpush.msra.mxu0 %v902
    %935 = vmatmul.f32.gmra.mxu0 %v911
    %v936 = vpop.f32.mrf.mxu0
    %v937 = vadd.f32 0.0, %v936
    %938 = vmatmul.f32.gmra.mxu0 %v914
    %v939 = vpop.f32.mrf.mxu0
    %v940 = vadd.f32 0.0, %v939
    %941 = vmatmul.f32.gmra.mxu0 %v917
    %v942 = vpop.f32.mrf.mxu0
    %v943 = vadd.f32 0.0, %v942
    %944 = vdwg.mxu0
    %948 = vrot.lane.b32.xlu0 %v937, 24
    %v949 = vpop.permute.xlu0 %948
    %950 = vrot.lane.b32.xlu0 %v940, 24
    %v951 = vpop.permute.xlu0 %950
    %952 = vrot.lane.b32.xlu0 %v943, 24
    %v953 = vpop.permute.xlu0 %952
    %vm957 = vcmask 261312
    %958 = vst.msk [vmem:[#allocation3] sm:$0xff] %vm957, %v949
    %959 = vst.msk [vmem:[#allocation3 + $0x8] sm:$0xff] %vm957, %v951
    %960 = vst.msk [vmem:[#allocation3 + $0x10] sm:$0xff] %vm957, %v953
    %964 = vrot.lane.b32.xlu0 %v371, 96
    %v965 = vpop.permute.xlu0 %964
    %966 = vrot.lane.b32.xlu0 %v374, 96
    %v967 = vpop.permute.xlu0 %966
    %968 = vrot.lane.b32.xlu0 %v377, 96
    %v969 = vpop.permute.xlu0 %968
    %v970 = vsel %vm388, %v371, 0
    %v972 = vsel %vm388, %v374, 0
    %v974 = vsel %vm388, %v377, 0
    %v976 = vsel %vm388, %v965, 0
    %v978 = vsel %vm388, %v967, 0
    %v980 = vsel %vm388, %v969, 0
    %982 = vmatpush.xpose.msra.mxu0 0.0
    %983 = vmatpush.xpose.msra.mxu0 0.0
    %984 = vmatpush.xpose.msra.mxu0 0.0
    %985 = vmatpush.xpose.msra.mxu0 0.0
    %986 = vmatpush.xpose.msra.mxu0 0.0
    %987 = vmatpush.xpose.msra.mxu0 0.0
    %988 = vmatpush.xpose.msra.mxu0 0.0
    %989 = vmatpush.xpose.msra.mxu0 0.0
    %990 = vmatpush.xpose.msra.mxu0 0.0
    %991 = vmatpush.xpose.msra.mxu0 0.0
    %992 = vmatpush.xpose.msra.mxu0 0.0
    %993 = vmatpush.xpose.msra.mxu0 0.0
    %994 = vmatpush.xpose.msra.mxu0 0.0
    %995 = vmatpush.xpose.msra.mxu0 %v980
    %996 = vmatpush.xpose.msra.mxu0 %v978
    %997 = vmatpush.xpose.msra.mxu0 %v976
    %998 = vmatmul.f32.gmra.mxu0 %v970
    %v999 = vpop.f32.mrf.mxu0
    %v1000 = vadd.f32 0.0, %v999
    %1001 = vmatmul.f32.gmra.mxu0 %v972
    %v1002 = vpop.f32.mrf.mxu0
    %v1003 = vadd.f32 0.0, %v1002
    %1004 = vmatmul.f32.gmra.mxu0 %v974
    %v1005 = vpop.f32.mrf.mxu0
    %v1006 = vadd.f32 0.0, %v1005
    %1007 = vdwg.mxu0
    %v1008 = vmul.f32 %v1000, 0.35355338
    %v1009 = vmul.f32 %v1003, 0.35355338
    %v1010 = vmul.f32 %v1006, 0.35355338
    %v1011 = vadd.f32 %v1008, %v162
    %v1012 = vadd.f32 %v1009, %v162
    %v1013 = vadd.f32 %v1010, %v162
    %v1014 = vsel %vm433, %v1011, -inf
    %1015 = vmax.xlane.f32.xlu0 %v1014
    %v1016 = vpop.xlane.xlu0 %1015
    %v1017 = vsel %vm433, %v1012, -inf
    %1018 = vmax.xlane.f32.xlu0 %v1017
    %v1019 = vpop.xlane.xlu0 %1018
    %v1020 = vsel %vm433, %v1013, -inf
    %1021 = vmax.xlane.f32.xlu0 %v1020
    %v1022 = vpop.xlane.xlu0 %1021
    %v1023 = vsub.f32 %v1011, %v1016
    %v1024 = vsub.f32 %v1012, %v1019
    %v1025 = vsub.f32 %v1013, %v1022
    %v1026 = vmul.f32 %v1023, 1.442695
    %v1027 = vpow.pop %v1026
    %v1028 = vmul.f32 %v1024, 1.442695
    %v1029 = vpow.pop %v1028
    %v1030 = vmul.f32 %v1025, 1.442695
    %v1031 = vpow.pop %v1030
    %v1032 = vsel %vm433, %v1027, 0.0
    %1033 = vadd.xlane.f32.xlu0 %v1032
    %v1034 = vpop.xlane.xlu0 %1033
    %v1035 = vsel %vm433, %v1029, 0.0
    %1036 = vadd.xlane.f32.xlu0 %v1035
    %v1037 = vpop.xlane.xlu0 %1036
    %v1038 = vsel %vm433, %v1031, 0.0
    %1039 = vadd.xlane.f32.xlu0 %v1038
    %v1040 = vpop.xlane.xlu0 %1039
    %v1041 = vrcp.pop %v1034
    %v1042 = vrcp.pop %v1037
    %v1043 = vrcp.pop %v1040
    %v1044 = vmul.f32 %v1027, %v1041
    %v1045 = vmul.f32 %v1029, %v1042
    %v1046 = vmul.f32 %v1031, %v1043
    %1047 = vrot.lane.b32.xlu0 %v371, 64
    %v1048 = vpop.permute.xlu0 %1047
    %1049 = vrot.lane.b32.xlu0 %v374, 64
    %v1050 = vpop.permute.xlu0 %1049
    %1051 = vrot.lane.b32.xlu0 %v377, 64
    %v1052 = vpop.permute.xlu0 %1051
    %v1057 = vsel %vm433, %v1044, 0
    %v1060 = vsel %vm433, %v1045, 0
    %v1063 = vsel %vm433, %v1046, 0
    %1065 = vmatpush.msra.mxu0 0.0
    %1066 = vmatpush.msra.mxu0 0.0
    %1067 = vmatpush.msra.mxu0 0.0
    %1068 = vmatpush.msra.mxu0 0.0
    %1069 = vmatpush.msra.mxu0 0.0
    %1070 = vmatpush.msra.mxu0 0.0
    %1071 = vmatpush.msra.mxu0 0.0
    %1072 = vmatpush.msra.mxu0 0.0
    %1073 = vmatpush.msra.mxu0 0.0
    %1074 = vmatpush.msra.mxu0 0.0
    %1075 = vmatpush.msra.mxu0 0.0
    %1076 = vmatpush.msra.mxu0 0.0
    %1077 = vmatpush.msra.mxu0 0.0
    %1078 = vmatpush.msra.mxu0 %v1052
    %1079 = vmatpush.msra.mxu0 %v1050
    %1080 = vmatpush.msra.mxu0 %v1048
    %1081 = vmatmul.f32.gmra.mxu0 %v1057
    %v1082 = vpop.f32.mrf.mxu0
    %v1083 = vadd.f32 0.0, %v1082
    %1084 = vmatmul.f32.gmra.mxu0 %v1060
    %v1085 = vpop.f32.mrf.mxu0
    %v1086 = vadd.f32 0.0, %v1085
    %1087 = vmatmul.f32.gmra.mxu0 %v1063
    %v1088 = vpop.f32.mrf.mxu0
    %v1089 = vadd.f32 0.0, %v1088
    %1090 = vdwg.mxu0
    %1091 = vst.msk [vmem:[#allocation3 + $0x18] sm:$0xff] %vm388, %v1083
    %1092 = vst.msk [vmem:[#allocation3 + $0x20] sm:$0xff] %vm388, %v1086
    %1093 = vst.msk [vmem:[#allocation3 + $0x28] sm:$0xff] %vm388, %v1089
    %1094 = vrot.lane.b32.xlu0 %v371, 120
    %v1095 = vpop.permute.xlu0 %1094
    %1096 = vrot.lane.b32.xlu0 %v374, 120
    %v1097 = vpop.permute.xlu0 %1096
    %1098 = vrot.lane.b32.xlu0 %v377, 120
    %v1099 = vpop.permute.xlu0 %1098
    %1100 = vrot.lane.b32.xlu0 %v371, 88
    %v1101 = vpop.permute.xlu0 %1100
    %1102 = vrot.lane.b32.xlu0 %v374, 88
    %v1103 = vpop.permute.xlu0 %1102
    %1104 = vrot.lane.b32.xlu0 %v377, 88
    %v1105 = vpop.permute.xlu0 %1104
    %v1106 = vsel %vm388, %v1095, 0
    %v1108 = vsel %vm388, %v1097, 0
    %v1110 = vsel %vm388, %v1099, 0
    %v1112 = vsel %vm388, %v1101, 0
    %v1114 = vsel %vm388, %v1103, 0
    %v1116 = vsel %vm388, %v1105, 0
    %1118 = vmatpush.xpose.msra.mxu0 0.0
    %1119 = vmatpush.xpose.msra.mxu0 0.0
    %1120 = vmatpush.xpose.msra.mxu0 0.0
    %1121 = vmatpush.xpose.msra.mxu0 0.0
    %1122 = vmatpush.xpose.msra.mxu0 0.0
    %1123 = vmatpush.xpose.msra.mxu0 0.0
    %1124 = vmatpush.xpose.msra.mxu0 0.0
    %1125 = vmatpush.xpose.msra.mxu0 0.0
    %1126 = vmatpush.xpose.msra.mxu0 0.0
    %1127 = vmatpush.xpose.msra.mxu0 0.0
    %1128 = vmatpush.xpose.msra.mxu0 0.0
    %1129 = vmatpush.xpose.msra.mxu0 0.0
    %1130 = vmatpush.xpose.msra.mxu0 0.0
    %1131 = vmatpush.xpose.msra.mxu0 %v1116
    %1132 = vmatpush.xpose.msra.mxu0 %v1114
    %1133 = vmatpush.xpose.msra.mxu0 %v1112
    %1134 = vmatmul.f32.gmra.mxu0 %v1106
    %v1135 = vpop.f32.mrf.mxu0
    %v1136 = vadd.f32 0.0, %v1135
    %1137 = vmatmul.f32.gmra.mxu0 %v1108
    %v1138 = vpop.f32.mrf.mxu0
    %v1139 = vadd.f32 0.0, %v1138
    %1140 = vmatmul.f32.gmra.mxu0 %v1110
    %v1141 = vpop.f32.mrf.mxu0
    %v1142 = vadd.f32 0.0, %v1141
    %1143 = vdwg.mxu0
    %v1144 = vmul.f32 %v1136, 0.35355338
    %v1145 = vmul.f32 %v1139, 0.35355338
    %v1146 = vmul.f32 %v1142, 0.35355338
    %v1147 = vadd.f32 %v1144, %v162
    %v1148 = vadd.f32 %v1145, %v162
    %v1149 = vadd.f32 %v1146, %v162
    %v1150 = vsel %vm433, %v1147, -inf
    %1151 = vmax.xlane.f32.xlu0 %v1150
    %v1152 = vpop.xlane.xlu0 %1151
    %v1153 = vsel %vm433, %v1148, -inf
    %1154 = vmax.xlane.f32.xlu0 %v1153
    %v1155 = vpop.xlane.xlu0 %1154
    %v1156 = vsel %vm433, %v1149, -inf
    %1157 = vmax.xlane.f32.xlu0 %v1156
    %v1158 = vpop.xlane.xlu0 %1157
    %v1159 = vsub.f32 %v1147, %v1152
    %v1160 = vsub.f32 %v1148, %v1155
    %v1161 = vsub.f32 %v1149, %v1158
    %v1162 = vmul.f32 %v1159, 1.442695
    %v1163 = vpow.pop %v1162
    %v1164 = vmul.f32 %v1160, 1.442695
    %v1165 = vpow.pop %v1164
    %v1166 = vmul.f32 %v1161, 1.442695
    %v1167 = vpow.pop %v1166
    %v1168 = vsel %vm433, %v1163, 0.0
    %1169 = vadd.xlane.f32.xlu0 %v1168
    %v1170 = vpop.xlane.xlu0 %1169
    %v1171 = vsel %vm433, %v1165, 0.0
    %1172 = vadd.xlane.f32.xlu0 %v1171
    %v1173 = vpop.xlane.xlu0 %1172
    %v1174 = vsel %vm433, %v1167, 0.0
    %1175 = vadd.xlane.f32.xlu0 %v1174
    %v1176 = vpop.xlane.xlu0 %1175
    %v1177 = vrcp.pop %v1170
    %v1178 = vrcp.pop %v1173
    %v1179 = vrcp.pop %v1176
    %v1180 = vmul.f32 %v1163, %v1177
    %v1181 = vmul.f32 %v1165, %v1178
    %v1182 = vmul.f32 %v1167, %v1179
    %1183 = vrot.lane.b32.xlu0 %v371, 56
    %v1184 = vpop.permute.xlu0 %1183
    %1185 = vrot.lane.b32.xlu0 %v374, 56
    %v1186 = vpop.permute.xlu0 %1185
    %1187 = vrot.lane.b32.xlu0 %v377, 56
    %v1188 = vpop.permute.xlu0 %1187
    %v1193 = vsel %vm433, %v1180, 0
    %v1196 = vsel %vm433, %v1181, 0
    %v1199 = vsel %vm433, %v1182, 0
    %1201 = vmatpush.msra.mxu0 0.0
    %1202 = vmatpush.msra.mxu0 0.0
    %1203 = vmatpush.msra.mxu0 0.0
    %1204 = vmatpush.msra.mxu0 0.0
    %1205 = vmatpush.msra.mxu0 0.0
    %1206 = vmatpush.msra.mxu0 0.0
    %1207 = vmatpush.msra.mxu0 0.0
    %1208 = vmatpush.msra.mxu0 0.0
    %1209 = vmatpush.msra.mxu0 0.0
    %1210 = vmatpush.msra.mxu0 0.0
    %1211 = vmatpush.msra.mxu0 0.0
    %1212 = vmatpush.msra.mxu0 0.0
    %1213 = vmatpush.msra.mxu0 0.0
    %1214 = vmatpush.msra.mxu0 %v1188
    %1215 = vmatpush.msra.mxu0 %v1186
    %1216 = vmatpush.msra.mxu0 %v1184
    %1217 = vmatmul.f32.gmra.mxu0 %v1193
    %v1218 = vpop.f32.mrf.mxu0
    %v1219 = vadd.f32 0.0, %v1218
    %1220 = vmatmul.f32.gmra.mxu0 %v1196
    %v1221 = vpop.f32.mrf.mxu0
    %v1222 = vadd.f32 0.0, %v1221
    %1223 = vmatmul.f32.gmra.mxu0 %v1199
    %v1224 = vpop.f32.mrf.mxu0
    %v1225 = vadd.f32 0.0, %v1224
    %1226 = vdwg.mxu0
    %1230 = vrot.lane.b32.xlu0 %v1219, 8
    %v1231 = vpop.permute.xlu0 %1230
    %1232 = vrot.lane.b32.xlu0 %v1222, 8
    %v1233 = vpop.permute.xlu0 %1232
    %1234 = vrot.lane.b32.xlu0 %v1225, 8
    %v1235 = vpop.permute.xlu0 %1234
    %1239 = vst.msk [vmem:[#allocation3 + $0x18] sm:$0xff] %vm659, %v1231
    %1240 = vst.msk [vmem:[#allocation3 + $0x20] sm:$0xff] %vm659, %v1233
    %1241 = vst.msk [vmem:[#allocation3 + $0x28] sm:$0xff] %vm659, %v1235
    %1242 = vrot.lane.b32.xlu0 %v371, 112
    %v1243 = vpop.permute.xlu0 %1242
    %1244 = vrot.lane.b32.xlu0 %v374, 112
    %v1245 = vpop.permute.xlu0 %1244
    %1246 = vrot.lane.b32.xlu0 %v377, 112
    %v1247 = vpop.permute.xlu0 %1246
    %1248 = vrot.lane.b32.xlu0 %v371, 80
    %v1249 = vpop.permute.xlu0 %1248
    %1250 = vrot.lane.b32.xlu0 %v374, 80
    %v1251 = vpop.permute.xlu0 %1250
    %1252 = vrot.lane.b32.xlu0 %v377, 80
    %v1253 = vpop.permute.xlu0 %1252
    %v1254 = vsel %vm388, %v1243, 0
    %v1256 = vsel %vm388, %v1245, 0
    %v1258 = vsel %vm388, %v1247, 0
    %v1260 = vsel %vm388, %v1249, 0
    %v1262 = vsel %vm388, %v1251, 0
    %v1264 = vsel %vm388, %v1253, 0
    %1266 = vmatpush.xpose.msra.mxu0 0.0
    %1267 = vmatpush.xpose.msra.mxu0 0.0
    %1268 = vmatpush.xpose.msra.mxu0 0.0
    %1269 = vmatpush.xpose.msra.mxu0 0.0
    %1270 = vmatpush.xpose.msra.mxu0 0.0
    %1271 = vmatpush.xpose.msra.mxu0 0.0
    %1272 = vmatpush.xpose.msra.mxu0 0.0
    %1273 = vmatpush.xpose.msra.mxu0 0.0
    %1274 = vmatpush.xpose.msra.mxu0 0.0
    %1275 = vmatpush.xpose.msra.mxu0 0.0
    %1276 = vmatpush.xpose.msra.mxu0 0.0
    %1277 = vmatpush.xpose.msra.mxu0 0.0
    %1278 = vmatpush.xpose.msra.mxu0 0.0
    %1279 = vmatpush.xpose.msra.mxu0 %v1264
    %1280 = vmatpush.xpose.msra.mxu0 %v1262
    %1281 = vmatpush.xpose.msra.mxu0 %v1260
    %1282 = vmatmul.f32.gmra.mxu0 %v1254
    %v1283 = vpop.f32.mrf.mxu0
    %v1284 = vadd.f32 0.0, %v1283
    %1285 = vmatmul.f32.gmra.mxu0 %v1256
    %v1286 = vpop.f32.mrf.mxu0
    %v1287 = vadd.f32 0.0, %v1286
    %1288 = vmatmul.f32.gmra.mxu0 %v1258
    %v1289 = vpop.f32.mrf.mxu0
    %v1290 = vadd.f32 0.0, %v1289
    %1291 = vdwg.mxu0
    %v1292 = vmul.f32 %v1284, 0.35355338
    %v1293 = vmul.f32 %v1287, 0.35355338
    %v1294 = vmul.f32 %v1290, 0.35355338
    %v1295 = vadd.f32 %v1292, %v162
    %v1296 = vadd.f32 %v1293, %v162
    %v1297 = vadd.f32 %v1294, %v162
    %v1298 = vsel %vm433, %v1295, -inf
    %1299 = vmax.xlane.f32.xlu0 %v1298
    %v1300 = vpop.xlane.xlu0 %1299
    %v1301 = vsel %vm433, %v1296, -inf
    %1302 = vmax.xlane.f32.xlu0 %v1301
    %v1303 = vpop.xlane.xlu0 %1302
    %v1304 = vsel %vm433, %v1297, -inf
    %1305 = vmax.xlane.f32.xlu0 %v1304
    %v1306 = vpop.xlane.xlu0 %1305
    %v1307 = vsub.f32 %v1295, %v1300
    %v1308 = vsub.f32 %v1296, %v1303
    %v1309 = vsub.f32 %v1297, %v1306
    %v1310 = vmul.f32 %v1307, 1.442695
    %v1311 = vpow.pop %v1310
    %v1312 = vmul.f32 %v1308, 1.442695
    %v1313 = vpow.pop %v1312
    %v1314 = vmul.f32 %v1309, 1.442695
    %v1315 = vpow.pop %v1314
    %v1316 = vsel %vm433, %v1311, 0.0
    %1317 = vadd.xlane.f32.xlu0 %v1316
    %v1318 = vpop.xlane.xlu0 %1317
    %v1319 = vsel %vm433, %v1313, 0.0
    %1320 = vadd.xlane.f32.xlu0 %v1319
    %v1321 = vpop.xlane.xlu0 %1320
    %v1322 = vsel %vm433, %v1315, 0.0
    %1323 = vadd.xlane.f32.xlu0 %v1322
    %v1324 = vpop.xlane.xlu0 %1323
    %v1325 = vrcp.pop %v1318
    %v1326 = vrcp.pop %v1321
    %v1327 = vrcp.pop %v1324
    %v1328 = vmul.f32 %v1311, %v1325
    %v1329 = vmul.f32 %v1313, %v1326
    %v1330 = vmul.f32 %v1315, %v1327
    %1331 = vrot.lane.b32.xlu0 %v371, 48
    %v1332 = vpop.permute.xlu0 %1331
    %1333 = vrot.lane.b32.xlu0 %v374, 48
    %v1334 = vpop.permute.xlu0 %1333
    %1335 = vrot.lane.b32.xlu0 %v377, 48
    %v1336 = vpop.permute.xlu0 %1335
    %v1341 = vsel %vm433, %v1328, 0
    %v1344 = vsel %vm433, %v1329, 0
    %v1347 = vsel %vm433, %v1330, 0
    %1349 = vmatpush.msra.mxu0 0.0
    %1350 = vmatpush.msra.mxu0 0.0
    %1351 = vmatpush.msra.mxu0 0.0
    %1352 = vmatpush.msra.mxu0 0.0
    %1353 = vmatpush.msra.mxu0 0.0
    %1354 = vmatpush.msra.mxu0 0.0
    %1355 = vmatpush.msra.mxu0 0.0
    %1356 = vmatpush.msra.mxu0 0.0
    %1357 = vmatpush.msra.mxu0 0.0
    %1358 = vmatpush.msra.mxu0 0.0
    %1359 = vmatpush.msra.mxu0 0.0
    %1360 = vmatpush.msra.mxu0 0.0
    %1361 = vmatpush.msra.mxu0 0.0
    %1362 = vmatpush.msra.mxu0 %v1336
    %1363 = vmatpush.msra.mxu0 %v1334
    %1364 = vmatpush.msra.mxu0 %v1332
    %1365 = vmatmul.f32.gmra.mxu0 %v1341
    %v1366 = vpop.f32.mrf.mxu0
    %v1367 = vadd.f32 0.0, %v1366
    %1368 = vmatmul.f32.gmra.mxu0 %v1344
    %v1369 = vpop.f32.mrf.mxu0
    %v1370 = vadd.f32 0.0, %v1369
    %1371 = vmatmul.f32.gmra.mxu0 %v1347
    %v1372 = vpop.f32.mrf.mxu0
    %v1373 = vadd.f32 0.0, %v1372
    %1374 = vdwg.mxu0
    %1378 = vrot.lane.b32.xlu0 %v1367, 16
    %v1379 = vpop.permute.xlu0 %1378
    %1380 = vrot.lane.b32.xlu0 %v1370, 16
    %v1381 = vpop.permute.xlu0 %1380
    %1382 = vrot.lane.b32.xlu0 %v1373, 16
    %v1383 = vpop.permute.xlu0 %1382
    %1387 = vst.msk [vmem:[#allocation3 + $0x18] sm:$0xff] %vm808, %v1379
    %1388 = vst.msk [vmem:[#allocation3 + $0x20] sm:$0xff] %vm808, %v1381
    %1389 = vst.msk [vmem:[#allocation3 + $0x28] sm:$0xff] %vm808, %v1383
    %1390 = vrot.lane.b32.xlu0 %v371, 104
    %v1391 = vpop.permute.xlu0 %1390
    %1392 = vrot.lane.b32.xlu0 %v374, 104
    %v1393 = vpop.permute.xlu0 %1392
    %1394 = vrot.lane.b32.xlu0 %v377, 104
    %v1395 = vpop.permute.xlu0 %1394
    %1396 = vrot.lane.b32.xlu0 %v371, 72
    %v1397 = vpop.permute.xlu0 %1396
    %1398 = vrot.lane.b32.xlu0 %v374, 72
    %v1399 = vpop.permute.xlu0 %1398
    %1400 = vrot.lane.b32.xlu0 %v377, 72
    %v1401 = vpop.permute.xlu0 %1400
    %v1402 = vsel %vm388, %v1391, 0
    %v1404 = vsel %vm388, %v1393, 0
    %v1406 = vsel %vm388, %v1395, 0
    %v1408 = vsel %vm388, %v1397, 0
    %v1410 = vsel %vm388, %v1399, 0
    %v1412 = vsel %vm388, %v1401, 0
    %1414 = vmatpush.xpose.msra.mxu0 0.0
    %1415 = vmatpush.xpose.msra.mxu0 0.0
    %1416 = vmatpush.xpose.msra.mxu0 0.0
    %1417 = vmatpush.xpose.msra.mxu0 0.0
    %1418 = vmatpush.xpose.msra.mxu0 0.0
    %1419 = vmatpush.xpose.msra.mxu0 0.0
    %1420 = vmatpush.xpose.msra.mxu0 0.0
    %1421 = vmatpush.xpose.msra.mxu0 0.0
    %1422 = vmatpush.xpose.msra.mxu0 0.0
    %1423 = vmatpush.xpose.msra.mxu0 0.0
    %1424 = vmatpush.xpose.msra.mxu0 0.0
    %1425 = vmatpush.xpose.msra.mxu0 0.0
    %1426 = vmatpush.xpose.msra.mxu0 0.0
    %1427 = vmatpush.xpose.msra.mxu0 %v1412
    %1428 = vmatpush.xpose.msra.mxu0 %v1410
    %1429 = vmatpush.xpose.msra.mxu0 %v1408
    %1430 = vmatmul.f32.gmra.mxu0 %v1402
    %v1431 = vpop.f32.mrf.mxu0
    %v1432 = vadd.f32 0.0, %v1431
    %1433 = vmatmul.f32.gmra.mxu0 %v1404
    %v1434 = vpop.f32.mrf.mxu0
    %v1435 = vadd.f32 0.0, %v1434
    %1436 = vmatmul.f32.gmra.mxu0 %v1406
    %v1437 = vpop.f32.mrf.mxu0
    %v1438 = vadd.f32 0.0, %v1437
    %1439 = vdwg.mxu0
    %v1440 = vmul.f32 %v1432, 0.35355338
    %v1441 = vmul.f32 %v1435, 0.35355338
    %v1442 = vmul.f32 %v1438, 0.35355338
    %v1443 = vadd.f32 %v1440, %v162
    %v1444 = vadd.f32 %v1441, %v162
    %v1445 = vadd.f32 %v1442, %v162
    %v1446 = vsel %vm433, %v1443, -inf
    %1447 = vmax.xlane.f32.xlu0 %v1446
    %v1448 = vpop.xlane.xlu0 %1447
    %v1449 = vsel %vm433, %v1444, -inf
    %1450 = vmax.xlane.f32.xlu0 %v1449
    %v1451 = vpop.xlane.xlu0 %1450
    %v1452 = vsel %vm433, %v1445, -inf
    %1453 = vmax.xlane.f32.xlu0 %v1452
    %v1454 = vpop.xlane.xlu0 %1453
    %v1455 = vsub.f32 %v1443, %v1448
    %v1456 = vsub.f32 %v1444, %v1451
    %v1457 = vsub.f32 %v1445, %v1454
    %v1458 = vmul.f32 %v1455, 1.442695
    %v1459 = vpow.pop %v1458
    %v1460 = vmul.f32 %v1456, 1.442695
    %v1461 = vpow.pop %v1460
    %v1462 = vmul.f32 %v1457, 1.442695
    %v1463 = vpow.pop %v1462
    %v1464 = vsel %vm433, %v1459, 0.0
    %1465 = vadd.xlane.f32.xlu0 %v1464
    %v1466 = vpop.xlane.xlu0 %1465
    %v1467 = vsel %vm433, %v1461, 0.0
    %1468 = vadd.xlane.f32.xlu0 %v1467
    %v1469 = vpop.xlane.xlu0 %1468
    %v1470 = vsel %vm433, %v1463, 0.0
    %1471 = vadd.xlane.f32.xlu0 %v1470
    %v1472 = vpop.xlane.xlu0 %1471
    %v1473 = vrcp.pop %v1466
    %v1474 = vrcp.pop %v1469
    %v1475 = vrcp.pop %v1472
    %v1476 = vmul.f32 %v1459, %v1473
    %v1477 = vmul.f32 %v1461, %v1474
    %v1478 = vmul.f32 %v1463, %v1475
    %1479 = vrot.lane.b32.xlu0 %v371, 40
    %v1480 = vpop.permute.xlu0 %1479
    %1481 = vrot.lane.b32.xlu0 %v374, 40
    %v1482 = vpop.permute.xlu0 %1481
    %1483 = vrot.lane.b32.xlu0 %v377, 40
    %v1484 = vpop.permute.xlu0 %1483
    %v1489 = vsel %vm433, %v1476, 0
    %v1492 = vsel %vm433, %v1477, 0
    %v1495 = vsel %vm433, %v1478, 0
    %1497 = vmatpush.msra.mxu0 0.0
    %1498 = vmatpush.msra.mxu0 0.0
    %1499 = vmatpush.msra.mxu0 0.0
    %1500 = vmatpush.msra.mxu0 0.0
    %1501 = vmatpush.msra.mxu0 0.0
    %1502 = vmatpush.msra.mxu0 0.0
    %1503 = vmatpush.msra.mxu0 0.0
    %1504 = vmatpush.msra.mxu0 0.0
    %1505 = vmatpush.msra.mxu0 0.0
    %1506 = vmatpush.msra.mxu0 0.0
    %1507 = vmatpush.msra.mxu0 0.0
    %1508 = vmatpush.msra.mxu0 0.0
    %1509 = vmatpush.msra.mxu0 0.0
    %1510 = vmatpush.msra.mxu0 %v1484
    %1511 = vmatpush.msra.mxu0 %v1482
    %1512 = vmatpush.msra.mxu0 %v1480
    %1513 = vmatmul.f32.gmra.mxu0 %v1489
    %v1514 = vpop.f32.mrf.mxu0
    %v1515 = vadd.f32 0.0, %v1514
    %1516 = vmatmul.f32.gmra.mxu0 %v1492
    %v1517 = vpop.f32.mrf.mxu0
    %v1518 = vadd.f32 0.0, %v1517
    %1519 = vmatmul.f32.gmra.mxu0 %v1495
    %v1520 = vpop.f32.mrf.mxu0
    %v1521 = vadd.f32 0.0, %v1520
    %1522 = vdwg.mxu0
    %1526 = vrot.lane.b32.xlu0 %v1515, 24
    %v1527 = vpop.permute.xlu0 %1526
    %1528 = vrot.lane.b32.xlu0 %v1518, 24
    %v1529 = vpop.permute.xlu0 %1528
    %1530 = vrot.lane.b32.xlu0 %v1521, 24
    %v1531 = vpop.permute.xlu0 %1530
    %1535 = vst.msk [vmem:[#allocation3 + $0x18] sm:$0xff] %vm957, %v1527
    %1536 = vst.msk [vmem:[#allocation3 + $0x20] sm:$0xff] %vm957, %v1529
    %1537 = vst.msk [vmem:[#allocation3 + $0x28] sm:$0xff] %vm957, %v1531
    %v1538 = vld [vmem:[#allocation3] sm:$0xff]
    %v1539 = vld [vmem:[#allocation3 + $0x8] sm:$0xff]
    %v1540 = vld [vmem:[#allocation3 + $0x10] sm:$0xff]
    %v1541 = vld [vmem:[#allocation3 + $0x18] sm:$0xff]
    %v1542 = vld [vmem:[#allocation3 + $0x20] sm:$0xff]
    %v1543 = vld [vmem:[#allocation3 + $0x28] sm:$0xff]
    %v1544 = vld [vmem:[%s8] sm:$0xff]
    %v1545 = vld [vmem:[%s8 + $0x8] sm:$0xff]
    %v1546 = vld [vmem:[%s8 + $0x10] sm:$0xff]
    %v1547 = vld [vmem:[%s8 + $0x18] sm:$0xff]
    %v1548 = vld [vmem:[%s9] sm:$0x1]
    %v1550 = vperm.slane %v1548, 0
    %v1553 = vsel %vm142, %v1538, 0
    %v1556 = vsel %vm142, %v1539, 0
    %v1559 = vsel %vm142, %v1540, 0
    %v1562 = vsel %vm142, %v1541, 0
    %v1565 = vsel %vm142, %v1542, 0
    %v1568 = vsel %vm142, %v1543, 0
    %1570 = vmatpush.msra.mxu0 0.0
    %1571 = vmatpush.msra.mxu0 0.0
    %1572 = vmatpush.msra.mxu0 0.0
    %1573 = vmatpush.msra.mxu0 0.0
    %1574 = vmatpush.msra.mxu0 0.0
    %1575 = vmatpush.msra.mxu0 0.0
    %1576 = vmatpush.msra.mxu0 0.0
    %1577 = vmatpush.msra.mxu0 0.0
    %1578 = vmatpush.msra.mxu0 0.0
    %1579 = vmatpush.msra.mxu0 0.0
    %1580 = vmatpush.msra.mxu0 0.0
    %1581 = vmatpush.msra.mxu0 0.0
    %1582 = vmatpush.msra.mxu0 %v1547
    %1583 = vmatpush.msra.mxu0 %v1546
    %1584 = vmatpush.msra.mxu0 %v1545
    %1585 = vmatpush.msra.mxu0 %v1544
    %1586 = vmatmul.f32.gmra.mxu0 %v1553
    %v1587 = vpop.f32.mrf.mxu0
    %v1588 = vadd.f32 %v1550, %v1587
    %1589 = vmatmul.f32.gmra.mxu0 %v1556
    %v1590 = vpop.f32.mrf.mxu0
    %v1591 = vadd.f32 %v1550, %v1590
    %1592 = vmatmul.f32.gmra.mxu0 %v1559
    %v1593 = vpop.f32.mrf.mxu0
    %v1594 = vadd.f32 %v1550, %v1593
    %1595 = vmatmul.f32.gmra.mxu0 %v1562
    %v1596 = vpop.f32.mrf.mxu0
    %v1597 = vadd.f32 %v1550, %v1596
    %1598 = vmatmul.f32.gmra.mxu0 %v1565
    %v1599 = vpop.f32.mrf.mxu0
    %v1600 = vadd.f32 %v1550, %v1599
    %1601 = vmatmul.f32.gmra.mxu0 %v1568
    %v1602 = vpop.f32.mrf.mxu0
    %v1603 = vadd.f32 %v1550, %v1602
    %1604 = vdwg.mxu0
    %v1605 = vadd.f32 %v153, %v1588
    %v1606 = vadd.f32 %v154, %v1591
    %v1607 = vadd.f32 %v155, %v1594
    %v1608 = vadd.f32 %v156, %v1597
    %v1609 = vadd.f32 %v157, %v1600
    %v1610 = vadd.f32 %v158, %v1603
    %v1611 = vld [vmem:[%s10] sm:$0x1]
    %v1612 = vld [vmem:[%s11] sm:$0x1]
    %v1613 = vsel %vm142, %v1605, 0.0
    %1614 = vadd.xlane.f32.xlu0 %v1613
    %v1615 = vpop.xlane.xlu0 %1614
    %v1616 = vsel %vm142, %v1606, 0.0
    %1617 = vadd.xlane.f32.xlu0 %v1616
    %v1618 = vpop.xlane.xlu0 %1617
    %v1619 = vsel %vm142, %v1607, 0.0
    %1620 = vadd.xlane.f32.xlu0 %v1619
    %v1621 = vpop.xlane.xlu0 %1620
    %v1622 = vsel %vm142, %v1608, 0.0
    %1623 = vadd.xlane.f32.xlu0 %v1622
    %v1624 = vpop.xlane.xlu0 %1623
    %v1625 = vsel %vm142, %v1609, 0.0
    %1626 = vadd.xlane.f32.xlu0 %v1625
    %v1627 = vpop.xlane.xlu0 %1626
    %v1628 = vsel %vm142, %v1610, 0.0
    %1629 = vadd.xlane.f32.xlu0 %v1628
    %v1630 = vpop.xlane.xlu0 %1629
    %v1631 = vmul.f32 %v1615, %v189
    %v1632 = vmul.f32 %v1618, %v189
    %v1633 = vmul.f32 %v1621, %v189
    %v1634 = vmul.f32 %v1624, %v189
    %v1635 = vmul.f32 %v1627, %v189
    %v1636 = vmul.f32 %v1630, %v189
    %v1637 = vsub.f32 %v1605, %v1631
    %v1638 = vsub.f32 %v1606, %v1632
    %v1639 = vsub.f32 %v1607, %v1633
    %v1640 = vsub.f32 %v1608, %v1634
    %v1641 = vsub.f32 %v1609, %v1635
    %v1642 = vsub.f32 %v1610, %v1636
    %v1643 = vmul.f32 %v1637, %v1637
    %v1644 = vmul.f32 %v1638, %v1638
    %v1645 = vmul.f32 %v1639, %v1639
    %v1646 = vmul.f32 %v1640, %v1640
    %v1647 = vmul.f32 %v1641, %v1641
    %v1648 = vmul.f32 %v1642, %v1642
    %v1649 = vsel %vm142, %v1643, 0.0
    %1650 = vadd.xlane.f32.xlu0 %v1649
    %v1651 = vpop.xlane.xlu0 %1650
    %v1652 = vsel %vm142, %v1644, 0.0
    %1653 = vadd.xlane.f32.xlu0 %v1652
    %v1654 = vpop.xlane.xlu0 %1653
    %v1655 = vsel %vm142, %v1645, 0.0
    %1656 = vadd.xlane.f32.xlu0 %v1655
    %v1657 = vpop.xlane.xlu0 %1656
    %v1658 = vsel %vm142, %v1646, 0.0
    %1659 = vadd.xlane.f32.xlu0 %v1658
    %v1660 = vpop.xlane.xlu0 %1659
    %v1661 = vsel %vm142, %v1647, 0.0
    %1662 = vadd.xlane.f32.xlu0 %v1661
    %v1663 = vpop.xlane.xlu0 %1662
    %v1664 = vsel %vm142, %v1648, 0.0
    %1665 = vadd.xlane.f32.xlu0 %v1664
    %v1666 = vpop.xlane.xlu0 %1665
    %v1667 = vmul.f32 %v1651, %v189
    %v1668 = vmul.f32 %v1654, %v189
    %v1669 = vmul.f32 %v1657, %v189
    %v1670 = vmul.f32 %v1660, %v189
    %v1671 = vmul.f32 %v1663, %v189
    %v1672 = vmul.f32 %v1666, %v189
    %v1673 = vadd.f32 %v1667, 1e-05
    %v1674 = vadd.f32 %v1668, 1e-05
    %v1675 = vadd.f32 %v1669, 1e-05
    %v1676 = vadd.f32 %v1670, 1e-05
    %v1677 = vadd.f32 %v1671, 1e-05
    %v1678 = vadd.f32 %v1672, 1e-05
    %v1679 = vrsqrt.pop %v1673
    %v1680 = vmul.f32 %v1679, %v1673
    %v1681 = vmul.f32 %v1680, %v1679
    %v1682 = vmul.f32 0.5, %v1681
    %v1683 = vsub.f32 1.5, %v1682
    %v1684 = vmul.f32 %v1679, %v1683
    %vm1685 = vweird.f32 %v1673
    %vm1686 = vweird.f32 %v1679
    %vm1687 = vmor %vm1685, %vm1686
    %v1688 = vsel %vm1687, %v1679, %v1684
    %v1689 = vrsqrt.pop %v1674
    %v1690 = vmul.f32 %v1689, %v1674
    %v1691 = vmul.f32 %v1690, %v1689
    %v1692 = vmul.f32 0.5, %v1691
    %v1693 = vsub.f32 1.5, %v1692
    %v1694 = vmul.f32 %v1689, %v1693
    %vm1695 = vweird.f32 %v1674
    %vm1696 = vweird.f32 %v1689
    %vm1697 = vmor %vm1695, %vm1696
    %v1698 = vsel %vm1697, %v1689, %v1694
    %v1699 = vrsqrt.pop %v1675
    %v1700 = vmul.f32 %v1699, %v1675
    %v1701 = vmul.f32 %v1700, %v1699
    %v1702 = vmul.f32 0.5, %v1701
    %v1703 = vsub.f32 1.5, %v1702
    %v1704 = vmul.f32 %v1699, %v1703
    %vm1705 = vweird.f32 %v1675
    %vm1706 = vweird.f32 %v1699
    %vm1707 = vmor %vm1705, %vm1706
    %v1708 = vsel %vm1707, %v1699, %v1704
    %v1709 = vrsqrt.pop %v1676
    %v1710 = vmul.f32 %v1709, %v1676
    %v1711 = vmul.f32 %v1710, %v1709
    %v1712 = vmul.f32 0.5, %v1711
    %v1713 = vsub.f32 1.5, %v1712
    %v1714 = vmul.f32 %v1709, %v1713
    %vm1715 = vweird.f32 %v1676
    %vm1716 = vweird.f32 %v1709
    %vm1717 = vmor %vm1715, %vm1716
    %v1718 = vsel %vm1717, %v1709, %v1714
    %v1719 = vrsqrt.pop %v1677
    %v1720 = vmul.f32 %v1719, %v1677
    %v1721 = vmul.f32 %v1720, %v1719
    %v1722 = vmul.f32 0.5, %v1721
    %v1723 = vsub.f32 1.5, %v1722
    %v1724 = vmul.f32 %v1719, %v1723
    %vm1725 = vweird.f32 %v1677
    %vm1726 = vweird.f32 %v1719
    %vm1727 = vmor %vm1725, %vm1726
    %v1728 = vsel %vm1727, %v1719, %v1724
    %v1729 = vrsqrt.pop %v1678
    %v1730 = vmul.f32 %v1729, %v1678
    %v1731 = vmul.f32 %v1730, %v1729
    %v1732 = vmul.f32 0.5, %v1731
    %v1733 = vsub.f32 1.5, %v1732
    %v1734 = vmul.f32 %v1729, %v1733
    %vm1735 = vweird.f32 %v1678
    %vm1736 = vweird.f32 %v1729
    %vm1737 = vmor %vm1735, %vm1736
    %v1738 = vsel %vm1737, %v1729, %v1734
    %v1739 = vmul.f32 %v1637, %v1688
    %v1740 = vmul.f32 %v1638, %v1698
    %v1741 = vmul.f32 %v1639, %v1708
    %v1742 = vmul.f32 %v1640, %v1718
    %v1743 = vmul.f32 %v1641, %v1728
    %v1744 = vmul.f32 %v1642, %v1738
    %v1746 = vperm.slane %v1611, 0
    %v1748 = vmul.f32 %v1739, %v1746
    %v1749 = vmul.f32 %v1740, %v1746
    %v1750 = vmul.f32 %v1741, %v1746
    %v1751 = vmul.f32 %v1742, %v1746
    %v1752 = vmul.f32 %v1743, %v1746
    %v1753 = vmul.f32 %v1744, %v1746
    %v1755 = vperm.slane %v1612, 0
    %v1757 = vadd.f32 %v1748, %v1755
    %v1758 = vadd.f32 %v1749, %v1755
    %v1759 = vadd.f32 %v1750, %v1755
    %v1760 = vadd.f32 %v1751, %v1755
    %v1761 = vadd.f32 %v1752, %v1755
    %v1762 = vadd.f32 %v1753, %v1755
    %v1763 = vld [vmem:[%s12] sm:$0xff]
    %v1764 = vld [vmem:[%s12 + $0x8] sm:$0xff]
    %v1765 = vld [vmem:[%s12 + $0x10] sm:$0xff]
    %v1766 = vld [vmem:[%s12 + $0x18] sm:$0xff]
    %v1767 = vld [vmem:[%s13] sm:$0x1]
    %v1769 = vperm.slane %v1767, 0
    %v1772 = vsel %vm142, %v1757, 0
    %v1775 = vsel %vm142, %v1758, 0
    %v1778 = vsel %vm142, %v1759, 0
    %v1781 = vsel %vm142, %v1760, 0
    %v1784 = vsel %vm142, %v1761, 0
    %v1787 = vsel %vm142, %v1762, 0
    %1789 = vmatpush.msra.mxu0 0.0
    %1790 = vmatpush.msra.mxu0 0.0
    %1791 = vmatpush.msra.mxu0 0.0
    %1792 = vmatpush.msra.mxu0 0.0
    %1793 = vmatpush.msra.mxu0 0.0
    %1794 = vmatpush.msra.mxu0 0.0
    %1795 = vmatpush.msra.mxu0 0.0
    %1796 = vmatpush.msra.mxu0 0.0
    %1797 = vmatpush.msra.mxu0 0.0
    %1798 = vmatpush.msra.mxu0 0.0
    %1799 = vmatpush.msra.mxu0 0.0
    %1800 = vmatpush.msra.mxu0 0.0
    %1801 = vmatpush.msra.mxu0 %v1766
    %1802 = vmatpush.msra.mxu0 %v1765
    %1803 = vmatpush.msra.mxu0 %v1764
    %1804 = vmatpush.msra.mxu0 %v1763
    %1805 = vmatmul.f32.gmra.mxu0 %v1772
    %v1806 = vpop.f32.mrf.mxu0
    %v1807 = vadd.f32 %v1769, %v1806
    %1808 = vmatmul.f32.gmra.mxu0 %v1775
    %v1809 = vpop.f32.mrf.mxu0
    %v1810 = vadd.f32 %v1769, %v1809
    %1811 = vmatmul.f32.gmra.mxu0 %v1778
    %v1812 = vpop.f32.mrf.mxu0
    %v1813 = vadd.f32 %v1769, %v1812
    %1814 = vmatmul.f32.gmra.mxu0 %v1781
    %v1815 = vpop.f32.mrf.mxu0
    %v1816 = vadd.f32 %v1769, %v1815
    %1817 = vmatmul.f32.gmra.mxu0 %v1784
    %v1818 = vpop.f32.mrf.mxu0
    %v1819 = vadd.f32 %v1769, %v1818
    %1820 = vmatmul.f32.gmra.mxu0 %v1787
    %v1821 = vpop.f32.mrf.mxu0
    %v1822 = vadd.f32 %v1769, %v1821
    %1823 = vdwg.mxu0
    %v1824 = vmul.f32 %v1807, 0.5
    %v1825 = vmul.f32 %v1810, 0.5
    %v1826 = vmul.f32 %v1813, 0.5
    %v1827 = vmul.f32 %v1816, 0.5
    %v1828 = vmul.f32 %v1819, 0.5
    %v1829 = vmul.f32 %v1822, 0.5
    %v1830 = vmul.f32 %v1807, 0.70710677
    %v1831 = vmul.f32 %v1810, 0.70710677
    %v1832 = vmul.f32 %v1813, 0.70710677
    %v1833 = vmul.f32 %v1816, 0.70710677
    %v1834 = vmul.f32 %v1819, 0.70710677
    %v1835 = vmul.f32 %v1822, 0.70710677
    %v1836 = vand.u32 2147483647, %v1830
    %v1837 = vand.u32 2147483647, %v1831
    %v1838 = vand.u32 2147483647, %v1832
    %v1839 = vand.u32 2147483647, %v1833
    %v1840 = vand.u32 2147483647, %v1834
    %v1841 = vand.u32 2147483647, %v1835
    %v1842 = vmul.f32 %v1836, 0.3275911
    %v1843 = vmul.f32 %v1837, 0.3275911
    %v1844 = vmul.f32 %v1838, 0.3275911
    %v1845 = vmul.f32 %v1839, 0.3275911
    %v1846 = vmul.f32 %v1840, 0.3275911
    %v1847 = vmul.f32 %v1841, 0.3275911
    %v1848 = vadd.f32 %v1842, 1.0
    %v1849 = vadd.f32 %v1843, 1.0
    %v1850 = vadd.f32 %v1844, 1.0
    %v1851 = vadd.f32 %v1845, 1.0
    %v1852 = vadd.f32 %v1846, 1.0
    %v1853 = vadd.f32 %v1847, 1.0
    %v1854 = vrcp.pop %v1848
    %v1855 = vmul.f32 %v1848, %v1854
    %v1856 = vsub.f32 1.0, %v1855
    %v1857 = vmul.f32 %v1854, %v1856
    %v1858 = vadd.f32 %v1854, %v1857
    %vm1859 = vweird.f32 %v1848
    %vm1860 = vweird.f32 %v1854
    %vm1861 = vmor %vm1859, %vm1860
    %v1862 = vsel %vm1861, %v1854, %v1858
    %v1863 = vand.u32 2147483647, %v1848
    %vm1864 = vcmp.eq.f32.partialorder %v1863, 8.507059e+37
    %v1865 = vand.u32 %v1848, 2147483648
    %v1866 = vor.u32 1.1754944e-38, %v1865
    %v1867 = vsel %vm1864, %v1866, %v1862
    %v1868 = vmul.f32 1.0, %v1867
    %v1869 = vrcp.pop %v1849
    %v1870 = vmul.f32 %v1849, %v1869
    %v1871 = vsub.f32 1.0, %v1870
    %v1872 = vmul.f32 %v1869, %v1871
    %v1873 = vadd.f32 %v1869, %v1872
    %vm1874 = vweird.f32 %v1849
    %vm1875 = vweird.f32 %v1869
    %vm1876 = vmor %vm1874, %vm1875
    %v1877 = vsel %vm1876, %v1869, %v1873
    %v1878 = vand.u32 2147483647, %v1849
    %vm1879 = vcmp.eq.f32.partialorder %v1878, 8.507059e+37
    %v1880 = vand.u32 %v1849, 2147483648
    %v1881 = vor.u32 1.1754944e-38, %v1880
    %v1882 = vsel %vm1879, %v1881, %v1877
    %v1883 = vmul.f32 1.0, %v1882
    %v1884 = vrcp.pop %v1850
    %v1885 = vmul.f32 %v1850, %v1884
    %v1886 = vsub.f32 1.0, %v1885
    %v1887 = vmul.f32 %v1884, %v1886
    %v1888 = vadd.f32 %v1884, %v1887
    %vm1889 = vweird.f32 %v1850
    %vm1890 = vweird.f32 %v1884
    %vm1891 = vmor %vm1889, %vm1890
    %v1892 = vsel %vm1891, %v1884, %v1888
    %v1893 = vand.u32 2147483647, %v1850
    %vm1894 = vcmp.eq.f32.partialorder %v1893, 8.507059e+37
    %v1895 = vand.u32 %v1850, 2147483648
    %v1896 = vor.u32 1.1754944e-38, %v1895
    %v1897 = vsel %vm1894, %v1896, %v1892
    %v1898 = vmul.f32 1.0, %v1897
    %v1899 = vrcp.pop %v1851
    %v1900 = vmul.f32 %v1851, %v1899
    %v1901 = vsub.f32 1.0, %v1900
    %v1902 = vmul.f32 %v1899, %v1901
    %v1903 = vadd.f32 %v1899, %v1902
    %vm1904 = vweird.f32 %v1851
    %vm1905 = vweird.f32 %v1899
    %vm1906 = vmor %vm1904, %vm1905
    %v1907 = vsel %vm1906, %v1899, %v1903
    %v1908 = vand.u32 2147483647, %v1851
    %vm1909 = vcmp.eq.f32.partialorder %v1908, 8.507059e+37
    %v1910 = vand.u32 %v1851, 2147483648
    %v1911 = vor.u32 1.1754944e-38, %v1910
    %v1912 = vsel %vm1909, %v1911, %v1907
    %v1913 = vmul.f32 1.0, %v1912
    %v1914 = vrcp.pop %v1852
    %v1915 = vmul.f32 %v1852, %v1914
    %v1916 = vsub.f32 1.0, %v1915
    %v1917 = vmul.f32 %v1914, %v1916
    %v1918 = vadd.f32 %v1914, %v1917
    %vm1919 = vweird.f32 %v1852
    %vm1920 = vweird.f32 %v1914
    %vm1921 = vmor %vm1919, %vm1920
    %v1922 = vsel %vm1921, %v1914, %v1918
    %v1923 = vand.u32 2147483647, %v1852
    %vm1924 = vcmp.eq.f32.partialorder %v1923, 8.507059e+37
    %v1925 = vand.u32 %v1852, 2147483648
    %v1926 = vor.u32 1.1754944e-38, %v1925
    %v1927 = vsel %vm1924, %v1926, %v1922
    %v1928 = vmul.f32 1.0, %v1927
    %v1929 = vrcp.pop %v1853
    %v1930 = vmul.f32 %v1853, %v1929
    %v1931 = vsub.f32 1.0, %v1930
    %v1932 = vmul.f32 %v1929, %v1931
    %v1933 = vadd.f32 %v1929, %v1932
    %vm1934 = vweird.f32 %v1853
    %vm1935 = vweird.f32 %v1929
    %vm1936 = vmor %vm1934, %vm1935
    %v1937 = vsel %vm1936, %v1929, %v1933
    %v1938 = vand.u32 2147483647, %v1853
    %vm1939 = vcmp.eq.f32.partialorder %v1938, 8.507059e+37
    %v1940 = vand.u32 %v1853, 2147483648
    %v1941 = vor.u32 1.1754944e-38, %v1940
    %v1942 = vsel %vm1939, %v1941, %v1937
    %v1943 = vmul.f32 1.0, %v1942
    %v1944 = vmul.f32 %v1868, 1.0614054
    %v1945 = vmul.f32 %v1883, 1.0614054
    %v1946 = vmul.f32 %v1898, 1.0614054
    %v1947 = vmul.f32 %v1913, 1.0614054
    %v1948 = vmul.f32 %v1928, 1.0614054
    %v1949 = vmul.f32 %v1943, 1.0614054
    %v1950 = vadd.f32 %v1944, -1.4531521
    %v1951 = vadd.f32 %v1945, -1.4531521
    %v1952 = vadd.f32 %v1946, -1.4531521
    %v1953 = vadd.f32 %v1947, -1.4531521
    %v1954 = vadd.f32 %v1948, -1.4531521
    %v1955 = vadd.f32 %v1949, -1.4531521
    %v1956 = vmul.f32 %v1950, %v1868
    %v1957 = vmul.f32 %v1951, %v1883
    %v1958 = vmul.f32 %v1952, %v1898
    %v1959 = vmul.f32 %v1953, %v1913
    %v1960 = vmul.f32 %v1954, %v1928
    %v1961 = vmul.f32 %v1955, %v1943
    %v1962 = vadd.f32 %v1956, 1.4214138
    %v1963 = vadd.f32 %v1957, 1.4214138
    %v1964 = vadd.f32 %v1958, 1.4214138
    %v1965 = vadd.f32 %v1959, 1.4214138
    %v1966 = vadd.f32 %v1960, 1.4214138
    %v1967 = vadd.f32 %v1961, 1.4214138
    %v1968 = vmul.f32 %v1962, %v1868
    %v1969 = vmul.f32 %v1963, %v1883
    %v1970 = vmul.f32 %v1964, %v1898
    %v1971 = vmul.f32 %v1965, %v1913
    %v1972 = vmul.f32 %v1966, %v1928
    %v1973 = vmul.f32 %v1967, %v1943
    %v1974 = vadd.f32 %v1968, -0.28449672
    %v1975 = vadd.f32 %v1969, -0.28449672
    %v1976 = vadd.f32 %v1970, -0.28449672
    %v1977 = vadd.f32 %v1971, -0.28449672
    %v1978 = vadd.f32 %v1972, -0.28449672
    %v1979 = vadd.f32 %v1973, -0.28449672
    %v1980 = vmul.f32 %v1974, %v1868
    %v1981 = vmul.f32 %v1975, %v1883
    %v1982 = vmul.f32 %v1976, %v1898
    %v1983 = vmul.f32 %v1977, %v1913
    %v1984 = vmul.f32 %v1978, %v1928
    %v1985 = vmul.f32 %v1979, %v1943
    %v1986 = vadd.f32 %v1980, 0.2548296
    %v1987 = vadd.f32 %v1981, 0.2548296
    %v1988 = vadd.f32 %v1982, 0.2548296
    %v1989 = vadd.f32 %v1983, 0.2548296
    %v1990 = vadd.f32 %v1984, 0.2548296
    %v1991 = vadd.f32 %v1985, 0.2548296
    %v1992 = vmul.f32 %v1986, %v1868
    %v1993 = vmul.f32 %v1987, %v1883
    %v1994 = vmul.f32 %v1988, %v1898
    %v1995 = vmul.f32 %v1989, %v1913
    %v1996 = vmul.f32 %v1990, %v1928
    %v1997 = vmul.f32 %v1991, %v1943
    %v1998 = vsub.f32 0.0, %v1836
    %v1999 = vsub.f32 0.0, %v1837
    %v2000 = vsub.f32 0.0, %v1838
    %v2001 = vsub.f32 0.0, %v1839
    %v2002 = vsub.f32 0.0, %v1840
    %v2003 = vsub.f32 0.0, %v1841
    %v2004 = vmul.f32 %v1998, %v1836
    %v2005 = vmul.f32 %v1999, %v1837
    %v2006 = vmul.f32 %v2000, %v1838
    %v2007 = vmul.f32 %v2001, %v1839
    %v2008 = vmul.f32 %v2002, %v1840
    %v2009 = vmul.f32 %v2003, %v1841
    %v2010 = vmul.f32 %v2004, 1.442695
    %v2011 = vpow.pop %v2010
    %v2012 = vmul.f32 %v2005, 1.442695
    %v2013 = vpow.pop %v2012
    %v2014 = vmul.f32 %v2006, 1.442695
    %v2015 = vpow.pop %v2014
    %v2016 = vmul.f32 %v2007, 1.442695
    %v2017 = vpow.pop %v2016
    %v2018 = vmul.f32 %v2008, 1.442695
    %v2019 = vpow.pop %v2018
    %v2020 = vmul.f32 %v2009, 1.442695
    %v2021 = vpow.pop %v2020
    %v2022 = vmul.f32 %v1992, %v2011
    %v2023 = vmul.f32 %v1993, %v2013
    %v2024 = vmul.f32 %v1994, %v2015
    %v2025 = vmul.f32 %v1995, %v2017
    %v2026 = vmul.f32 %v1996, %v2019
    %v2027 = vmul.f32 %v1997, %v2021
    %v2028 = vsub.f32 1.0, %v2022
    %v2029 = vsub.f32 1.0, %v2023
    %v2030 = vsub.f32 1.0, %v2024
    %v2031 = vsub.f32 1.0, %v2025
    %v2032 = vsub.f32 1.0, %v2026
    %v2033 = vsub.f32 1.0, %v2027
    %vm2034 = vcmp.ge.f32.partialorder %v1830, 0.0
    %vm2035 = vcmp.ge.f32.partialorder %v1831, 0.0
    %vm2036 = vcmp.ge.f32.partialorder %v1832, 0.0
    %vm2037 = vcmp.ge.f32.partialorder %v1833, 0.0
    %vm2038 = vcmp.ge.f32.partialorder %v1834, 0.0
    %vm2039 = vcmp.ge.f32.partialorder %v1835, 0.0
    %v2040 = vsub.f32 0.0, %v2028
    %v2041 = vsub.f32 0.0, %v2029
    %v2042 = vsub.f32 0.0, %v2030
    %v2043 = vsub.f32 0.0, %v2031
    %v2044 = vsub.f32 0.0, %v2032
    %v2045 = vsub.f32 0.0, %v2033
    %v2046 = vsel %vm2034, %v2028, %v2040
    %v2047 = vsel %vm2035, %v2029, %v2041
    %v2048 = vsel %vm2036, %v2030, %v2042
    %v2049 = vsel %vm2037, %v2031, %v2043
    %v2050 = vsel %vm2038, %v2032, %v2044
    %v2051 = vsel %vm2039, %v2033, %v2045
    %v2052 = vadd.f32 %v2046, 1.0
    %v2053 = vadd.f32 %v2047, 1.0
    %v2054 = vadd.f32 %v2048, 1.0
    %v2055 = vadd.f32 %v2049, 1.0
    %v2056 = vadd.f32 %v2050, 1.0
    %v2057 = vadd.f32 %v2051, 1.0
    %v2058 = vmul.f32 %v1824, %v2052
    %v2059 = vmul.f32 %v1825, %v2053
    %v2060 = vmul.f32 %v1826, %v2054
    %v2061 = vmul.f32 %v1827, %v2055
    %v2062 = vmul.f32 %v1828, %v2056
    %v2063 = vmul.f32 %v1829, %v2057
    %v2064 = vld [vmem:[%s14] sm:$0xff]
    %v2065 = vld [vmem:[%s14 + $0x8] sm:$0xff]
    %v2066 = vld [vmem:[%s14 + $0x10] sm:$0xff]
    %v2067 = vld [vmem:[%s14 + $0x18] sm:$0xff]
    %v2068 = vld [vmem:[%s14 + $0x20] sm:$0xff]
    %v2069 = vld [vmem:[%s14 + $0x28] sm:$0xff]
    %v2070 = vld [vmem:[%s14 + $0x30] sm:$0xff]
    %v2071 = vld [vmem:[%s14 + $0x38] sm:$0xff]
    %v2072 = vld [vmem:[%s14 + $0x40] sm:$0xff]
    %v2073 = vld [vmem:[%s14 + $0x48] sm:$0xff]
    %v2074 = vld [vmem:[%s14 + $0x50] sm:$0xff]
    %v2075 = vld [vmem:[%s14 + $0x58] sm:$0xff]
    %v2076 = vld [vmem:[%s14 + $0x60] sm:$0xff]
    %v2077 = vld [vmem:[%s14 + $0x68] sm:$0xff]
    %v2078 = vld [vmem:[%s14 + $0x70] sm:$0xff]
    %v2079 = vld [vmem:[%s14 + $0x78] sm:$0xff]
    %v2080 = vld [vmem:[%s15] sm:$0x1]
    %v2082 = vperm.slane %v2080, 0
    %2084 = vmatpush.msra.mxu0 %v2079
    %2085 = vmatpush.msra.mxu0 %v2078
    %2086 = vmatpush.msra.mxu0 %v2077
    %2087 = vmatpush.msra.mxu0 %v2076
    %2088 = vmatpush.msra.mxu0 %v2075
    %2089 = vmatpush.msra.mxu0 %v2074
    %2090 = vmatpush.msra.mxu0 %v2073
    %2091 = vmatpush.msra.mxu0 %v2072
    %2092 = vmatpush.msra.mxu0 %v2071
    %2093 = vmatpush.msra.mxu0 %v2070
    %2094 = vmatpush.msra.mxu0 %v2069
    %2095 = vmatpush.msra.mxu0 %v2068
    %2096 = vmatpush.msra.mxu0 %v2067
    %2097 = vmatpush.msra.mxu0 %v2066
    %2098 = vmatpush.msra.mxu0 %v2065
    %2099 = vmatpush.msra.mxu0 %v2064
    %2100 = vmatmul.f32.gmra.mxu0 %v2058
    %v2101 = vpop.f32.mrf.mxu0
    %v2102 = vadd.f32 %v2082, %v2101
    %2103 = vmatmul.f32.gmra.mxu0 %v2059
    %v2104 = vpop.f32.mrf.mxu0
    %v2105 = vadd.f32 %v2082, %v2104
    %2106 = vmatmul.f32.gmra.mxu0 %v2060
    %v2107 = vpop.f32.mrf.mxu0
    %v2108 = vadd.f32 %v2082, %v2107
    %2109 = vmatmul.f32.gmra.mxu0 %v2061
    %v2110 = vpop.f32.mrf.mxu0
    %v2111 = vadd.f32 %v2082, %v2110
    %2112 = vmatmul.f32.gmra.mxu0 %v2062
    %v2113 = vpop.f32.mrf.mxu0
    %v2114 = vadd.f32 %v2082, %v2113
    %2115 = vmatmul.f32.gmra.mxu0 %v2063
    %v2116 = vpop.f32.mrf.mxu0
    %v2117 = vadd.f32 %v2082, %v2116
    %2118 = vdwg.mxu0
    %v2119 = vadd.f32 %v1605, %v2102
    %v2120 = vadd.f32 %v1606, %v2105
    %v2121 = vadd.f32 %v1607, %v2108
    %v2122 = vadd.f32 %v1608, %v2111
    %v2123 = vadd.f32 %v1609, %v2114
    %v2124 = vadd.f32 %v1610, %v2117
    %s2125 = scalar_lea.vmem %s5, 1
    %v2126 = vld [vmem:[%s2125] sm:$0x1]
    %s2127 = scalar_lea.vmem %s6, 1
    %v2128 = vld [vmem:[%s2127] sm:$0x1]
    %v2129 = vsel %vm142, %v2119, 0.0
    %2130 = vadd.xlane.f32.xlu0 %v2129
    %v2131 = vpop.xlane.xlu0 %2130
    %v2132 = vsel %vm142, %v2120, 0.0
    %2133 = vadd.xlane.f32.xlu0 %v2132
    %v2134 = vpop.xlane.xlu0 %2133
    %v2135 = vsel %vm142, %v2121, 0.0
    %2136 = vadd.xlane.f32.xlu0 %v2135
    %v2137 = vpop.xlane.xlu0 %2136
    %v2138 = vsel %vm142, %v2122, 0.0
    %2139 = vadd.xlane.f32.xlu0 %v2138
    %v2140 = vpop.xlane.xlu0 %2139
    %v2141 = vsel %vm142, %v2123, 0.0
    %2142 = vadd.xlane.f32.xlu0 %v2141
    %v2143 = vpop.xlane.xlu0 %2142
    %v2144 = vsel %vm142, %v2124, 0.0
    %2145 = vadd.xlane.f32.xlu0 %v2144
    %v2146 = vpop.xlane.xlu0 %2145
    %v2147 = vmul.f32 %v2131, %v189
    %v2148 = vmul.f32 %v2134, %v189
    %v2149 = vmul.f32 %v2137, %v189
    %v2150 = vmul.f32 %v2140, %v189
    %v2151 = vmul.f32 %v2143, %v189
    %v2152 = vmul.f32 %v2146, %v189
    %v2153 = vsub.f32 %v2119, %v2147
    %v2154 = vsub.f32 %v2120, %v2148
    %v2155 = vsub.f32 %v2121, %v2149
    %v2156 = vsub.f32 %v2122, %v2150
    %v2157 = vsub.f32 %v2123, %v2151
    %v2158 = vsub.f32 %v2124, %v2152
    %v2159 = vmul.f32 %v2153, %v2153
    %v2160 = vmul.f32 %v2154, %v2154
    %v2161 = vmul.f32 %v2155, %v2155
    %v2162 = vmul.f32 %v2156, %v2156
    %v2163 = vmul.f32 %v2157, %v2157
    %v2164 = vmul.f32 %v2158, %v2158
    %v2165 = vsel %vm142, %v2159, 0.0
    %2166 = vadd.xlane.f32.xlu0 %v2165
    %v2167 = vpop.xlane.xlu0 %2166
    %v2168 = vsel %vm142, %v2160, 0.0
    %2169 = vadd.xlane.f32.xlu0 %v2168
    %v2170 = vpop.xlane.xlu0 %2169
    %v2171 = vsel %vm142, %v2161, 0.0
    %2172 = vadd.xlane.f32.xlu0 %v2171
    %v2173 = vpop.xlane.xlu0 %2172
    %v2174 = vsel %vm142, %v2162, 0.0
    %2175 = vadd.xlane.f32.xlu0 %v2174
    %v2176 = vpop.xlane.xlu0 %2175
    %v2177 = vsel %vm142, %v2163, 0.0
    %2178 = vadd.xlane.f32.xlu0 %v2177
    %v2179 = vpop.xlane.xlu0 %2178
    %v2180 = vsel %vm142, %v2164, 0.0
    %2181 = vadd.xlane.f32.xlu0 %v2180
    %v2182 = vpop.xlane.xlu0 %2181
    %v2183 = vmul.f32 %v2167, %v189
    %v2184 = vmul.f32 %v2170, %v189
    %v2185 = vmul.f32 %v2173, %v189
    %v2186 = vmul.f32 %v2176, %v189
    %v2187 = vmul.f32 %v2179, %v189
    %v2188 = vmul.f32 %v2182, %v189
    %v2189 = vadd.f32 %v2183, 1e-05
    %v2190 = vadd.f32 %v2184, 1e-05
    %v2191 = vadd.f32 %v2185, 1e-05
    %v2192 = vadd.f32 %v2186, 1e-05
    %v2193 = vadd.f32 %v2187, 1e-05
    %v2194 = vadd.f32 %v2188, 1e-05
    %v2195 = vrsqrt.pop %v2189
    %v2196 = vmul.f32 %v2195, %v2189
    %v2197 = vmul.f32 %v2196, %v2195
    %v2198 = vmul.f32 0.5, %v2197
    %v2199 = vsub.f32 1.5, %v2198
    %v2200 = vmul.f32 %v2195, %v2199
    %vm2201 = vweird.f32 %v2189
    %vm2202 = vweird.f32 %v2195
    %vm2203 = vmor %vm2201, %vm2202
    %v2204 = vsel %vm2203, %v2195, %v2200
    %v2205 = vrsqrt.pop %v2190
    %v2206 = vmul.f32 %v2205, %v2190
    %v2207 = vmul.f32 %v2206, %v2205
    %v2208 = vmul.f32 0.5, %v2207
    %v2209 = vsub.f32 1.5, %v2208
    %v2210 = vmul.f32 %v2205, %v2209
    %vm2211 = vweird.f32 %v2190
    %vm2212 = vweird.f32 %v2205
    %vm2213 = vmor %vm2211, %vm2212
    %v2214 = vsel %vm2213, %v2205, %v2210
    %v2215 = vrsqrt.pop %v2191
    %v2216 = vmul.f32 %v2215, %v2191
    %v2217 = vmul.f32 %v2216, %v2215
    %v2218 = vmul.f32 0.5, %v2217
    %v2219 = vsub.f32 1.5, %v2218
    %v2220 = vmul.f32 %v2215, %v2219
    %vm2221 = vweird.f32 %v2191
    %vm2222 = vweird.f32 %v2215
    %vm2223 = vmor %vm2221, %vm2222
    %v2224 = vsel %vm2223, %v2215, %v2220
    %v2225 = vrsqrt.pop %v2192
    %v2226 = vmul.f32 %v2225, %v2192
    %v2227 = vmul.f32 %v2226, %v2225
    %v2228 = vmul.f32 0.5, %v2227
    %v2229 = vsub.f32 1.5, %v2228
    %v2230 = vmul.f32 %v2225, %v2229
    %vm2231 = vweird.f32 %v2192
    %vm2232 = vweird.f32 %v2225
    %vm2233 = vmor %vm2231, %vm2232
    %v2234 = vsel %vm2233, %v2225, %v2230
    %v2235 = vrsqrt.pop %v2193
    %v2236 = vmul.f32 %v2235, %v2193
    %v2237 = vmul.f32 %v2236, %v2235
    %v2238 = vmul.f32 0.5, %v2237
    %v2239 = vsub.f32 1.5, %v2238
    %v2240 = vmul.f32 %v2235, %v2239
    %vm2241 = vweird.f32 %v2193
    %vm2242 = vweird.f32 %v2235
    %vm2243 = vmor %vm2241, %vm2242
    %v2244 = vsel %vm2243, %v2235, %v2240
    %v2245 = vrsqrt.pop %v2194
    %v2246 = vmul.f32 %v2245, %v2194
    %v2247 = vmul.f32 %v2246, %v2245
    %v2248 = vmul.f32 0.5, %v2247
    %v2249 = vsub.f32 1.5, %v2248
    %v2250 = vmul.f32 %v2245, %v2249
    %vm2251 = vweird.f32 %v2194
    %vm2252 = vweird.f32 %v2245
    %vm2253 = vmor %vm2251, %vm2252
    %v2254 = vsel %vm2253, %v2245, %v2250
    %v2255 = vmul.f32 %v2153, %v2204
    %v2256 = vmul.f32 %v2154, %v2214
    %v2257 = vmul.f32 %v2155, %v2224
    %v2258 = vmul.f32 %v2156, %v2234
    %v2259 = vmul.f32 %v2157, %v2244
    %v2260 = vmul.f32 %v2158, %v2254
    %v2262 = vperm.slane %v2126, 0
    %v2264 = vmul.f32 %v2255, %v2262
    %v2265 = vmul.f32 %v2256, %v2262
    %v2266 = vmul.f32 %v2257, %v2262
    %v2267 = vmul.f32 %v2258, %v2262
    %v2268 = vmul.f32 %v2259, %v2262
    %v2269 = vmul.f32 %v2260, %v2262
    %v2271 = vperm.slane %v2128, 0
    %v2273 = vadd.f32 %v2264, %v2271
    %v2274 = vadd.f32 %v2265, %v2271
    %v2275 = vadd.f32 %v2266, %v2271
    %v2276 = vadd.f32 %v2267, %v2271
    %v2277 = vadd.f32 %v2268, %v2271
    %v2278 = vadd.f32 %v2269, %v2271
    %s2279 = scalar_lea.vmem %s7, 32
    %v2280 = vld [vmem:[%s2279] sm:$0xff]
    %v2281 = vld [vmem:[%s2279 + $0x8] sm:$0xff]
    %v2282 = vld [vmem:[%s2279 + $0x10] sm:$0xff]
    %v2283 = vld [vmem:[%s2279 + $0x18] sm:$0xff]
    %v2285 = vsel %vm142, %v2273, 0
    %v2288 = vsel %vm142, %v2274, 0
    %v2291 = vsel %vm142, %v2275, 0
    %v2294 = vsel %vm142, %v2276, 0
    %v2297 = vsel %vm142, %v2277, 0
    %v2300 = vsel %vm142, %v2278, 0
    %2302 = vmatpush.msra.mxu0 0.0
    %2303 = vmatpush.msra.mxu0 0.0
    %2304 = vmatpush.msra.mxu0 0.0
    %2305 = vmatpush.msra.mxu0 0.0
    %2306 = vmatpush.msra.mxu0 0.0
    %2307 = vmatpush.msra.mxu0 0.0
    %2308 = vmatpush.msra.mxu0 0.0
    %2309 = vmatpush.msra.mxu0 0.0
    %2310 = vmatpush.msra.mxu0 0.0
    %2311 = vmatpush.msra.mxu0 0.0
    %2312 = vmatpush.msra.mxu0 0.0
    %2313 = vmatpush.msra.mxu0 0.0
    %2314 = vmatpush.msra.mxu0 %v2283
    %2315 = vmatpush.msra.mxu0 %v2282
    %2316 = vmatpush.msra.mxu0 %v2281
    %2317 = vmatpush.msra.mxu0 %v2280
    %2318 = vmatmul.f32.gmra.mxu0 %v2285
    %v2319 = vpop.f32.mrf.mxu0
    %v2320 = vadd.f32 0.0, %v2319
    %2321 = vmatmul.f32.gmra.mxu0 %v2288
    %v2322 = vpop.f32.mrf.mxu0
    %v2323 = vadd.f32 0.0, %v2322
    %2324 = vmatmul.f32.gmra.mxu0 %v2291
    %v2325 = vpop.f32.mrf.mxu0
    %v2326 = vadd.f32 0.0, %v2325
    %2327 = vmatmul.f32.gmra.mxu0 %v2294
    %v2328 = vpop.f32.mrf.mxu0
    %v2329 = vadd.f32 0.0, %v2328
    %2330 = vmatmul.f32.gmra.mxu0 %v2297
    %v2331 = vpop.f32.mrf.mxu0
    %v2332 = vadd.f32 0.0, %v2331
    %2333 = vmatmul.f32.gmra.mxu0 %v2300
    %v2334 = vpop.f32.mrf.mxu0
    %v2335 = vadd.f32 0.0, %v2334
    %2336 = vdwg.mxu0
    %2340 = vrot.lane.b32.xlu0 %v2320, 96
    %v2341 = vpop.permute.xlu0 %2340
    %2342 = vrot.lane.b32.xlu0 %v2323, 96
    %v2343 = vpop.permute.xlu0 %2342
    %2344 = vrot.lane.b32.xlu0 %v2326, 96
    %v2345 = vpop.permute.xlu0 %2344
    %v2346 = vsel %vm388, %v2320, 0
    %v2348 = vsel %vm388, %v2323, 0
    %v2350 = vsel %vm388, %v2326, 0
    %v2352 = vsel %vm388, %v2341, 0
    %v2354 = vsel %vm388, %v2343, 0
    %v2356 = vsel %vm388, %v2345, 0
    %2358 = vmatpush.xpose.msra.mxu0 0.0
    %2359 = vmatpush.xpose.msra.mxu0 0.0
    %2360 = vmatpush.xpose.msra.mxu0 0.0
    %2361 = vmatpush.xpose.msra.mxu0 0.0
    %2362 = vmatpush.xpose.msra.mxu0 0.0
    %2363 = vmatpush.xpose.msra.mxu0 0.0
    %2364 = vmatpush.xpose.msra.mxu0 0.0
    %2365 = vmatpush.xpose.msra.mxu0 0.0
    %2366 = vmatpush.xpose.msra.mxu0 0.0
    %2367 = vmatpush.xpose.msra.mxu0 0.0
    %2368 = vmatpush.xpose.msra.mxu0 0.0
    %2369 = vmatpush.xpose.msra.mxu0 0.0
    %2370 = vmatpush.xpose.msra.mxu0 0.0
    %2371 = vmatpush.xpose.msra.mxu0 %v2356
    %2372 = vmatpush.xpose.msra.mxu0 %v2354
    %2373 = vmatpush.xpose.msra.mxu0 %v2352
    %2374 = vmatmul.f32.gmra.mxu0 %v2346
    %v2375 = vpop.f32.mrf.mxu0
    %v2376 = vadd.f32 0.0, %v2375
    %2377 = vmatmul.f32.gmra.mxu0 %v2348
    %v2378 = vpop.f32.mrf.mxu0
    %v2379 = vadd.f32 0.0, %v2378
    %2380 = vmatmul.f32.gmra.mxu0 %v2350
    %v2381 = vpop.f32.mrf.mxu0
    %v2382 = vadd.f32 0.0, %v2381
    %2383 = vdwg.mxu0
    %v2384 = vmul.f32 %v2376, 0.35355338
    %v2385 = vmul.f32 %v2379, 0.35355338
    %v2386 = vmul.f32 %v2382, 0.35355338
    %v2387 = vadd.f32 %v2384, %v162
    %v2388 = vadd.f32 %v2385, %v162
    %v2389 = vadd.f32 %v2386, %v162
    %v2390 = vsel %vm433, %v2387, -inf
    %2391 = vmax.xlane.f32.xlu0 %v2390
    %v2392 = vpop.xlane.xlu0 %2391
    %v2393 = vsel %vm433, %v2388, -inf
    %2394 = vmax.xlane.f32.xlu0 %v2393
    %v2395 = vpop.xlane.xlu0 %2394
    %v2396 = vsel %vm433, %v2389, -inf
    %2397 = vmax.xlane.f32.xlu0 %v2396
    %v2398 = vpop.xlane.xlu0 %2397
    %v2399 = vsub.f32 %v2387, %v2392
    %v2400 = vsub.f32 %v2388, %v2395
    %v2401 = vsub.f32 %v2389, %v2398
    %v2402 = vmul.f32 %v2399, 1.442695
    %v2403 = vpow.pop %v2402
    %v2404 = vmul.f32 %v2400, 1.442695
    %v2405 = vpow.pop %v2404
    %v2406 = vmul.f32 %v2401, 1.442695
    %v2407 = vpow.pop %v2406
    %v2408 = vsel %vm433, %v2403, 0.0
    %2409 = vadd.xlane.f32.xlu0 %v2408
    %v2410 = vpop.xlane.xlu0 %2409
    %v2411 = vsel %vm433, %v2405, 0.0
    %2412 = vadd.xlane.f32.xlu0 %v2411
    %v2413 = vpop.xlane.xlu0 %2412
    %v2414 = vsel %vm433, %v2407, 0.0
    %2415 = vadd.xlane.f32.xlu0 %v2414
    %v2416 = vpop.xlane.xlu0 %2415
    %v2417 = vrcp.pop %v2410
    %v2418 = vrcp.pop %v2413
    %v2419 = vrcp.pop %v2416
    %v2420 = vmul.f32 %v2403, %v2417
    %v2421 = vmul.f32 %v2405, %v2418
    %v2422 = vmul.f32 %v2407, %v2419
    %2423 = vrot.lane.b32.xlu0 %v2320, 64
    %v2424 = vpop.permute.xlu0 %2423
    %2425 = vrot.lane.b32.xlu0 %v2323, 64
    %v2426 = vpop.permute.xlu0 %2425
    %2427 = vrot.lane.b32.xlu0 %v2326, 64
    %v2428 = vpop.permute.xlu0 %2427
    %v2433 = vsel %vm433, %v2420, 0
    %v2436 = vsel %vm433, %v2421, 0
    %v2439 = vsel %vm433, %v2422, 0
    %2441 = vmatpush.msra.mxu0 0.0
    %2442 = vmatpush.msra.mxu0 0.0
    %2443 = vmatpush.msra.mxu0 0.0
    %2444 = vmatpush.msra.mxu0 0.0
    %2445 = vmatpush.msra.mxu0 0.0
    %2446 = vmatpush.msra.mxu0 0.0
    %2447 = vmatpush.msra.mxu0 0.0
    %2448 = vmatpush.msra.mxu0 0.0
    %2449 = vmatpush.msra.mxu0 0.0
    %2450 = vmatpush.msra.mxu0 0.0
    %2451 = vmatpush.msra.mxu0 0.0
    %2452 = vmatpush.msra.mxu0 0.0
    %2453 = vmatpush.msra.mxu0 0.0
    %2454 = vmatpush.msra.mxu0 %v2428
    %2455 = vmatpush.msra.mxu0 %v2426
    %2456 = vmatpush.msra.mxu0 %v2424
    %2457 = vmatmul.f32.gmra.mxu0 %v2433
    %v2458 = vpop.f32.mrf.mxu0
    %v2459 = vadd.f32 0.0, %v2458
    %2460 = vmatmul.f32.gmra.mxu0 %v2436
    %v2461 = vpop.f32.mrf.mxu0
    %v2462 = vadd.f32 0.0, %v2461
    %2463 = vmatmul.f32.gmra.mxu0 %v2439
    %v2464 = vpop.f32.mrf.mxu0
    %v2465 = vadd.f32 0.0, %v2464
    %2466 = vdwg.mxu0
    %2467 = vst.msk [vmem:[#allocation3] sm:$0xff] %vm388, %v2459
    %2468 = vst.msk [vmem:[#allocation3 + $0x8] sm:$0xff] %vm388, %v2462
    %2469 = vst.msk [vmem:[#allocation3 + $0x10] sm:$0xff] %vm388, %v2465
    %2470 = vrot.lane.b32.xlu0 %v2320, 120
    %v2471 = vpop.permute.xlu0 %2470
    %2472 = vrot.lane.b32.xlu0 %v2323, 120
    %v2473 = vpop.permute.xlu0 %2472
    %2474 = vrot.lane.b32.xlu0 %v2326, 120
    %v2475 = vpop.permute.xlu0 %2474
    %2476 = vrot.lane.b32.xlu0 %v2320, 88
    %v2477 = vpop.permute.xlu0 %2476
    %2478 = vrot.lane.b32.xlu0 %v2323, 88
    %v2479 = vpop.permute.xlu0 %2478
    %2480 = vrot.lane.b32.xlu0 %v2326, 88
    %v2481 = vpop.permute.xlu0 %2480
    %v2482 = vsel %vm388, %v2471, 0
    %v2484 = vsel %vm388, %v2473, 0
    %v2486 = vsel %vm388, %v2475, 0
    %v2488 = vsel %vm388, %v2477, 0
    %v2490 = vsel %vm388, %v2479, 0
    %v2492 = vsel %vm388, %v2481, 0
    %2494 = vmatpush.xpose.msra.mxu0 0.0
    %2495 = vmatpush.xpose.msra.mxu0 0.0
    %2496 = vmatpush.xpose.msra.mxu0 0.0
    %2497 = vmatpush.xpose.msra.mxu0 0.0
    %2498 = vmatpush.xpose.msra.mxu0 0.0
    %2499 = vmatpush.xpose.msra.mxu0 0.0
    %2500 = vmatpush.xpose.msra.mxu0 0.0
    %2501 = vmatpush.xpose.msra.mxu0 0.0
    %2502 = vmatpush.xpose.msra.mxu0 0.0
    %2503 = vmatpush.xpose.msra.mxu0 0.0
    %2504 = vmatpush.xpose.msra.mxu0 0.0
    %2505 = vmatpush.xpose.msra.mxu0 0.0
    %2506 = vmatpush.xpose.msra.mxu0 0.0
    %2507 = vmatpush.xpose.msra.mxu0 %v2492
    %2508 = vmatpush.xpose.msra.mxu0 %v2490
    %2509 = vmatpush.xpose.msra.mxu0 %v2488
    %2510 = vmatmul.f32.gmra.mxu0 %v2482
    %v2511 = vpop.f32.mrf.mxu0
    %v2512 = vadd.f32 0.0, %v2511
    %2513 = vmatmul.f32.gmra.mxu0 %v2484
    %v2514 = vpop.f32.mrf.mxu0
    %v2515 = vadd.f32 0.0, %v2514
    %2516 = vmatmul.f32.gmra.mxu0 %v2486
    %v2517 = vpop.f32.mrf.mxu0
    %v2518 = vadd.f32 0.0, %v2517
    %2519 = vdwg.mxu0
    %v2520 = vmul.f32 %v2512, 0.35355338
    %v2521 = vmul.f32 %v2515, 0.35355338
    %v2522 = vmul.f32 %v2518, 0.35355338
    %v2523 = vadd.f32 %v2520, %v162
    %v2524 = vadd.f32 %v2521, %v162
    %v2525 = vadd.f32 %v2522, %v162
    %v2526 = vsel %vm433, %v2523, -inf
    %2527 = vmax.xlane.f32.xlu0 %v2526
    %v2528 = vpop.xlane.xlu0 %2527
    %v2529 = vsel %vm433, %v2524, -inf
    %2530 = vmax.xlane.f32.xlu0 %v2529
    %v2531 = vpop.xlane.xlu0 %2530
    %v2532 = vsel %vm433, %v2525, -inf
    %2533 = vmax.xlane.f32.xlu0 %v2532
    %v2534 = vpop.xlane.xlu0 %2533
    %v2535 = vsub.f32 %v2523, %v2528
    %v2536 = vsub.f32 %v2524, %v2531
    %v2537 = vsub.f32 %v2525, %v2534
    %v2538 = vmul.f32 %v2535, 1.442695
    %v2539 = vpow.pop %v2538
    %v2540 = vmul.f32 %v2536, 1.442695
    %v2541 = vpow.pop %v2540
    %v2542 = vmul.f32 %v2537, 1.442695
    %v2543 = vpow.pop %v2542
    %v2544 = vsel %vm433, %v2539, 0.0
    %2545 = vadd.xlane.f32.xlu0 %v2544
    %v2546 = vpop.xlane.xlu0 %2545
    %v2547 = vsel %vm433, %v2541, 0.0
    %2548 = vadd.xlane.f32.xlu0 %v2547
    %v2549 = vpop.xlane.xlu0 %2548
    %v2550 = vsel %vm433, %v2543, 0.0
    %2551 = vadd.xlane.f32.xlu0 %v2550
    %v2552 = vpop.xlane.xlu0 %2551
    %v2553 = vrcp.pop %v2546
    %v2554 = vrcp.pop %v2549
    %v2555 = vrcp.pop %v2552
    %v2556 = vmul.f32 %v2539, %v2553
    %v2557 = vmul.f32 %v2541, %v2554
    %v2558 = vmul.f32 %v2543, %v2555
    %2559 = vrot.lane.b32.xlu0 %v2320, 56
    %v2560 = vpop.permute.xlu0 %2559
    %2561 = vrot.lane.b32.xlu0 %v2323, 56
    %v2562 = vpop.permute.xlu0 %2561
    %2563 = vrot.lane.b32.xlu0 %v2326, 56
    %v2564 = vpop.permute.xlu0 %2563
    %v2569 = vsel %vm433, %v2556, 0
    %v2572 = vsel %vm433, %v2557, 0
    %v2575 = vsel %vm433, %v2558, 0
    %2577 = vmatpush.msra.mxu0 0.0
    %2578 = vmatpush.msra.mxu0 0.0
    %2579 = vmatpush.msra.mxu0 0.0
    %2580 = vmatpush.msra.mxu0 0.0
    %2581 = vmatpush.msra.mxu0 0.0
    %2582 = vmatpush.msra.mxu0 0.0
    %2583 = vmatpush.msra.mxu0 0.0
    %2584 = vmatpush.msra.mxu0 0.0
    %2585 = vmatpush.msra.mxu0 0.0
    %2586 = vmatpush.msra.mxu0 0.0
    %2587 = vmatpush.msra.mxu0 0.0
    %2588 = vmatpush.msra.mxu0 0.0
    %2589 = vmatpush.msra.mxu0 0.0
    %2590 = vmatpush.msra.mxu0 %v2564
    %2591 = vmatpush.msra.mxu0 %v2562
    %2592 = vmatpush.msra.mxu0 %v2560
    %2593 = vmatmul.f32.gmra.mxu0 %v2569
    %v2594 = vpop.f32.mrf.mxu0
    %v2595 = vadd.f32 0.0, %v2594
    %2596 = vmatmul.f32.gmra.mxu0 %v2572
    %v2597 = vpop.f32.mrf.mxu0
    %v2598 = vadd.f32 0.0, %v2597
    %2599 = vmatmul.f32.gmra.mxu0 %v2575
    %v2600 = vpop.f32.mrf.mxu0
    %v2601 = vadd.f32 0.0, %v2600
    %2602 = vdwg.mxu0
    %2606 = vrot.lane.b32.xlu0 %v2595, 8
    %v2607 = vpop.permute.xlu0 %2606
    %2608 = vrot.lane.b32.xlu0 %v2598, 8
    %v2609 = vpop.permute.xlu0 %2608
    %2610 = vrot.lane.b32.xlu0 %v2601, 8
    %v2611 = vpop.permute.xlu0 %2610
    %2615 = vst.msk [vmem:[#allocation3] sm:$0xff] %vm659, %v2607
    %2616 = vst.msk [vmem:[#allocation3 + $0x8] sm:$0xff] %vm659, %v2609
    %2617 = vst.msk [vmem:[#allocation3 + $0x10] sm:$0xff] %vm659, %v2611
    %2618 = vrot.lane.b32.xlu0 %v2320, 112
    %v2619 = vpop.permute.xlu0 %2618
    %2620 = vrot.lane.b32.xlu0 %v2323, 112
    %v2621 = vpop.permute.xlu0 %2620
    %2622 = vrot.lane.b32.xlu0 %v2326, 112
    %v2623 = vpop.permute.xlu0 %2622
    %2624 = vrot.lane.b32.xlu0 %v2320, 80
    %v2625 = vpop.permute.xlu0 %2624
    %2626 = vrot.lane.b32.xlu0 %v2323, 80
    %v2627 = vpop.permute.xlu0 %2626
    %2628 = vrot.lane.b32.xlu0 %v2326, 80
    %v2629 = vpop.permute.xlu0 %2628
    %v2630 = vsel %vm388, %v2619, 0
    %v2632 = vsel %vm388, %v2621, 0
    %v2634 = vsel %vm388, %v2623, 0
    %v2636 = vsel %vm388, %v2625, 0
    %v2638 = vsel %vm388, %v2627, 0
    %v2640 = vsel %vm388, %v2629, 0
    %2642 = vmatpush.xpose.msra.mxu0 0.0
    %2643 = vmatpush.xpose.msra.mxu0 0.0
    %2644 = vmatpush.xpose.msra.mxu0 0.0
    %2645 = vmatpush.xpose.msra.mxu0 0.0
    %2646 = vmatpush.xpose.msra.mxu0 0.0
    %2647 = vmatpush.xpose.msra.mxu0 0.0
    %2648 = vmatpush.xpose.msra.mxu0 0.0
    %2649 = vmatpush.xpose.msra.mxu0 0.0
    %2650 = vmatpush.xpose.msra.mxu0 0.0
    %2651 = vmatpush.xpose.msra.mxu0 0.0
    %2652 = vmatpush.xpose.msra.mxu0 0.0
    %2653 = vmatpush.xpose.msra.mxu0 0.0
    %2654 = vmatpush.xpose.msra.mxu0 0.0
    %2655 = vmatpush.xpose.msra.mxu0 %v2640
    %2656 = vmatpush.xpose.msra.mxu0 %v2638
    %2657 = vmatpush.xpose.msra.mxu0 %v2636
    %2658 = vmatmul.f32.gmra.mxu0 %v2630
    %v2659 = vpop.f32.mrf.mxu0
    %v2660 = vadd.f32 0.0, %v2659
    %2661 = vmatmul.f32.gmra.mxu0 %v2632
    %v2662 = vpop.f32.mrf.mxu0
    %v2663 = vadd.f32 0.0, %v2662
    %2664 = vmatmul.f32.gmra.mxu0 %v2634
    %v2665 = vpop.f32.mrf.mxu0
    %v2666 = vadd.f32 0.0, %v2665
    %2667 = vdwg.mxu0
    %v2668 = vmul.f32 %v2660, 0.35355338
    %v2669 = vmul.f32 %v2663, 0.35355338
    %v2670 = vmul.f32 %v2666, 0.35355338
    %v2671 = vadd.f32 %v2668, %v162
    %v2672 = vadd.f32 %v2669, %v162
    %v2673 = vadd.f32 %v2670, %v162
    %v2674 = vsel %vm433, %v2671, -inf
    %2675 = vmax.xlane.f32.xlu0 %v2674
    %v2676 = vpop.xlane.xlu0 %2675
    %v2677 = vsel %vm433, %v2672, -inf
    %2678 = vmax.xlane.f32.xlu0 %v2677
    %v2679 = vpop.xlane.xlu0 %2678
    %v2680 = vsel %vm433, %v2673, -inf
    %2681 = vmax.xlane.f32.xlu0 %v2680
    %v2682 = vpop.xlane.xlu0 %2681
    %v2683 = vsub.f32 %v2671, %v2676
    %v2684 = vsub.f32 %v2672, %v2679
    %v2685 = vsub.f32 %v2673, %v2682
    %v2686 = vmul.f32 %v2683, 1.442695
    %v2687 = vpow.pop %v2686
    %v2688 = vmul.f32 %v2684, 1.442695
    %v2689 = vpow.pop %v2688
    %v2690 = vmul.f32 %v2685, 1.442695
    %v2691 = vpow.pop %v2690
    %v2692 = vsel %vm433, %v2687, 0.0
    %2693 = vadd.xlane.f32.xlu0 %v2692
    %v2694 = vpop.xlane.xlu0 %2693
    %v2695 = vsel %vm433, %v2689, 0.0
    %2696 = vadd.xlane.f32.xlu0 %v2695
    %v2697 = vpop.xlane.xlu0 %2696
    %v2698 = vsel %vm433, %v2691, 0.0
    %2699 = vadd.xlane.f32.xlu0 %v2698
    %v2700 = vpop.xlane.xlu0 %2699
    %v2701 = vrcp.pop %v2694
    %v2702 = vrcp.pop %v2697
    %v2703 = vrcp.pop %v2700
    %v2704 = vmul.f32 %v2687, %v2701
    %v2705 = vmul.f32 %v2689, %v2702
    %v2706 = vmul.f32 %v2691, %v2703
    %2707 = vrot.lane.b32.xlu0 %v2320, 48
    %v2708 = vpop.permute.xlu0 %2707
    %2709 = vrot.lane.b32.xlu0 %v2323, 48
    %v2710 = vpop.permute.xlu0 %2709
    %2711 = vrot.lane.b32.xlu0 %v2326, 48
    %v2712 = vpop.permute.xlu0 %2711
    %v2717 = vsel %vm433, %v2704, 0
    %v2720 = vsel %vm433, %v2705, 0
    %v2723 = vsel %vm433, %v2706, 0
    %2725 = vmatpush.msra.mxu0 0.0
    %2726 = vmatpush.msra.mxu0 0.0
    %2727 = vmatpush.msra.mxu0 0.0
    %2728 = vmatpush.msra.mxu0 0.0
    %2729 = vmatpush.msra.mxu0 0.0
    %2730 = vmatpush.msra.mxu0 0.0
    %2731 = vmatpush.msra.mxu0 0.0
    %2732 = vmatpush.msra.mxu0 0.0
    %2733 = vmatpush.msra.mxu0 0.0
    %2734 = vmatpush.msra.mxu0 0.0
    %2735 = vmatpush.msra.mxu0 0.0
    %2736 = vmatpush.msra.mxu0 0.0
    %2737 = vmatpush.msra.mxu0 0.0
    %2738 = vmatpush.msra.mxu0 %v2712
    %2739 = vmatpush.msra.mxu0 %v2710
    %2740 = vmatpush.msra.mxu0 %v2708
    %2741 = vmatmul.f32.gmra.mxu0 %v2717
    %v2742 = vpop.f32.mrf.mxu0
    %v2743 = vadd.f32 0.0, %v2742
    %2744 = vmatmul.f32.gmra.mxu0 %v2720
    %v2745 = vpop.f32.mrf.mxu0
    %v2746 = vadd.f32 0.0, %v2745
    %2747 = vmatmul.f32.gmra.mxu0 %v2723
    %v2748 = vpop.f32.mrf.mxu0
    %v2749 = vadd.f32 0.0, %v2748
    %2750 = vdwg.mxu0
    %2754 = vrot.lane.b32.xlu0 %v2743, 16
    %v2755 = vpop.permute.xlu0 %2754
    %2756 = vrot.lane.b32.xlu0 %v2746, 16
    %v2757 = vpop.permute.xlu0 %2756
    %2758 = vrot.lane.b32.xlu0 %v2749, 16
    %v2759 = vpop.permute.xlu0 %2758
    %2763 = vst.msk [vmem:[#allocation3] sm:$0xff] %vm808, %v2755
    %2764 = vst.msk [vmem:[#allocation3 + $0x8] sm:$0xff] %vm808, %v2757
    %2765 = vst.msk [vmem:[#allocation3 + $0x10] sm:$0xff] %vm808, %v2759
    %2766 = vrot.lane.b32.xlu0 %v2320, 104
    %v2767 = vpop.permute.xlu0 %2766
    %2768 = vrot.lane.b32.xlu0 %v2323, 104
    %v2769 = vpop.permute.xlu0 %2768
    %2770 = vrot.lane.b32.xlu0 %v2326, 104
    %v2771 = vpop.permute.xlu0 %2770
    %2772 = vrot.lane.b32.xlu0 %v2320, 72
    %v2773 = vpop.permute.xlu0 %2772
    %2774 = vrot.lane.b32.xlu0 %v2323, 72
    %v2775 = vpop.permute.xlu0 %2774
    %2776 = vrot.lane.b32.xlu0 %v2326, 72
    %v2777 = vpop.permute.xlu0 %2776
    %v2778 = vsel %vm388, %v2767, 0
    %v2780 = vsel %vm388, %v2769, 0
    %v2782 = vsel %vm388, %v2771, 0
    %v2784 = vsel %vm388, %v2773, 0
    %v2786 = vsel %vm388, %v2775, 0
    %v2788 = vsel %vm388, %v2777, 0
    %2790 = vmatpush.xpose.msra.mxu0 0.0
    %2791 = vmatpush.xpose.msra.mxu0 0.0
    %2792 = vmatpush.xpose.msra.mxu0 0.0
    %2793 = vmatpush.xpose.msra.mxu0 0.0
    %2794 = vmatpush.xpose.msra.mxu0 0.0
    %2795 = vmatpush.xpose.msra.mxu0 0.0
    %2796 = vmatpush.xpose.msra.mxu0 0.0
    %2797 = vmatpush.xpose.msra.mxu0 0.0
    %2798 = vmatpush.xpose.msra.mxu0 0.0
    %2799 = vmatpush.xpose.msra.mxu0 0.0
    %2800 = vmatpush.xpose.msra.mxu0 0.0
    %2801 = vmatpush.xpose.msra.mxu0 0.0
    %2802 = vmatpush.xpose.msra.mxu0 0.0
    %2803 = vmatpush.xpose.msra.mxu0 %v2788
    %2804 = vmatpush.xpose.msra.mxu0 %v2786
    %2805 = vmatpush.xpose.msra.mxu0 %v2784
    %2806 = vmatmul.f32.gmra.mxu0 %v2778
    %v2807 = vpop.f32.mrf.mxu0
    %v2808 = vadd.f32 0.0, %v2807
    %2809 = vmatmul.f32.gmra.mxu0 %v2780
    %v2810 = vpop.f32.mrf.mxu0
    %v2811 = vadd.f32 0.0, %v2810
    %2812 = vmatmul.f32.gmra.mxu0 %v2782
    %v2813 = vpop.f32.mrf.mxu0
    %v2814 = vadd.f32 0.0, %v2813
    %2815 = vdwg.mxu0
    %v2816 = vmul.f32 %v2808, 0.35355338
    %v2817 = vmul.f32 %v2811, 0.35355338
    %v2818 = vmul.f32 %v2814, 0.35355338
    %v2819 = vadd.f32 %v2816, %v162
    %v2820 = vadd.f32 %v2817, %v162
    %v2821 = vadd.f32 %v2818, %v162
    %v2822 = vsel %vm433, %v2819, -inf
    %2823 = vmax.xlane.f32.xlu0 %v2822
    %v2824 = vpop.xlane.xlu0 %2823
    %v2825 = vsel %vm433, %v2820, -inf
    %2826 = vmax.xlane.f32.xlu0 %v2825
    %v2827 = vpop.xlane.xlu0 %2826
    %v2828 = vsel %vm433, %v2821, -inf
    %2829 = vmax.xlane.f32.xlu0 %v2828
    %v2830 = vpop.xlane.xlu0 %2829
    %v2831 = vsub.f32 %v2819, %v2824
    %v2832 = vsub.f32 %v2820, %v2827
    %v2833 = vsub.f32 %v2821, %v2830
    %v2834 = vmul.f32 %v2831, 1.442695
    %v2835 = vpow.pop %v2834
    %v2836 = vmul.f32 %v2832, 1.442695
    %v2837 = vpow.pop %v2836
    %v2838 = vmul.f32 %v2833, 1.442695
    %v2839 = vpow.pop %v2838
    %v2840 = vsel %vm433, %v2835, 0.0
    %2841 = vadd.xlane.f32.xlu0 %v2840
    %v2842 = vpop.xlane.xlu0 %2841
    %v2843 = vsel %vm433, %v2837, 0.0
    %2844 = vadd.xlane.f32.xlu0 %v2843
    %v2845 = vpop.xlane.xlu0 %2844
    %v2846 = vsel %vm433, %v2839, 0.0
    %2847 = vadd.xlane.f32.xlu0 %v2846
    %v2848 = vpop.xlane.xlu0 %2847
    %v2849 = vrcp.pop %v2842
    %v2850 = vrcp.pop %v2845
    %v2851 = vrcp.pop %v2848
    %v2852 = vmul.f32 %v2835, %v2849
    %v2853 = vmul.f32 %v2837, %v2850
    %v2854 = vmul.f32 %v2839, %v2851
    %2855 = vrot.lane.b32.xlu0 %v2320, 40
    %v2856 = vpop.permute.xlu0 %2855
    %2857 = vrot.lane.b32.xlu0 %v2323, 40
    %v2858 = vpop.permute.xlu0 %2857
    %2859 = vrot.lane.b32.xlu0 %v2326, 40
    %v2860 = vpop.permute.xlu0 %2859
    %v2865 = vsel %vm433, %v2852, 0
    %v2868 = vsel %vm433, %v2853, 0
    %v2871 = vsel %vm433, %v2854, 0
    %2873 = vmatpush.msra.mxu0 0.0
    %2874 = vmatpush.msra.mxu0 0.0
    %2875 = vmatpush.msra.mxu0 0.0
    %2876 = vmatpush.msra.mxu0 0.0
    %2877 = vmatpush.msra.mxu0 0.0
    %2878 = vmatpush.msra.mxu0 0.0
    %2879 = vmatpush.msra.mxu0 0.0
    %2880 = vmatpush.msra.mxu0 0.0
    %2881 = vmatpush.msra.mxu0 0.0
    %2882 = vmatpush.msra.mxu0 0.0
    %2883 = vmatpush.msra.mxu0 0.0
    %2884 = vmatpush.msra.mxu0 0.0
    %2885 = vmatpush.msra.mxu0 0.0
    %2886 = vmatpush.msra.mxu0 %v2860
    %2887 = vmatpush.msra.mxu0 %v2858
    %2888 = vmatpush.msra.mxu0 %v2856
    %2889 = vmatmul.f32.gmra.mxu0 %v2865
    %v2890 = vpop.f32.mrf.mxu0
    %v2891 = vadd.f32 0.0, %v2890
    %2892 = vmatmul.f32.gmra.mxu0 %v2868
    %v2893 = vpop.f32.mrf.mxu0
    %v2894 = vadd.f32 0.0, %v2893
    %2895 = vmatmul.f32.gmra.mxu0 %v2871
    %v2896 = vpop.f32.mrf.mxu0
    %v2897 = vadd.f32 0.0, %v2896
    %2898 = vdwg.mxu0
    %2902 = vrot.lane.b32.xlu0 %v2891, 24
    %v2903 = vpop.permute.xlu0 %2902
    %2904 = vrot.lane.b32.xlu0 %v2894, 24
    %v2905 = vpop.permute.xlu0 %2904
    %2906 = vrot.lane.b32.xlu0 %v2897, 24
    %v2907 = vpop.permute.xlu0 %2906
    %2911 = vst.msk [vmem:[#allocation3] sm:$0xff] %vm957, %v2903
    %2912 = vst.msk [vmem:[#allocation3 + $0x8] sm:$0xff] %vm957, %v2905
    %2913 = vst.msk [vmem:[#allocation3 + $0x10] sm:$0xff] %vm957, %v2907
    %2917 = vrot.lane.b32.xlu0 %v2329, 96
    %v2918 = vpop.permute.xlu0 %2917
    %2919 = vrot.lane.b32.xlu0 %v2332, 96
    %v2920 = vpop.permute.xlu0 %2919
    %2921 = vrot.lane.b32.xlu0 %v2335, 96
    %v2922 = vpop.permute.xlu0 %2921
    %v2923 = vsel %vm388, %v2329, 0
    %v2925 = vsel %vm388, %v2332, 0
    %v2927 = vsel %vm388, %v2335, 0
    %v2929 = vsel %vm388, %v2918, 0
    %v2931 = vsel %vm388, %v2920, 0
    %v2933 = vsel %vm388, %v2922, 0
    %2935 = vmatpush.xpose.msra.mxu0 0.0
    %2936 = vmatpush.xpose.msra.mxu0 0.0
    %2937 = vmatpush.xpose.msra.mxu0 0.0
    %2938 = vmatpush.xpose.msra.mxu0 0.0
    %2939 = vmatpush.xpose.msra.mxu0 0.0
    %2940 = vmatpush.xpose.msra.mxu0 0.0
    %2941 = vmatpush.xpose.msra.mxu0 0.0
    %2942 = vmatpush.xpose.msra.mxu0 0.0
    %2943 = vmatpush.xpose.msra.mxu0 0.0
    %2944 = vmatpush.xpose.msra.mxu0 0.0
    %2945 = vmatpush.xpose.msra.mxu0 0.0
    %2946 = vmatpush.xpose.msra.mxu0 0.0
    %2947 = vmatpush.xpose.msra.mxu0 0.0
    %2948 = vmatpush.xpose.msra.mxu0 %v2933
    %2949 = vmatpush.xpose.msra.mxu0 %v2931
    %2950 = vmatpush.xpose.msra.mxu0 %v2929
    %2951 = vmatmul.f32.gmra.mxu0 %v2923
    %v2952 = vpop.f32.mrf.mxu0
    %v2953 = vadd.f32 0.0, %v2952
    %2954 = vmatmul.f32.gmra.mxu0 %v2925
    %v2955 = vpop.f32.mrf.mxu0
    %v2956 = vadd.f32 0.0, %v2955
    %2957 = vmatmul.f32.gmra.mxu0 %v2927
    %v2958 = vpop.f32.mrf.mxu0
    %v2959 = vadd.f32 0.0, %v2958
    %2960 = vdwg.mxu0
    %v2961 = vmul.f32 %v2953, 0.35355338
    %v2962 = vmul.f32 %v2956, 0.35355338
    %v2963 = vmul.f32 %v2959, 0.35355338
    %v2964 = vadd.f32 %v2961, %v162
    %v2965 = vadd.f32 %v2962, %v162
    %v2966 = vadd.f32 %v2963, %v162
    %v2967 = vsel %vm433, %v2964, -inf
    %2968 = vmax.xlane.f32.xlu0 %v2967
    %v2969 = vpop.xlane.xlu0 %2968
    %v2970 = vsel %vm433, %v2965, -inf
    %2971 = vmax.xlane.f32.xlu0 %v2970
    %v2972 = vpop.xlane.xlu0 %2971
    %v2973 = vsel %vm433, %v2966, -inf
    %2974 = vmax.xlane.f32.xlu0 %v2973
    %v2975 = vpop.xlane.xlu0 %2974
    %v2976 = vsub.f32 %v2964, %v2969
    %v2977 = vsub.f32 %v2965, %v2972
    %v2978 = vsub.f32 %v2966, %v2975
    %v2979 = vmul.f32 %v2976, 1.442695
    %v2980 = vpow.pop %v2979
    %v2981 = vmul.f32 %v2977, 1.442695
    %v2982 = vpow.pop %v2981
    %v2983 = vmul.f32 %v2978, 1.442695
    %v2984 = vpow.pop %v2983
    %v2985 = vsel %vm433, %v2980, 0.0
    %2986 = vadd.xlane.f32.xlu0 %v2985
    %v2987 = vpop.xlane.xlu0 %2986
    %v2988 = vsel %vm433, %v2982, 0.0
    %2989 = vadd.xlane.f32.xlu0 %v2988
    %v2990 = vpop.xlane.xlu0 %2989
    %v2991 = vsel %vm433, %v2984, 0.0
    %2992 = vadd.xlane.f32.xlu0 %v2991
    %v2993 = vpop.xlane.xlu0 %2992
    %v2994 = vrcp.pop %v2987
    %v2995 = vrcp.pop %v2990
    %v2996 = vrcp.pop %v2993
    %v2997 = vmul.f32 %v2980, %v2994
    %v2998 = vmul.f32 %v2982, %v2995
    %v2999 = vmul.f32 %v2984, %v2996
    %3000 = vrot.lane.b32.xlu0 %v2329, 64
    %v3001 = vpop.permute.xlu0 %3000
    %3002 = vrot.lane.b32.xlu0 %v2332, 64
    %v3003 = vpop.permute.xlu0 %3002
    %3004 = vrot.lane.b32.xlu0 %v2335, 64
    %v3005 = vpop.permute.xlu0 %3004
    %v3010 = vsel %vm433, %v2997, 0
    %v3013 = vsel %vm433, %v2998, 0
    %v3016 = vsel %vm433, %v2999, 0
    %3018 = vmatpush.msra.mxu0 0.0
    %3019 = vmatpush.msra.mxu0 0.0
    %3020 = vmatpush.msra.mxu0 0.0
    %3021 = vmatpush.msra.mxu0 0.0
    %3022 = vmatpush.msra.mxu0 0.0
    %3023 = vmatpush.msra.mxu0 0.0
    %3024 = vmatpush.msra.mxu0 0.0
    %3025 = vmatpush.msra.mxu0 0.0
    %3026 = vmatpush.msra.mxu0 0.0
    %3027 = vmatpush.msra.mxu0 0.0
    %3028 = vmatpush.msra.mxu0 0.0
    %3029 = vmatpush.msra.mxu0 0.0
    %3030 = vmatpush.msra.mxu0 0.0
    %3031 = vmatpush.msra.mxu0 %v3005
    %3032 = vmatpush.msra.mxu0 %v3003
    %3033 = vmatpush.msra.mxu0 %v3001
    %3034 = vmatmul.f32.gmra.mxu0 %v3010
    %v3035 = vpop.f32.mrf.mxu0
    %v3036 = vadd.f32 0.0, %v3035
    %3037 = vmatmul.f32.gmra.mxu0 %v3013
    %v3038 = vpop.f32.mrf.mxu0
    %v3039 = vadd.f32 0.0, %v3038
    %3040 = vmatmul.f32.gmra.mxu0 %v3016
    %v3041 = vpop.f32.mrf.mxu0
    %v3042 = vadd.f32 0.0, %v3041
    %3043 = vdwg.mxu0
    %3044 = vst.msk [vmem:[#allocation3 + $0x18] sm:$0xff] %vm388, %v3036
    %3045 = vst.msk [vmem:[#allocation3 + $0x20] sm:$0xff] %vm388, %v3039
    %3046 = vst.msk [vmem:[#allocation3 + $0x28] sm:$0xff] %vm388, %v3042
    %3047 = vrot.lane.b32.xlu0 %v2329, 120
    %v3048 = vpop.permute.xlu0 %3047
    %3049 = vrot.lane.b32.xlu0 %v2332, 120
    %v3050 = vpop.permute.xlu0 %3049
    %3051 = vrot.lane.b32.xlu0 %v2335, 120
    %v3052 = vpop.permute.xlu0 %3051
    %3053 = vrot.lane.b32.xlu0 %v2329, 88
    %v3054 = vpop.permute.xlu0 %3053
    %3055 = vrot.lane.b32.xlu0 %v2332, 88
    %v3056 = vpop.permute.xlu0 %3055
    %3057 = vrot.lane.b32.xlu0 %v2335, 88
    %v3058 = vpop.permute.xlu0 %3057
    %v3059 = vsel %vm388, %v3048, 0
    %v3061 = vsel %vm388, %v3050, 0
    %v3063 = vsel %vm388, %v3052, 0
    %v3065 = vsel %vm388, %v3054, 0
    %v3067 = vsel %vm388, %v3056, 0
    %v3069 = vsel %vm388, %v3058, 0
    %3071 = vmatpush.xpose.msra.mxu0 0.0
    %3072 = vmatpush.xpose.msra.mxu0 0.0
    %3073 = vmatpush.xpose.msra.mxu0 0.0
    %3074 = vmatpush.xpose.msra.mxu0 0.0
    %3075 = vmatpush.xpose.msra.mxu0 0.0
    %3076 = vmatpush.xpose.msra.mxu0 0.0
    %3077 = vmatpush.xpose.msra.mxu0 0.0
    %3078 = vmatpush.xpose.msra.mxu0 0.0
    %3079 = vmatpush.xpose.msra.mxu0 0.0
    %3080 = vmatpush.xpose.msra.mxu0 0.0
    %3081 = vmatpush.xpose.msra.mxu0 0.0
    %3082 = vmatpush.xpose.msra.mxu0 0.0
    %3083 = vmatpush.xpose.msra.mxu0 0.0
    %3084 = vmatpush.xpose.msra.mxu0 %v3069
    %3085 = vmatpush.xpose.msra.mxu0 %v3067
    %3086 = vmatpush.xpose.msra.mxu0 %v3065
    %3087 = vmatmul.f32.gmra.mxu0 %v3059
    %v3088 = vpop.f32.mrf.mxu0
    %v3089 = vadd.f32 0.0, %v3088
    %3090 = vmatmul.f32.gmra.mxu0 %v3061
    %v3091 = vpop.f32.mrf.mxu0
    %v3092 = vadd.f32 0.0, %v3091
    %3093 = vmatmul.f32.gmra.mxu0 %v3063
    %v3094 = vpop.f32.mrf.mxu0
    %v3095 = vadd.f32 0.0, %v3094
    %3096 = vdwg.mxu0
    %v3097 = vmul.f32 %v3089, 0.35355338
    %v3098 = vmul.f32 %v3092, 0.35355338
    %v3099 = vmul.f32 %v3095, 0.35355338
    %v3100 = vadd.f32 %v3097, %v162
    %v3101 = vadd.f32 %v3098, %v162
    %v3102 = vadd.f32 %v3099, %v162
    %v3103 = vsel %vm433, %v3100, -inf
    %3104 = vmax.xlane.f32.xlu0 %v3103
    %v3105 = vpop.xlane.xlu0 %3104
    %v3106 = vsel %vm433, %v3101, -inf
    %3107 = vmax.xlane.f32.xlu0 %v3106
    %v3108 = vpop.xlane.xlu0 %3107
    %v3109 = vsel %vm433, %v3102, -inf
    %3110 = vmax.xlane.f32.xlu0 %v3109
    %v3111 = vpop.xlane.xlu0 %3110
    %v3112 = vsub.f32 %v3100, %v3105
    %v3113 = vsub.f32 %v3101, %v3108
    %v3114 = vsub.f32 %v3102, %v3111
    %v3115 = vmul.f32 %v3112, 1.442695
    %v3116 = vpow.pop %v3115
    %v3117 = vmul.f32 %v3113, 1.442695
    %v3118 = vpow.pop %v3117
    %v3119 = vmul.f32 %v3114, 1.442695
    %v3120 = vpow.pop %v3119
    %v3121 = vsel %vm433, %v3116, 0.0
    %3122 = vadd.xlane.f32.xlu0 %v3121
    %v3123 = vpop.xlane.xlu0 %3122
    %v3124 = vsel %vm433, %v3118, 0.0
    %3125 = vadd.xlane.f32.xlu0 %v3124
    %v3126 = vpop.xlane.xlu0 %3125
    %v3127 = vsel %vm433, %v3120, 0.0
    %3128 = vadd.xlane.f32.xlu0 %v3127
    %v3129 = vpop.xlane.xlu0 %3128
    %v3130 = vrcp.pop %v3123
    %v3131 = vrcp.pop %v3126
    %v3132 = vrcp.pop %v3129
    %v3133 = vmul.f32 %v3116, %v3130
    %v3134 = vmul.f32 %v3118, %v3131
    %v3135 = vmul.f32 %v3120, %v3132
    %3136 = vrot.lane.b32.xlu0 %v2329, 56
    %v3137 = vpop.permute.xlu0 %3136
    %3138 = vrot.lane.b32.xlu0 %v2332, 56
    %v3139 = vpop.permute.xlu0 %3138
    %3140 = vrot.lane.b32.xlu0 %v2335, 56
    %v3141 = vpop.permute.xlu0 %3140
    %v3146 = vsel %vm433, %v3133, 0
    %v3149 = vsel %vm433, %v3134, 0
    %v3152 = vsel %vm433, %v3135, 0
    %3154 = vmatpush.msra.mxu0 0.0
    %3155 = vmatpush.msra.mxu0 0.0
    %3156 = vmatpush.msra.mxu0 0.0
    %3157 = vmatpush.msra.mxu0 0.0
    %3158 = vmatpush.msra.mxu0 0.0
    %3159 = vmatpush.msra.mxu0 0.0
    %3160 = vmatpush.msra.mxu0 0.0
    %3161 = vmatpush.msra.mxu0 0.0
    %3162 = vmatpush.msra.mxu0 0.0
    %3163 = vmatpush.msra.mxu0 0.0
    %3164 = vmatpush.msra.mxu0 0.0
    %3165 = vmatpush.msra.mxu0 0.0
    %3166 = vmatpush.msra.mxu0 0.0
    %3167 = vmatpush.msra.mxu0 %v3141
    %3168 = vmatpush.msra.mxu0 %v3139
    %3169 = vmatpush.msra.mxu0 %v3137
    %3170 = vmatmul.f32.gmra.mxu0 %v3146
    %v3171 = vpop.f32.mrf.mxu0
    %v3172 = vadd.f32 0.0, %v3171
    %3173 = vmatmul.f32.gmra.mxu0 %v3149
    %v3174 = vpop.f32.mrf.mxu0
    %v3175 = vadd.f32 0.0, %v3174
    %3176 = vmatmul.f32.gmra.mxu0 %v3152
    %v3177 = vpop.f32.mrf.mxu0
    %v3178 = vadd.f32 0.0, %v3177
    %3179 = vdwg.mxu0
    %3183 = vrot.lane.b32.xlu0 %v3172, 8
    %v3184 = vpop.permute.xlu0 %3183
    %3185 = vrot.lane.b32.xlu0 %v3175, 8
    %v3186 = vpop.permute.xlu0 %3185
    %3187 = vrot.lane.b32.xlu0 %v3178, 8
    %v3188 = vpop.permute.xlu0 %3187
    %3192 = vst.msk [vmem:[#allocation3 + $0x18] sm:$0xff] %vm659, %v3184
    %3193 = vst.msk [vmem:[#allocation3 + $0x20] sm:$0xff] %vm659, %v3186
    %3194 = vst.msk [vmem:[#allocation3 + $0x28] sm:$0xff] %vm659, %v3188
    %3195 = vrot.lane.b32.xlu0 %v2329, 112
    %v3196 = vpop.permute.xlu0 %3195
    %3197 = vrot.lane.b32.xlu0 %v2332, 112
    %v3198 = vpop.permute.xlu0 %3197
    %3199 = vrot.lane.b32.xlu0 %v2335, 112
    %v3200 = vpop.permute.xlu0 %3199
    %3201 = vrot.lane.b32.xlu0 %v2329, 80
    %v3202 = vpop.permute.xlu0 %3201
    %3203 = vrot.lane.b32.xlu0 %v2332, 80
    %v3204 = vpop.permute.xlu0 %3203
    %3205 = vrot.lane.b32.xlu0 %v2335, 80
    %v3206 = vpop.permute.xlu0 %3205
    %v3207 = vsel %vm388, %v3196, 0
    %v3209 = vsel %vm388, %v3198, 0
    %v3211 = vsel %vm388, %v3200, 0
    %v3213 = vsel %vm388, %v3202, 0
    %v3215 = vsel %vm388, %v3204, 0
    %v3217 = vsel %vm388, %v3206, 0
    %3219 = vmatpush.xpose.msra.mxu0 0.0
    %3220 = vmatpush.xpose.msra.mxu0 0.0
    %3221 = vmatpush.xpose.msra.mxu0 0.0
    %3222 = vmatpush.xpose.msra.mxu0 0.0
    %3223 = vmatpush.xpose.msra.mxu0 0.0
    %3224 = vmatpush.xpose.msra.mxu0 0.0
    %3225 = vmatpush.xpose.msra.mxu0 0.0
    %3226 = vmatpush.xpose.msra.mxu0 0.0
    %3227 = vmatpush.xpose.msra.mxu0 0.0
    %3228 = vmatpush.xpose.msra.mxu0 0.0
    %3229 = vmatpush.xpose.msra.mxu0 0.0
    %3230 = vmatpush.xpose.msra.mxu0 0.0
    %3231 = vmatpush.xpose.msra.mxu0 0.0
    %3232 = vmatpush.xpose.msra.mxu0 %v3217
    %3233 = vmatpush.xpose.msra.mxu0 %v3215
    %3234 = vmatpush.xpose.msra.mxu0 %v3213
    %3235 = vmatmul.f32.gmra.mxu0 %v3207
    %v3236 = vpop.f32.mrf.mxu0
    %v3237 = vadd.f32 0.0, %v3236
    %3238 = vmatmul.f32.gmra.mxu0 %v3209
    %v3239 = vpop.f32.mrf.mxu0
    %v3240 = vadd.f32 0.0, %v3239
    %3241 = vmatmul.f32.gmra.mxu0 %v3211
    %v3242 = vpop.f32.mrf.mxu0
    %v3243 = vadd.f32 0.0, %v3242
    %3244 = vdwg.mxu0
    %v3245 = vmul.f32 %v3237, 0.35355338
    %v3246 = vmul.f32 %v3240, 0.35355338
    %v3247 = vmul.f32 %v3243, 0.35355338
    %v3248 = vadd.f32 %v3245, %v162
    %v3249 = vadd.f32 %v3246, %v162
    %v3250 = vadd.f32 %v3247, %v162
    %v3251 = vsel %vm433, %v3248, -inf
    %3252 = vmax.xlane.f32.xlu0 %v3251
    %v3253 = vpop.xlane.xlu0 %3252
    %v3254 = vsel %vm433, %v3249, -inf
    %3255 = vmax.xlane.f32.xlu0 %v3254
    %v3256 = vpop.xlane.xlu0 %3255
    %v3257 = vsel %vm433, %v3250, -inf
    %3258 = vmax.xlane.f32.xlu0 %v3257
    %v3259 = vpop.xlane.xlu0 %3258
    %v3260 = vsub.f32 %v3248, %v3253
    %v3261 = vsub.f32 %v3249, %v3256
    %v3262 = vsub.f32 %v3250, %v3259
    %v3263 = vmul.f32 %v3260, 1.442695
    %v3264 = vpow.pop %v3263
    %v3265 = vmul.f32 %v3261, 1.442695
    %v3266 = vpow.pop %v3265
    %v3267 = vmul.f32 %v3262, 1.442695
    %v3268 = vpow.pop %v3267
    %v3269 = vsel %vm433, %v3264, 0.0
    %3270 = vadd.xlane.f32.xlu0 %v3269
    %v3271 = vpop.xlane.xlu0 %3270
    %v3272 = vsel %vm433, %v3266, 0.0
    %3273 = vadd.xlane.f32.xlu0 %v3272
    %v3274 = vpop.xlane.xlu0 %3273
    %v3275 = vsel %vm433, %v3268, 0.0
    %3276 = vadd.xlane.f32.xlu0 %v3275
    %v3277 = vpop.xlane.xlu0 %3276
    %v3278 = vrcp.pop %v3271
    %v3279 = vrcp.pop %v3274
    %v3280 = vrcp.pop %v3277
    %v3281 = vmul.f32 %v3264, %v3278
    %v3282 = vmul.f32 %v3266, %v3279
    %v3283 = vmul.f32 %v3268, %v3280
    %3284 = vrot.lane.b32.xlu0 %v2329, 48
    %v3285 = vpop.permute.xlu0 %3284
    %3286 = vrot.lane.b32.xlu0 %v2332, 48
    %v3287 = vpop.permute.xlu0 %3286
    %3288 = vrot.lane.b32.xlu0 %v2335, 48
    %v3289 = vpop.permute.xlu0 %3288
    %v3294 = vsel %vm433, %v3281, 0
    %v3297 = vsel %vm433, %v3282, 0
    %v3300 = vsel %vm433, %v3283, 0
    %3302 = vmatpush.msra.mxu0 0.0
    %3303 = vmatpush.msra.mxu0 0.0
    %3304 = vmatpush.msra.mxu0 0.0
    %3305 = vmatpush.msra.mxu0 0.0
    %3306 = vmatpush.msra.mxu0 0.0
    %3307 = vmatpush.msra.mxu0 0.0
    %3308 = vmatpush.msra.mxu0 0.0
    %3309 = vmatpush.msra.mxu0 0.0
    %3310 = vmatpush.msra.mxu0 0.0
    %3311 = vmatpush.msra.mxu0 0.0
    %3312 = vmatpush.msra.mxu0 0.0
    %3313 = vmatpush.msra.mxu0 0.0
    %3314 = vmatpush.msra.mxu0 0.0
    %3315 = vmatpush.msra.mxu0 %v3289
    %3316 = vmatpush.msra.mxu0 %v3287
    %3317 = vmatpush.msra.mxu0 %v3285
    %3318 = vmatmul.f32.gmra.mxu0 %v3294
    %v3319 = vpop.f32.mrf.mxu0
    %v3320 = vadd.f32 0.0, %v3319
    %3321 = vmatmul.f32.gmra.mxu0 %v3297
    %v3322 = vpop.f32.mrf.mxu0
    %v3323 = vadd.f32 0.0, %v3322
    %3324 = vmatmul.f32.gmra.mxu0 %v3300
    %v3325 = vpop.f32.mrf.mxu0
    %v3326 = vadd.f32 0.0, %v3325
    %3327 = vdwg.mxu0
    %3331 = vrot.lane.b32.xlu0 %v3320, 16
    %v3332 = vpop.permute.xlu0 %3331
    %3333 = vrot.lane.b32.xlu0 %v3323, 16
    %v3334 = vpop.permute.xlu0 %3333
    %3335 = vrot.lane.b32.xlu0 %v3326, 16
    %v3336 = vpop.permute.xlu0 %3335
    %3340 = vst.msk [vmem:[#allocation3 + $0x18] sm:$0xff] %vm808, %v3332
    %3341 = vst.msk [vmem:[#allocation3 + $0x20] sm:$0xff] %vm808, %v3334
    %3342 = vst.msk [vmem:[#allocation3 + $0x28] sm:$0xff] %vm808, %v3336
    %3343 = vrot.lane.b32.xlu0 %v2329, 104
    %v3344 = vpop.permute.xlu0 %3343
    %3345 = vrot.lane.b32.xlu0 %v2332, 104
    %v3346 = vpop.permute.xlu0 %3345
    %3347 = vrot.lane.b32.xlu0 %v2335, 104
    %v3348 = vpop.permute.xlu0 %3347
    %3349 = vrot.lane.b32.xlu0 %v2329, 72
    %v3350 = vpop.permute.xlu0 %3349
    %3351 = vrot.lane.b32.xlu0 %v2332, 72
    %v3352 = vpop.permute.xlu0 %3351
    %3353 = vrot.lane.b32.xlu0 %v2335, 72
    %v3354 = vpop.permute.xlu0 %3353
    %v3355 = vsel %vm388, %v3344, 0
    %v3357 = vsel %vm388, %v3346, 0
    %v3359 = vsel %vm388, %v3348, 0
    %v3361 = vsel %vm388, %v3350, 0
    %v3363 = vsel %vm388, %v3352, 0
    %v3365 = vsel %vm388, %v3354, 0
    %3367 = vmatpush.xpose.msra.mxu0 0.0
    %3368 = vmatpush.xpose.msra.mxu0 0.0
    %3369 = vmatpush.xpose.msra.mxu0 0.0
    %3370 = vmatpush.xpose.msra.mxu0 0.0
    %3371 = vmatpush.xpose.msra.mxu0 0.0
    %3372 = vmatpush.xpose.msra.mxu0 0.0
    %3373 = vmatpush.xpose.msra.mxu0 0.0
    %3374 = vmatpush.xpose.msra.mxu0 0.0
    %3375 = vmatpush.xpose.msra.mxu0 0.0
    %3376 = vmatpush.xpose.msra.mxu0 0.0
    %3377 = vmatpush.xpose.msra.mxu0 0.0
    %3378 = vmatpush.xpose.msra.mxu0 0.0
    %3379 = vmatpush.xpose.msra.mxu0 0.0
    %3380 = vmatpush.xpose.msra.mxu0 %v3365
    %3381 = vmatpush.xpose.msra.mxu0 %v3363
    %3382 = vmatpush.xpose.msra.mxu0 %v3361
    %3383 = vmatmul.f32.gmra.mxu0 %v3355
    %v3384 = vpop.f32.mrf.mxu0
    %v3385 = vadd.f32 0.0, %v3384
    %3386 = vmatmul.f32.gmra.mxu0 %v3357
    %v3387 = vpop.f32.mrf.mxu0
    %v3388 = vadd.f32 0.0, %v3387
    %3389 = vmatmul.f32.gmra.mxu0 %v3359
    %v3390 = vpop.f32.mrf.mxu0
    %v3391 = vadd.f32 0.0, %v3390
    %3392 = vdwg.mxu0
    %v3393 = vmul.f32 %v3385, 0.35355338
    %v3394 = vmul.f32 %v3388, 0.35355338
    %v3395 = vmul.f32 %v3391, 0.35355338
    %v3396 = vadd.f32 %v3393, %v162
    %v3397 = vadd.f32 %v3394, %v162
    %v3398 = vadd.f32 %v3395, %v162
    %v3399 = vsel %vm433, %v3396, -inf
    %3400 = vmax.xlane.f32.xlu0 %v3399
    %v3401 = vpop.xlane.xlu0 %3400
    %v3402 = vsel %vm433, %v3397, -inf
    %3403 = vmax.xlane.f32.xlu0 %v3402
    %v3404 = vpop.xlane.xlu0 %3403
    %v3405 = vsel %vm433, %v3398, -inf
    %3406 = vmax.xlane.f32.xlu0 %v3405
    %v3407 = vpop.xlane.xlu0 %3406
    %v3408 = vsub.f32 %v3396, %v3401
    %v3409 = vsub.f32 %v3397, %v3404
    %v3410 = vsub.f32 %v3398, %v3407
    %v3411 = vmul.f32 %v3408, 1.442695
    %v3412 = vpow.pop %v3411
    %v3413 = vmul.f32 %v3409, 1.442695
    %v3414 = vpow.pop %v3413
    %v3415 = vmul.f32 %v3410, 1.442695
    %v3416 = vpow.pop %v3415
    %v3417 = vsel %vm433, %v3412, 0.0
    %3418 = vadd.xlane.f32.xlu0 %v3417
    %v3419 = vpop.xlane.xlu0 %3418
    %v3420 = vsel %vm433, %v3414, 0.0
    %3421 = vadd.xlane.f32.xlu0 %v3420
    %v3422 = vpop.xlane.xlu0 %3421
    %v3423 = vsel %vm433, %v3416, 0.0
    %3424 = vadd.xlane.f32.xlu0 %v3423
    %v3425 = vpop.xlane.xlu0 %3424
    %v3426 = vrcp.pop %v3419
    %v3427 = vrcp.pop %v3422
    %v3428 = vrcp.pop %v3425
    %v3429 = vmul.f32 %v3412, %v3426
    %v3430 = vmul.f32 %v3414, %v3427
    %v3431 = vmul.f32 %v3416, %v3428
    %3432 = vrot.lane.b32.xlu0 %v2329, 40
    %v3433 = vpop.permute.xlu0 %3432
    %3434 = vrot.lane.b32.xlu0 %v2332, 40
    %v3435 = vpop.permute.xlu0 %3434
    %3436 = vrot.lane.b32.xlu0 %v2335, 40
    %v3437 = vpop.permute.xlu0 %3436
    %v3442 = vsel %vm433, %v3429, 0
    %v3445 = vsel %vm433, %v3430, 0
    %v3448 = vsel %vm433, %v3431, 0
    %3450 = vmatpush.msra.mxu0 0.0
    %3451 = vmatpush.msra.mxu0 0.0
    %3452 = vmatpush.msra.mxu0 0.0
    %3453 = vmatpush.msra.mxu0 0.0
    %3454 = vmatpush.msra.mxu0 0.0
    %3455 = vmatpush.msra.mxu0 0.0
    %3456 = vmatpush.msra.mxu0 0.0
    %3457 = vmatpush.msra.mxu0 0.0
    %3458 = vmatpush.msra.mxu0 0.0
    %3459 = vmatpush.msra.mxu0 0.0
    %3460 = vmatpush.msra.mxu0 0.0
    %3461 = vmatpush.msra.mxu0 0.0
    %3462 = vmatpush.msra.mxu0 0.0
    %3463 = vmatpush.msra.mxu0 %v3437
    %3464 = vmatpush.msra.mxu0 %v3435
    %3465 = vmatpush.msra.mxu0 %v3433
    %3466 = vmatmul.f32.gmra.mxu0 %v3442
    %v3467 = vpop.f32.mrf.mxu0
    %v3468 = vadd.f32 0.0, %v3467
    %3469 = vmatmul.f32.gmra.mxu0 %v3445
    %v3470 = vpop.f32.mrf.mxu0
    %v3471 = vadd.f32 0.0, %v3470
    %3472 = vmatmul.f32.gmra.mxu0 %v3448
    %v3473 = vpop.f32.mrf.mxu0
    %v3474 = vadd.f32 0.0, %v3473
    %3475 = vdwg.mxu0
    %3479 = vrot.lane.b32.xlu0 %v3468, 24
    %v3480 = vpop.permute.xlu0 %3479
    %3481 = vrot.lane.b32.xlu0 %v3471, 24
    %v3482 = vpop.permute.xlu0 %3481
    %3483 = vrot.lane.b32.xlu0 %v3474, 24
    %v3484 = vpop.permute.xlu0 %3483
    %3488 = vst.msk [vmem:[#allocation3 + $0x18] sm:$0xff] %vm957, %v3480
    %3489 = vst.msk [vmem:[#allocation3 + $0x20] sm:$0xff] %vm957, %v3482
    %3490 = vst.msk [vmem:[#allocation3 + $0x28] sm:$0xff] %vm957, %v3484
    %v3491 = vld [vmem:[#allocation3] sm:$0xff]
    %v3492 = vld [vmem:[#allocation3 + $0x8] sm:$0xff]
    %v3493 = vld [vmem:[#allocation3 + $0x10] sm:$0xff]
    %v3494 = vld [vmem:[#allocation3 + $0x18] sm:$0xff]
    %v3495 = vld [vmem:[#allocation3 + $0x20] sm:$0xff]
    %v3496 = vld [vmem:[#allocation3 + $0x28] sm:$0xff]
    %s3497 = scalar_lea.vmem %s8, 32
    %v3498 = vld [vmem:[%s3497] sm:$0xff]
    %v3499 = vld [vmem:[%s3497 + $0x8] sm:$0xff]
    %v3500 = vld [vmem:[%s3497 + $0x10] sm:$0xff]
    %v3501 = vld [vmem:[%s3497 + $0x18] sm:$0xff]
    %s3502 = scalar_lea.vmem %s9, 1
    %v3503 = vld [vmem:[%s3502] sm:$0x1]
    %v3505 = vperm.slane %v3503, 0
    %v3508 = vsel %vm142, %v3491, 0
    %v3511 = vsel %vm142, %v3492, 0
    %v3514 = vsel %vm142, %v3493, 0
    %v3517 = vsel %vm142, %v3494, 0
    %v3520 = vsel %vm142, %v3495, 0
    %v3523 = vsel %vm142, %v3496, 0
    %3525 = vmatpush.msra.mxu0 0.0
    %3526 = vmatpush.msra.mxu0 0.0
    %3527 = vmatpush.msra.mxu0 0.0
    %3528 = vmatpush.msra.mxu0 0.0
    %3529 = vmatpush.msra.mxu0 0.0
    %3530 = vmatpush.msra.mxu0 0.0
    %3531 = vmatpush.msra.mxu0 0.0
    %3532 = vmatpush.msra.mxu0 0.0
    %3533 = vmatpush.msra.mxu0 0.0
    %3534 = vmatpush.msra.mxu0 0.0
    %3535 = vmatpush.msra.mxu0 0.0
    %3536 = vmatpush.msra.mxu0 0.0
    %3537 = vmatpush.msra.mxu0 %v3501
    %3538 = vmatpush.msra.mxu0 %v3500
    %3539 = vmatpush.msra.mxu0 %v3499
    %3540 = vmatpush.msra.mxu0 %v3498
    %3541 = vmatmul.f32.gmra.mxu0 %v3508
    %v3542 = vpop.f32.mrf.mxu0
    %v3543 = vadd.f32 %v3505, %v3542
    %3544 = vmatmul.f32.gmra.mxu0 %v3511
    %v3545 = vpop.f32.mrf.mxu0
    %v3546 = vadd.f32 %v3505, %v3545
    %3547 = vmatmul.f32.gmra.mxu0 %v3514
    %v3548 = vpop.f32.mrf.mxu0
    %v3549 = vadd.f32 %v3505, %v3548
    %3550 = vmatmul.f32.gmra.mxu0 %v3517
    %v3551 = vpop.f32.mrf.mxu0
    %v3552 = vadd.f32 %v3505, %v3551
    %3553 = vmatmul.f32.gmra.mxu0 %v3520
    %v3554 = vpop.f32.mrf.mxu0
    %v3555 = vadd.f32 %v3505, %v3554
    %3556 = vmatmul.f32.gmra.mxu0 %v3523
    %v3557 = vpop.f32.mrf.mxu0
    %v3558 = vadd.f32 %v3505, %v3557
    %3559 = vdwg.mxu0
    %v3560 = vadd.f32 %v2119, %v3543
    %v3561 = vadd.f32 %v2120, %v3546
    %v3562 = vadd.f32 %v2121, %v3549
    %v3563 = vadd.f32 %v2122, %v3552
    %v3564 = vadd.f32 %v2123, %v3555
    %v3565 = vadd.f32 %v2124, %v3558
    %s3566 = scalar_lea.vmem %s10, 1
    %v3567 = vld [vmem:[%s3566] sm:$0x1]
    %s3568 = scalar_lea.vmem %s11, 1
    %v3569 = vld [vmem:[%s3568] sm:$0x1]
    %v3570 = vsel %vm142, %v3560, 0.0
    %3571 = vadd.xlane.f32.xlu0 %v3570
    %v3572 = vpop.xlane.xlu0 %3571
    %v3573 = vsel %vm142, %v3561, 0.0
    %3574 = vadd.xlane.f32.xlu0 %v3573
    %v3575 = vpop.xlane.xlu0 %3574
    %v3576 = vsel %vm142, %v3562, 0.0
    %3577 = vadd.xlane.f32.xlu0 %v3576
    %v3578 = vpop.xlane.xlu0 %3577
    %v3579 = vsel %vm142, %v3563, 0.0
    %3580 = vadd.xlane.f32.xlu0 %v3579
    %v3581 = vpop.xlane.xlu0 %3580
    %v3582 = vsel %vm142, %v3564, 0.0
    %3583 = vadd.xlane.f32.xlu0 %v3582
    %v3584 = vpop.xlane.xlu0 %3583
    %v3585 = vsel %vm142, %v3565, 0.0
    %3586 = vadd.xlane.f32.xlu0 %v3585
    %v3587 = vpop.xlane.xlu0 %3586
    %v3588 = vmul.f32 %v3572, %v189
    %v3589 = vmul.f32 %v3575, %v189
    %v3590 = vmul.f32 %v3578, %v189
    %v3591 = vmul.f32 %v3581, %v189
    %v3592 = vmul.f32 %v3584, %v189
    %v3593 = vmul.f32 %v3587, %v189
    %v3594 = vsub.f32 %v3560, %v3588
    %v3595 = vsub.f32 %v3561, %v3589
    %v3596 = vsub.f32 %v3562, %v3590
    %v3597 = vsub.f32 %v3563, %v3591
    %v3598 = vsub.f32 %v3564, %v3592
    %v3599 = vsub.f32 %v3565, %v3593
    %v3600 = vmul.f32 %v3594, %v3594
    %v3601 = vmul.f32 %v3595, %v3595
    %v3602 = vmul.f32 %v3596, %v3596
    %v3603 = vmul.f32 %v3597, %v3597
    %v3604 = vmul.f32 %v3598, %v3598
    %v3605 = vmul.f32 %v3599, %v3599
    %v3606 = vsel %vm142, %v3600, 0.0
    %3607 = vadd.xlane.f32.xlu0 %v3606
    %v3608 = vpop.xlane.xlu0 %3607
    %v3609 = vsel %vm142, %v3601, 0.0
    %3610 = vadd.xlane.f32.xlu0 %v3609
    %v3611 = vpop.xlane.xlu0 %3610
    %v3612 = vsel %vm142, %v3602, 0.0
    %3613 = vadd.xlane.f32.xlu0 %v3612
    %v3614 = vpop.xlane.xlu0 %3613
    %v3615 = vsel %vm142, %v3603, 0.0
    %3616 = vadd.xlane.f32.xlu0 %v3615
    %v3617 = vpop.xlane.xlu0 %3616
    %v3618 = vsel %vm142, %v3604, 0.0
    %3619 = vadd.xlane.f32.xlu0 %v3618
    %v3620 = vpop.xlane.xlu0 %3619
    %v3621 = vsel %vm142, %v3605, 0.0
    %3622 = vadd.xlane.f32.xlu0 %v3621
    %v3623 = vpop.xlane.xlu0 %3622
    %v3624 = vmul.f32 %v3608, %v189
    %v3625 = vmul.f32 %v3611, %v189
    %v3626 = vmul.f32 %v3614, %v189
    %v3627 = vmul.f32 %v3617, %v189
    %v3628 = vmul.f32 %v3620, %v189
    %v3629 = vmul.f32 %v3623, %v189
    %v3630 = vadd.f32 %v3624, 1e-05
    %v3631 = vadd.f32 %v3625, 1e-05
    %v3632 = vadd.f32 %v3626, 1e-05
    %v3633 = vadd.f32 %v3627, 1e-05
    %v3634 = vadd.f32 %v3628, 1e-05
    %v3635 = vadd.f32 %v3629, 1e-05
    %v3636 = vrsqrt.pop %v3630
    %v3637 = vmul.f32 %v3636, %v3630
    %v3638 = vmul.f32 %v3637, %v3636
    %v3639 = vmul.f32 0.5, %v3638
    %v3640 = vsub.f32 1.5, %v3639
    %v3641 = vmul.f32 %v3636, %v3640
    %vm3642 = vweird.f32 %v3630
    %vm3643 = vweird.f32 %v3636
    %vm3644 = vmor %vm3642, %vm3643
    %v3645 = vsel %vm3644, %v3636, %v3641
    %v3646 = vrsqrt.pop %v3631
    %v3647 = vmul.f32 %v3646, %v3631
    %v3648 = vmul.f32 %v3647, %v3646
    %v3649 = vmul.f32 0.5, %v3648
    %v3650 = vsub.f32 1.5, %v3649
    %v3651 = vmul.f32 %v3646, %v3650
    %vm3652 = vweird.f32 %v3631
    %vm3653 = vweird.f32 %v3646
    %vm3654 = vmor %vm3652, %vm3653
    %v3655 = vsel %vm3654, %v3646, %v3651
    %v3656 = vrsqrt.pop %v3632
    %v3657 = vmul.f32 %v3656, %v3632
    %v3658 = vmul.f32 %v3657, %v3656
    %v3659 = vmul.f32 0.5, %v3658
    %v3660 = vsub.f32 1.5, %v3659
    %v3661 = vmul.f32 %v3656, %v3660
    %vm3662 = vweird.f32 %v3632
    %vm3663 = vweird.f32 %v3656
    %vm3664 = vmor %vm3662, %vm3663
    %v3665 = vsel %vm3664, %v3656, %v3661
    %v3666 = vrsqrt.pop %v3633
    %v3667 = vmul.f32 %v3666, %v3633
    %v3668 = vmul.f32 %v3667, %v3666
    %v3669 = vmul.f32 0.5, %v3668
    %v3670 = vsub.f32 1.5, %v3669
    %v3671 = vmul.f32 %v3666, %v3670
    %vm3672 = vweird.f32 %v3633
    %vm3673 = vweird.f32 %v3666
    %vm3674 = vmor %vm3672, %vm3673
    %v3675 = vsel %vm3674, %v3666, %v3671
    %v3676 = vrsqrt.pop %v3634
    %v3677 = vmul.f32 %v3676, %v3634
    %v3678 = vmul.f32 %v3677, %v3676
    %v3679 = vmul.f32 0.5, %v3678
    %v3680 = vsub.f32 1.5, %v3679
    %v3681 = vmul.f32 %v3676, %v3680
    %vm3682 = vweird.f32 %v3634
    %vm3683 = vweird.f32 %v3676
    %vm3684 = vmor %vm3682, %vm3683
    %v3685 = vsel %vm3684, %v3676, %v3681
    %v3686 = vrsqrt.pop %v3635
    %v3687 = vmul.f32 %v3686, %v3635
    %v3688 = vmul.f32 %v3687, %v3686
    %v3689 = vmul.f32 0.5, %v3688
    %v3690 = vsub.f32 1.5, %v3689
    %v3691 = vmul.f32 %v3686, %v3690
    %vm3692 = vweird.f32 %v3635
    %vm3693 = vweird.f32 %v3686
    %vm3694 = vmor %vm3692, %vm3693
    %v3695 = vsel %vm3694, %v3686, %v3691
    %v3696 = vmul.f32 %v3594, %v3645
    %v3697 = vmul.f32 %v3595, %v3655
    %v3698 = vmul.f32 %v3596, %v3665
    %v3699 = vmul.f32 %v3597, %v3675
    %v3700 = vmul.f32 %v3598, %v3685
    %v3701 = vmul.f32 %v3599, %v3695
    %v3703 = vperm.slane %v3567, 0
    %v3705 = vmul.f32 %v3696, %v3703
    %v3706 = vmul.f32 %v3697, %v3703
    %v3707 = vmul.f32 %v3698, %v3703
    %v3708 = vmul.f32 %v3699, %v3703
    %v3709 = vmul.f32 %v3700, %v3703
    %v3710 = vmul.f32 %v3701, %v3703
    %v3712 = vperm.slane %v3569, 0
    %v3714 = vadd.f32 %v3705, %v3712
    %v3715 = vadd.f32 %v3706, %v3712
    %v3716 = vadd.f32 %v3707, %v3712
    %v3717 = vadd.f32 %v3708, %v3712
    %v3718 = vadd.f32 %v3709, %v3712
    %v3719 = vadd.f32 %v3710, %v3712
    %s3720 = scalar_lea.vmem %s12, 32
    %v3721 = vld [vmem:[%s3720] sm:$0xff]
    %v3722 = vld [vmem:[%s3720 + $0x8] sm:$0xff]
    %v3723 = vld [vmem:[%s3720 + $0x10] sm:$0xff]
    %v3724 = vld [vmem:[%s3720 + $0x18] sm:$0xff]
    %s3725 = scalar_lea.vmem %s13, 1
    %v3726 = vld [vmem:[%s3725] sm:$0x1]
    %v3728 = vperm.slane %v3726, 0
    %v3731 = vsel %vm142, %v3714, 0
    %v3734 = vsel %vm142, %v3715, 0
    %v3737 = vsel %vm142, %v3716, 0
    %v3740 = vsel %vm142, %v3717, 0
    %v3743 = vsel %vm142, %v3718, 0
    %v3746 = vsel %vm142, %v3719, 0
    %3748 = vmatpush.msra.mxu0 0.0
    %3749 = vmatpush.msra.mxu0 0.0
    %3750 = vmatpush.msra.mxu0 0.0
    %3751 = vmatpush.msra.mxu0 0.0
    %3752 = vmatpush.msra.mxu0 0.0
    %3753 = vmatpush.msra.mxu0 0.0
    %3754 = vmatpush.msra.mxu0 0.0
    %3755 = vmatpush.msra.mxu0 0.0
    %3756 = vmatpush.msra.mxu0 0.0
    %3757 = vmatpush.msra.mxu0 0.0
    %3758 = vmatpush.msra.mxu0 0.0
    %3759 = vmatpush.msra.mxu0 0.0
    %3760 = vmatpush.msra.mxu0 %v3724
    %3761 = vmatpush.msra.mxu0 %v3723
    %3762 = vmatpush.msra.mxu0 %v3722
    %3763 = vmatpush.msra.mxu0 %v3721
    %3764 = vmatmul.f32.gmra.mxu0 %v3731
    %v3765 = vpop.f32.mrf.mxu0
    %v3766 = vadd.f32 %v3728, %v3765
    %3767 = vmatmul.f32.gmra.mxu0 %v3734
    %v3768 = vpop.f32.mrf.mxu0
    %v3769 = vadd.f32 %v3728, %v3768
    %3770 = vmatmul.f32.gmra.mxu0 %v3737
    %v3771 = vpop.f32.mrf.mxu0
    %v3772 = vadd.f32 %v3728, %v3771
    %3773 = vmatmul.f32.gmra.mxu0 %v3740
    %v3774 = vpop.f32.mrf.mxu0
    %v3775 = vadd.f32 %v3728, %v3774
    %3776 = vmatmul.f32.gmra.mxu0 %v3743
    %v3777 = vpop.f32.mrf.mxu0
    %v3778 = vadd.f32 %v3728, %v3777
    %3779 = vmatmul.f32.gmra.mxu0 %v3746
    %v3780 = vpop.f32.mrf.mxu0
    %v3781 = vadd.f32 %v3728, %v3780
    %3782 = vdwg.mxu0
    %v3783 = vmul.f32 %v3766, 0.5
    %v3784 = vmul.f32 %v3769, 0.5
    %v3785 = vmul.f32 %v3772, 0.5
    %v3786 = vmul.f32 %v3775, 0.5
    %v3787 = vmul.f32 %v3778, 0.5
    %v3788 = vmul.f32 %v3781, 0.5
    %v3789 = vmul.f32 %v3766, 0.70710677
    %v3790 = vmul.f32 %v3769, 0.70710677
    %v3791 = vmul.f32 %v3772, 0.70710677
    %v3792 = vmul.f32 %v3775, 0.70710677
    %v3793 = vmul.f32 %v3778, 0.70710677
    %v3794 = vmul.f32 %v3781, 0.70710677
    %v3795 = vand.u32 2147483647, %v3789
    %v3796 = vand.u32 2147483647, %v3790
    %v3797 = vand.u32 2147483647, %v3791
    %v3798 = vand.u32 2147483647, %v3792
    %v3799 = vand.u32 2147483647, %v3793
    %v3800 = vand.u32 2147483647, %v3794
    %v3801 = vmul.f32 %v3795, 0.3275911
    %v3802 = vmul.f32 %v3796, 0.3275911
    %v3803 = vmul.f32 %v3797, 0.3275911
    %v3804 = vmul.f32 %v3798, 0.3275911
    %v3805 = vmul.f32 %v3799, 0.3275911
    %v3806 = vmul.f32 %v3800, 0.3275911
    %v3807 = vadd.f32 %v3801, 1.0
    %v3808 = vadd.f32 %v3802, 1.0
    %v3809 = vadd.f32 %v3803, 1.0
    %v3810 = vadd.f32 %v3804, 1.0
    %v3811 = vadd.f32 %v3805, 1.0
    %v3812 = vadd.f32 %v3806, 1.0
    %v3813 = vrcp.pop %v3807
    %v3814 = vmul.f32 %v3807, %v3813
    %v3815 = vsub.f32 1.0, %v3814
    %v3816 = vmul.f32 %v3813, %v3815
    %v3817 = vadd.f32 %v3813, %v3816
    %vm3818 = vweird.f32 %v3807
    %vm3819 = vweird.f32 %v3813
    %vm3820 = vmor %vm3818, %vm3819
    %v3821 = vsel %vm3820, %v3813, %v3817
    %v3822 = vand.u32 2147483647, %v3807
    %vm3823 = vcmp.eq.f32.partialorder %v3822, 8.507059e+37
    %v3824 = vand.u32 %v3807, 2147483648
    %v3825 = vor.u32 1.1754944e-38, %v3824
    %v3826 = vsel %vm3823, %v3825, %v3821
    %v3827 = vmul.f32 1.0, %v3826
    %v3828 = vrcp.pop %v3808
    %v3829 = vmul.f32 %v3808, %v3828
    %v3830 = vsub.f32 1.0, %v3829
    %v3831 = vmul.f32 %v3828, %v3830
    %v3832 = vadd.f32 %v3828, %v3831
    %vm3833 = vweird.f32 %v3808
    %vm3834 = vweird.f32 %v3828
    %vm3835 = vmor %vm3833, %vm3834
    %v3836 = vsel %vm3835, %v3828, %v3832
    %v3837 = vand.u32 2147483647, %v3808
    %vm3838 = vcmp.eq.f32.partialorder %v3837, 8.507059e+37
    %v3839 = vand.u32 %v3808, 2147483648
    %v3840 = vor.u32 1.1754944e-38, %v3839
    %v3841 = vsel %vm3838, %v3840, %v3836
    %v3842 = vmul.f32 1.0, %v3841
    %v3843 = vrcp.pop %v3809
    %v3844 = vmul.f32 %v3809, %v3843
    %v3845 = vsub.f32 1.0, %v3844
    %v3846 = vmul.f32 %v3843, %v3845
    %v3847 = vadd.f32 %v3843, %v3846
    %vm3848 = vweird.f32 %v3809
    %vm3849 = vweird.f32 %v3843
    %vm3850 = vmor %vm3848, %vm3849
    %v3851 = vsel %vm3850, %v3843, %v3847
    %v3852 = vand.u32 2147483647, %v3809
    %vm3853 = vcmp.eq.f32.partialorder %v3852, 8.507059e+37
    %v3854 = vand.u32 %v3809, 2147483648
    %v3855 = vor.u32 1.1754944e-38, %v3854
    %v3856 = vsel %vm3853, %v3855, %v3851
    %v3857 = vmul.f32 1.0, %v3856
    %v3858 = vrcp.pop %v3810
    %v3859 = vmul.f32 %v3810, %v3858
    %v3860 = vsub.f32 1.0, %v3859
    %v3861 = vmul.f32 %v3858, %v3860
    %v3862 = vadd.f32 %v3858, %v3861
    %vm3863 = vweird.f32 %v3810
    %vm3864 = vweird.f32 %v3858
    %vm3865 = vmor %vm3863, %vm3864
    %v3866 = vsel %vm3865, %v3858, %v3862
    %v3867 = vand.u32 2147483647, %v3810
    %vm3868 = vcmp.eq.f32.partialorder %v3867, 8.507059e+37
    %v3869 = vand.u32 %v3810, 2147483648
    %v3870 = vor.u32 1.1754944e-38, %v3869
    %v3871 = vsel %vm3868, %v3870, %v3866
    %v3872 = vmul.f32 1.0, %v3871
    %v3873 = vrcp.pop %v3811
    %v3874 = vmul.f32 %v3811, %v3873
    %v3875 = vsub.f32 1.0, %v3874
    %v3876 = vmul.f32 %v3873, %v3875
    %v3877 = vadd.f32 %v3873, %v3876
    %vm3878 = vweird.f32 %v3811
    %vm3879 = vweird.f32 %v3873
    %vm3880 = vmor %vm3878, %vm3879
    %v3881 = vsel %vm3880, %v3873, %v3877
    %v3882 = vand.u32 2147483647, %v3811
    %vm3883 = vcmp.eq.f32.partialorder %v3882, 8.507059e+37
    %v3884 = vand.u32 %v3811, 2147483648
    %v3885 = vor.u32 1.1754944e-38, %v3884
    %v3886 = vsel %vm3883, %v3885, %v3881
    %v3887 = vmul.f32 1.0, %v3886
    %v3888 = vrcp.pop %v3812
    %v3889 = vmul.f32 %v3812, %v3888
    %v3890 = vsub.f32 1.0, %v3889
    %v3891 = vmul.f32 %v3888, %v3890
    %v3892 = vadd.f32 %v3888, %v3891
    %vm3893 = vweird.f32 %v3812
    %vm3894 = vweird.f32 %v3888
    %vm3895 = vmor %vm3893, %vm3894
    %v3896 = vsel %vm3895, %v3888, %v3892
    %v3897 = vand.u32 2147483647, %v3812
    %vm3898 = vcmp.eq.f32.partialorder %v3897, 8.507059e+37
    %v3899 = vand.u32 %v3812, 2147483648
    %v3900 = vor.u32 1.1754944e-38, %v3899
    %v3901 = vsel %vm3898, %v3900, %v3896
    %v3902 = vmul.f32 1.0, %v3901
    %v3903 = vmul.f32 %v3827, 1.0614054
    %v3904 = vmul.f32 %v3842, 1.0614054
    %v3905 = vmul.f32 %v3857, 1.0614054
    %v3906 = vmul.f32 %v3872, 1.0614054
    %v3907 = vmul.f32 %v3887, 1.0614054
    %v3908 = vmul.f32 %v3902, 1.0614054
    %v3909 = vadd.f32 %v3903, -1.4531521
    %v3910 = vadd.f32 %v3904, -1.4531521
    %v3911 = vadd.f32 %v3905, -1.4531521
    %v3912 = vadd.f32 %v3906, -1.4531521
    %v3913 = vadd.f32 %v3907, -1.4531521
    %v3914 = vadd.f32 %v3908, -1.4531521
    %v3915 = vmul.f32 %v3909, %v3827
    %v3916 = vmul.f32 %v3910, %v3842
    %v3917 = vmul.f32 %v3911, %v3857
    %v3918 = vmul.f32 %v3912, %v3872
    %v3919 = vmul.f32 %v3913, %v3887
    %v3920 = vmul.f32 %v3914, %v3902
    %v3921 = vadd.f32 %v3915, 1.4214138
    %v3922 = vadd.f32 %v3916, 1.4214138
    %v3923 = vadd.f32 %v3917, 1.4214138
    %v3924 = vadd.f32 %v3918, 1.4214138
    %v3925 = vadd.f32 %v3919, 1.4214138
    %v3926 = vadd.f32 %v3920, 1.4214138
    %v3927 = vmul.f32 %v3921, %v3827
    %v3928 = vmul.f32 %v3922, %v3842
    %v3929 = vmul.f32 %v3923, %v3857
    %v3930 = vmul.f32 %v3924, %v3872
    %v3931 = vmul.f32 %v3925, %v3887
    %v3932 = vmul.f32 %v3926, %v3902
    %v3933 = vadd.f32 %v3927, -0.28449672
    %v3934 = vadd.f32 %v3928, -0.28449672
    %v3935 = vadd.f32 %v3929, -0.28449672
    %v3936 = vadd.f32 %v3930, -0.28449672
    %v3937 = vadd.f32 %v3931, -0.28449672
    %v3938 = vadd.f32 %v3932, -0.28449672
    %v3939 = vmul.f32 %v3933, %v3827
    %v3940 = vmul.f32 %v3934, %v3842
    %v3941 = vmul.f32 %v3935, %v3857
    %v3942 = vmul.f32 %v3936, %v3872
    %v3943 = vmul.f32 %v3937, %v3887
    %v3944 = vmul.f32 %v3938, %v3902
    %v3945 = vadd.f32 %v3939, 0.2548296
    %v3946 = vadd.f32 %v3940, 0.2548296
    %v3947 = vadd.f32 %v3941, 0.2548296
    %v3948 = vadd.f32 %v3942, 0.2548296
    %v3949 = vadd.f32 %v3943, 0.2548296
    %v3950 = vadd.f32 %v3944, 0.2548296
    %v3951 = vmul.f32 %v3945, %v3827
    %v3952 = vmul.f32 %v3946, %v3842
    %v3953 = vmul.f32 %v3947, %v3857
    %v3954 = vmul.f32 %v3948, %v3872
    %v3955 = vmul.f32 %v3949, %v3887
    %v3956 = vmul.f32 %v3950, %v3902
    %v3957 = vsub.f32 0.0, %v3795
    %v3958 = vsub.f32 0.0, %v3796
    %v3959 = vsub.f32 0.0, %v3797
    %v3960 = vsub.f32 0.0, %v3798
    %v3961 = vsub.f32 0.0, %v3799
    %v3962 = vsub.f32 0.0, %v3800
    %v3963 = vmul.f32 %v3957, %v3795
    %v3964 = vmul.f32 %v3958, %v3796
    %v3965 = vmul.f32 %v3959, %v3797
    %v3966 = vmul.f32 %v3960, %v3798
    %v3967 = vmul.f32 %v3961, %v3799
    %v3968 = vmul.f32 %v3962, %v3800
    %v3969 = vmul.f32 %v3963, 1.442695
    %v3970 = vpow.pop %v3969
    %v3971 = vmul.f32 %v3964, 1.442695
    %v3972 = vpow.pop %v3971
    %v3973 = vmul.f32 %v3965, 1.442695
    %v3974 = vpow.pop %v3973
    %v3975 = vmul.f32 %v3966, 1.442695
    %v3976 = vpow.pop %v3975
    %v3977 = vmul.f32 %v3967, 1.442695
    %v3978 = vpow.pop %v3977
    %v3979 = vmul.f32 %v3968, 1.442695
    %v3980 = vpow.pop %v3979
    %v3981 = vmul.f32 %v3951, %v3970
    %v3982 = vmul.f32 %v3952, %v3972
    %v3983 = vmul.f32 %v3953, %v3974
    %v3984 = vmul.f32 %v3954, %v3976
    %v3985 = vmul.f32 %v3955, %v3978
    %v3986 = vmul.f32 %v3956, %v3980
    %v3987 = vsub.f32 1.0, %v3981
    %v3988 = vsub.f32 1.0, %v3982
    %v3989 = vsub.f32 1.0, %v3983
    %v3990 = vsub.f32 1.0, %v3984
    %v3991 = vsub.f32 1.0, %v3985
    %v3992 = vsub.f32 1.0, %v3986
    %vm3993 = vcmp.ge.f32.partialorder %v3789, 0.0
    %vm3994 = vcmp.ge.f32.partialorder %v3790, 0.0
    %vm3995 = vcmp.ge.f32.partialorder %v3791, 0.0
    %vm3996 = vcmp.ge.f32.partialorder %v3792, 0.0
    %vm3997 = vcmp.ge.f32.partialorder %v3793, 0.0
    %vm3998 = vcmp.ge.f32.partialorder %v3794, 0.0
    %v3999 = vsub.f32 0.0, %v3987
    %v4000 = vsub.f32 0.0, %v3988
    %v4001 = vsub.f32 0.0, %v3989
    %v4002 = vsub.f32 0.0, %v3990
    %v4003 = vsub.f32 0.0, %v3991
    %v4004 = vsub.f32 0.0, %v3992
    %v4005 = vsel %vm3993, %v3987, %v3999
    %v4006 = vsel %vm3994, %v3988, %v4000
    %v4007 = vsel %vm3995, %v3989, %v4001
    %v4008 = vsel %vm3996, %v3990, %v4002
    %v4009 = vsel %vm3997, %v3991, %v4003
    %v4010 = vsel %vm3998, %v3992, %v4004
    %v4011 = vadd.f32 %v4005, 1.0
    %v4012 = vadd.f32 %v4006, 1.0
    %v4013 = vadd.f32 %v4007, 1.0
    %v4014 = vadd.f32 %v4008, 1.0
    %v4015 = vadd.f32 %v4009, 1.0
    %v4016 = vadd.f32 %v4010, 1.0
    %v4017 = vmul.f32 %v3783, %v4011
    %v4018 = vmul.f32 %v3784, %v4012
    %v4019 = vmul.f32 %v3785, %v4013
    %v4020 = vmul.f32 %v3786, %v4014
    %v4021 = vmul.f32 %v3787, %v4015
    %v4022 = vmul.f32 %v3788, %v4016
    %s4023 = scalar_lea.vmem %s14, 128
    %v4024 = vld [vmem:[%s4023] sm:$0xff]
    %v4025 = vld [vmem:[%s4023 + $0x8] sm:$0xff]
    %v4026 = vld [vmem:[%s4023 + $0x10] sm:$0xff]
    %v4027 = vld [vmem:[%s4023 + $0x18] sm:$0xff]
    %v4028 = vld [vmem:[%s4023 + $0x20] sm:$0xff]
    %v4029 = vld [vmem:[%s4023 + $0x28] sm:$0xff]
    %v4030 = vld [vmem:[%s4023 + $0x30] sm:$0xff]
    %v4031 = vld [vmem:[%s4023 + $0x38] sm:$0xff]
    %v4032 = vld [vmem:[%s4023 + $0x40] sm:$0xff]
    %v4033 = vld [vmem:[%s4023 + $0x48] sm:$0xff]
    %v4034 = vld [vmem:[%s4023 + $0x50] sm:$0xff]
    %v4035 = vld [vmem:[%s4023 + $0x58] sm:$0xff]
    %v4036 = vld [vmem:[%s4023 + $0x60] sm:$0xff]
    %v4037 = vld [vmem:[%s4023 + $0x68] sm:$0xff]
    %v4038 = vld [vmem:[%s4023 + $0x70] sm:$0xff]
    %v4039 = vld [vmem:[%s4023 + $0x78] sm:$0xff]
    %s4040 = scalar_lea.vmem %s15, 1
    %v4041 = vld [vmem:[%s4040] sm:$0x1]
    %v4043 = vperm.slane %v4041, 0
    %4045 = vmatpush.msra.mxu0 %v4039
    %4046 = vmatpush.msra.mxu0 %v4038
    %4047 = vmatpush.msra.mxu0 %v4037
    %4048 = vmatpush.msra.mxu0 %v4036
    %4049 = vmatpush.msra.mxu0 %v4035
    %4050 = vmatpush.msra.mxu0 %v4034
    %4051 = vmatpush.msra.mxu0 %v4033
    %4052 = vmatpush.msra.mxu0 %v4032
    %4053 = vmatpush.msra.mxu0 %v4031
    %4054 = vmatpush.msra.mxu0 %v4030
    %4055 = vmatpush.msra.mxu0 %v4029
    %4056 = vmatpush.msra.mxu0 %v4028
    %4057 = vmatpush.msra.mxu0 %v4027
    %4058 = vmatpush.msra.mxu0 %v4026
    %4059 = vmatpush.msra.mxu0 %v4025
    %4060 = vmatpush.msra.mxu0 %v4024
    %4061 = vmatmul.f32.gmra.mxu0 %v4017
    %v4062 = vpop.f32.mrf.mxu0
    %v4063 = vadd.f32 %v4043, %v4062
    %4064 = vmatmul.f32.gmra.mxu0 %v4018
    %v4065 = vpop.f32.mrf.mxu0
    %4066 = vmatmul.f32.gmra.mxu0 %v4019
    %v4067 = vpop.f32.mrf.mxu0
    %4068 = vmatmul.f32.gmra.mxu0 %v4020
    %v4069 = vpop.f32.mrf.mxu0
    %v4070 = vadd.f32 %v4043, %v4069
    %4071 = vmatmul.f32.gmra.mxu0 %v4021
    %v4072 = vpop.f32.mrf.mxu0
    %4073 = vmatmul.f32.gmra.mxu0 %v4022
    %v4074 = vpop.f32.mrf.mxu0
    %4075 = vdwg.mxu0
    %v4076 = vadd.f32 %v3560, %v4063
    %v4077 = vadd.f32 %v3563, %v4070
    %v4078 = vld [vmem:[%s16] sm:$0x1]
    %v4079 = vld [vmem:[%s17] sm:$0x1]
    %v4080 = vsel %vm127, %v4076, 0.0
    %4081 = vadd.xlane.f32.xlu0 %v4080
    %v4082 = vpop.xlane.xlu0 %4081
    %v4083 = vmul.f32 %v4082, %v189
    %v4084 = vsub.f32 %v4076, %v4083
    %v4085 = vmul.f32 %v4084, %v4084
    %v4086 = vsel %vm127, %v4085, 0.0
    %4087 = vadd.xlane.f32.xlu0 %v4086
    %v4088 = vpop.xlane.xlu0 %4087
    %v4089 = vmul.f32 %v4088, %v189
    %v4090 = vadd.f32 %v4089, 1e-05
    %v4091 = vrsqrt.pop %v4090
    %v4092 = vmul.f32 %v4091, %v4090
    %v4093 = vmul.f32 %v4092, %v4091
    %v4094 = vmul.f32 0.5, %v4093
    %v4095 = vsub.f32 1.5, %v4094
    %v4096 = vmul.f32 %v4091, %v4095
    %vm4097 = vweird.f32 %v4090
    %vm4098 = vweird.f32 %v4091
    %vm4099 = vmor %vm4097, %vm4098
    %v4100 = vsel %vm4099, %v4091, %v4096
    %v4101 = vmul.f32 %v4084, %v4100
    %v4102 = vmul.f32 %v4101, %v4078
    %v4103 = vadd.f32 %v4102, %v4079
    %v4104 = vld [vmem:[%s18] sm:$0xff]
    %v4105 = vld [vmem:[%s18 + $0x8] sm:$0xff]
    %v4106 = vld [vmem:[%s18 + $0x10] sm:$0xff]
    %v4107 = vld [vmem:[%s18 + $0x18] sm:$0xff]
    %v4108 = vld [vmem:[%s19] sm:$0x1]
    %v4110 = vsel %vm142, %v4103, 0
    %4112 = vmatpush.msra.mxu0 0.0
    %4113 = vmatpush.msra.mxu0 0.0
    %4114 = vmatpush.msra.mxu0 0.0
    %4115 = vmatpush.msra.mxu0 0.0
    %4116 = vmatpush.msra.mxu0 0.0
    %4117 = vmatpush.msra.mxu0 0.0
    %4118 = vmatpush.msra.mxu0 0.0
    %4119 = vmatpush.msra.mxu0 0.0
    %4120 = vmatpush.msra.mxu0 0.0
    %4121 = vmatpush.msra.mxu0 0.0
    %4122 = vmatpush.msra.mxu0 0.0
    %4123 = vmatpush.msra.mxu0 0.0
    %4124 = vmatpush.msra.mxu0 %v4107
    %4125 = vmatpush.msra.mxu0 %v4106
    %4126 = vmatpush.msra.mxu0 %v4105
    %4127 = vmatpush.msra.mxu0 %v4104
    %4128 = vmatmul.f32.gmra.mxu0 %v4110
    %v4129 = vpop.f32.mrf.mxu0
    %v4130 = vadd.f32 %v4108, %v4129
    %4131 = vdwg.mxu0
    %vm4132 = vcmask 73728
    %4133 = vst.msk [vmem:[#allocation4] sm:$0x1] %vm4132, %v4130
    %v4134 = vld [vmem:[%s16] sm:$0x1]
    %v4135 = vld [vmem:[%s17] sm:$0x1]
    %v4136 = vsel %vm127, %v4077, 0.0
    %4137 = vadd.xlane.f32.xlu0 %v4136
    %v4138 = vpop.xlane.xlu0 %4137
    %v4139 = vmul.f32 %v4138, %v189
    %v4140 = vsub.f32 %v4077, %v4139
    %v4141 = vmul.f32 %v4140, %v4140
    %v4142 = vsel %vm127, %v4141, 0.0
    %4143 = vadd.xlane.f32.xlu0 %v4142
    %v4144 = vpop.xlane.xlu0 %4143
    %v4145 = vmul.f32 %v4144, %v189
    %v4146 = vadd.f32 %v4145, 1e-05
    %v4147 = vrsqrt.pop %v4146
    %v4148 = vmul.f32 %v4147, %v4146
    %v4149 = vmul.f32 %v4148, %v4147
    %v4150 = vmul.f32 0.5, %v4149
    %v4151 = vsub.f32 1.5, %v4150
    %v4152 = vmul.f32 %v4147, %v4151
    %vm4153 = vweird.f32 %v4146
    %vm4154 = vweird.f32 %v4147
    %vm4155 = vmor %vm4153, %vm4154
    %v4156 = vsel %vm4155, %v4147, %v4152
    %v4157 = vmul.f32 %v4140, %v4156
    %v4158 = vmul.f32 %v4157, %v4134
    %v4159 = vadd.f32 %v4158, %v4135
    %v4160 = vld [vmem:[%s18] sm:$0xff]
    %v4161 = vld [vmem:[%s18 + $0x8] sm:$0xff]
    %v4162 = vld [vmem:[%s18 + $0x10] sm:$0xff]
    %v4163 = vld [vmem:[%s18 + $0x18] sm:$0xff]
    %v4164 = vld [vmem:[%s19] sm:$0x1]
    %v4166 = vsel %vm142, %v4159, 0
    %4168 = vmatpush.msra.mxu0 0.0
    %4169 = vmatpush.msra.mxu0 0.0
    %4170 = vmatpush.msra.mxu0 0.0
    %4171 = vmatpush.msra.mxu0 0.0
    %4172 = vmatpush.msra.mxu0 0.0
    %4173 = vmatpush.msra.mxu0 0.0
    %4174 = vmatpush.msra.mxu0 0.0
    %4175 = vmatpush.msra.mxu0 0.0
    %4176 = vmatpush.msra.mxu0 0.0
    %4177 = vmatpush.msra.mxu0 0.0
    %4178 = vmatpush.msra.mxu0 0.0
    %4179 = vmatpush.msra.mxu0 0.0
    %4180 = vmatpush.msra.mxu0 %v4163
    %4181 = vmatpush.msra.mxu0 %v4162
    %4182 = vmatpush.msra.mxu0 %v4161
    %4183 = vmatpush.msra.mxu0 %v4160
    %4184 = vmatmul.f32.gmra.mxu0 %v4166
    %v4185 = vpop.f32.mrf.mxu0
    %v4186 = vadd.f32 %v4164, %v4185
    %4187 = vdwg.mxu0
    %4188 = vst.msk [vmem:[#allocation4 + $0x1] sm:$0x1] %vm4132, %v4186
    // Predicated region
    $region82: #{vit_forward.1} parent=1 // pred_check
      _
    $region83: #{vit_forward.1} parent=1 // pred_check_branch
      %4190 = sbr.rel (0) target = $region85
    $region84: #{vit_forward.1} parent=1 // pred_region
      %4192 = vsyncadd [#allocation5], 0
      %s4194 = sshll.u32 [#allocation4], 4
      %s4195 = int_to_ptr.vmem [resolvable:$true] %s4194
      %s4196 = sshll.u32 %s20, 4
      %s4197 = int_to_ptr.hbm [resolvable:$true] %s4196
      %4199 = dma.vmem_to_hbm [thread:$0]  %s4195, 32, %s4197, [#allocation5]
    $region85: #{vit_forward.1} parent=1 // pred_fallthru
      _
    // Predicated region
    $region86: #{vit_forward.1} parent=1 // pred_check
      _
    $region87: #{vit_forward.1} parent=1 // pred_check_branch
      %4201 = sbr.rel (0) target = $region89
    $region88: #{vit_forward.1} parent=1 // pred_region
      %4203 = dma.done [#allocation5], 32
    $region89: #{vit_forward.1} parent=1 // pred_fallthru
      _
    %4204 = vsyncpa [#allocation5], 1

</llo_original>
